<compile_context>
chip_gen: v7x
topology: tpu7x:2x2x1
jax: 0.10.0
libtpu: 0.0.40
codegen_flags: <defaults>
</compile_context>

<pallas_src>
import jax
import jax.numpy as jnp
import numpy as np
from jax import lax
from jax.experimental import pallas as pl
from jax.experimental.pallas import tpu as pltpu


def _cnn_kernel(x_ref, w_in_ref, b_in_ref,
                w2_ref, b2_ref, w3_ref, b3_ref, w4_ref, b4_ref,
                w5_ref, b5_ref, w6_ref, b6_ref,
                wexp_ref, bfc_ref, out_ref):
    f32 = jnp.float32

    def stage(h, w_ref, b_ref, d, do_pool):
        # Fused 3-tap dilated "valid" conv: stack the three shifted windows on sublanes
        # and do ONE matmul with the pre-fused (Cout, 3*Cin) weight.
        Lh = h.shape[1]
        Lout = Lh - 2 * d
        hstack = jnp.concatenate(
            [h[:, 0:Lout], h[:, d:d + Lout], h[:, 2 * d:2 * d + Lout]], axis=0)
        c = jnp.dot(w_ref[...], hstack, preferred_element_type=f32) + b_ref[...]
        if not do_pool:
            return c
        r = jax.nn.relu(c)
        # MaxPool1d(2,2) kept on the full (dilated) position grid.
        return jnp.maximum(r[:, 0:Lout - d], r[:, d:Lout])

    x = x_ref[0]                                                     # (I, L)
    # dec_input: Linear(I -> 5) applied per position == one matmul over the length axis.
    u = jnp.dot(w_in_ref[...], x, preferred_element_type=f32) + b_in_ref[...]

    h = stage(u, w2_ref, b2_ref, 1, True)
    h = stage(h, w3_ref, b3_ref, 2, True)
    h = stage(h, w4_ref, b4_ref, 4, True)
    h = stage(h, w5_ref, b5_ref, 8, True)
    c6 = stage(h, w6_ref, b6_ref, 16, False)                         # (1, L-77), true outs @ stride 16

    # fc1 + sigmoid: stride-16 selection folded into the pre-expanded fc1 weights
    # (zeros at unused positions) -> one lane-dense multiply + reduction per sample.
    logit = jnp.sum(wexp_ref[...] * c6, axis=1, keepdims=True) + bfc_ref[...]   # (1, 1)
    out_ref[...] = jax.nn.sigmoid(logit)[None]                        # (1, 1, 1)


def model_forward(x, params):
    """x: (B, L, input_size) float32.  Returns (B, 1), matching
    torch.squeeze(sigmoid(fc1(conv_stack(...))), 2) under the consistent reading."""
    x = x.astype(jnp.float32)
    B, L, I = x.shape
    n_fc = params['fc1_w'].shape[1]                      # 100

    # Length of the real (downsampled) conv chain must match fc1.in_features.
    l = L
    for _ in range(4):
        l = (l - 2) // 2
    l = l - 2
    assert l == n_fc, f"seq length {L} gives conv6 length {l}, fc1 expects {n_fc}"
    assert 16 * (n_fc - 1) + 78 <= L                     # receptive field fits per sample

    Lc6 = L - 77                                         # full-grid conv6 length (RF = 78)

    # (B, L, I) -> (B, I, L): channels-first per sample, long length axis on lanes.
    x_cl = jnp.transpose(x, (0, 2, 1))

    # Expand fc1 weights onto the per-sample dilated conv6 grid (host-side numpy constant,
    # batch-independent): j-th true conv6 output sits at dilated position 16*j.
    w_exp_np = np.zeros((1, Lc6), np.float32)
    w_exp_np[0, 16 * np.arange(n_fc)] = np.asarray(params['fc1_w'], np.float32)[0]
    w_exp = jnp.asarray(w_exp_np)

    def conv_wf(name):
        # (Cout, Cin, 3) -> (Cout, 3*Cin) matching hstack row order [tap0; tap1; tap2].
        w = params[name + '_w'].astype(jnp.float32)
        return jnp.transpose(w, (0, 2, 1)).reshape(w.shape[0], 3 * w.shape[1])

    def conv_b(name):
        return params[name + '_b'].reshape(-1, 1).astype(jnp.float32)

    w_in = params['dec_input_w'].astype(jnp.float32)                          # (5, I)
    b_in = params['dec_input_b'].reshape(-1, 1).astype(jnp.float32)
    b_fc = params['fc1_b'].reshape(1, 1).astype(jnp.float32)

    inputs = (x_cl, w_in, b_in,
              conv_wf('conv2'), conv_b('conv2'),
              conv_wf('conv3'), conv_b('conv3'),
              conv_wf('conv4'), conv_b('conv4'),
              conv_wf('conv5'), conv_b('conv5'),
              conv_wf('conv6'), conv_b('conv6'),
              w_exp, b_fc)

    const = lambda shape: pl.BlockSpec(shape, lambda b: (0,) * len(shape))
    in_specs = [
        pl.BlockSpec((1, I, L), lambda b: (b, 0, 0)),    # x: one sample per grid step
        const(w_in.shape), const(b_in.shape),
        const((10, 15)), const((10, 1)),
        const((20, 30)), const((20, 1)),
        const((10, 60)), const((10, 1)),
        const((5, 30)), const((5, 1)),
        const((1, 15)), const((1, 1)),
        const((1, Lc6)), const((1, 1)),
    ]
    out_specs = pl.BlockSpec((1, 1, 1), lambda b: (b, 0, 0))

    per_sample_flops = 2 * (L * 5 * I
                            + (L - 2) * 10 * 15
                            + (L - 7) * 20 * 30
                            + (L - 17) * 10 * 60
                            + (L - 37) * 5 * 30
                            + (L - 77) * 1 * 15
                            + (L - 77))
    bytes_accessed = int(sum(int(np.prod(a.shape)) for a in inputs) * 4 + B * 4)

    out = pl.pallas_call(
        _cnn_kernel,
        out_shape=jax.ShapeDtypeStruct((B, 1, 1), jnp.float32),
        grid=(B,),
        in_specs=in_specs,
        out_specs=out_specs,
        compiler_params=pltpu.CompilerParams(
            dimension_semantics=("parallel",)),          # megacore-shardable batch axis
        cost_estimate=pl.CostEstimate(flops=int(B * per_sample_flops),
                                      transcendentals=B,
                                      bytes_accessed=bytes_accessed),
    )(*inputs)
    return out.reshape(B, 1)


def ref_forward(x, params):
    """Pure-JAX reference mirroring the PyTorch forward (same consistent reading)."""
    x = x.astype(jnp.float32)
    hp = jax.lax.Precision.HIGHEST
    u = jnp.dot(x, params['dec_input_w'].T, precision=hp) + params['dec_input_b']
    h = jnp.transpose(u, (0, 2, 1))                                  # (B, 5, L)

    def conv(h, w, b):
        y = lax.conv_general_dilated(h, w, window_strides=(1,), padding='VALID',
                                     dimension_numbers=('NCH', 'OIH', 'NCH'),
                                     precision=hp)
        return y + b[None, :, None]

    def pool(h):
        return lax.reduce_window(h, -jnp.inf, lax.max, (1, 1, 2), (1, 1, 2), 'VALID')

    for name in ('conv2', 'conv3', 'conv4', 'conv5'):
        h = pool(jax.nn.relu(conv(h, params[name + '_w'], params[name + '_b'])))
    h = conv(h, params['conv6_w'], params['conv6_b'])                # (B, 1, 100)
    y = jnp.dot(h, params['fc1_w'].T, precision=hp) + params['fc1_b']
    y = jax.nn.sigmoid(y)
    return y[:, :, 0]                                                # squeeze dim 2


if __name__ == "__main__":
    # time_step = dummy_start + eval + overlap + dummy_end must be 1662 so the
    # conv/pool chain ends at length 100 = fc1.in_features.
    cfg = dict(input_size=4, dummy_length_start=2, eval_length=1654,
               overlap_length=4, dummy_length_end=2)
    L = (cfg['dummy_length_start'] + cfg['eval_length']
         + cfg['overlap_length'] + cfg['dummy_length_end'])          # 1662
    B = 2
    I = cfg['input_size']

    key = jax.random.PRNGKey(0)
    ks = jax.random.split(key, 16)

    def u(k, shape, fan_in):
        s = 1.0 / (fan_in ** 0.5)
        return jax.random.uniform(k, shape, jnp.float32, -s, s)

    params = {
        'dec_input_w': u(ks[0], (5, I), I),       'dec_input_b': u(ks[1], (5,), I),
        'conv2_w': u(ks[2], (10, 5, 3), 15),      'conv2_b': u(ks[3], (10,), 15),
        'conv3_w': u(ks[4], (20, 10, 3), 30),     'conv3_b': u(ks[5], (20,), 30),
        'conv4_w': u(ks[6], (10, 20, 3), 60),     'conv4_b': u(ks[7], (10,), 60),
        'conv5_w': u(ks[8], (5, 10, 3), 30),      'conv5_b': u(ks[9], (5,), 30),
        'conv6_w': u(ks[10], (1, 5, 3), 15),      'conv6_b': u(ks[11], (1,), 15),
        'fc1_w': u(ks[12], (1, 100), 100),        'fc1_b': u(ks[13], (1,), 100),
    }
    x = jax.random.normal(ks[14], (B, L, I), jnp.float32)

    out = model_forward(x, params)
    out = jax.block_until_ready(out)

    ref = ref_forward(x, params)
    assert out.shape == (B, 1)
    np.testing.assert_allclose(np.asarray(out), np.asarray(ref), rtol=2e-3, atol=2e-3)
    print("KERNEL_OK")
</pallas_src>

<mosaic_0001>
module attributes {stable_mosaic.version = 11 : i64} {
  func.func @_cnn_kernel(%arg0: i32, %arg1: memref<1x4x1662xf32, #tpu.memory_space<vmem>>, %arg2: memref<5x4xf32, #tpu.memory_space<vmem>>, %arg3: memref<5x1xf32, #tpu.memory_space<vmem>>, %arg4: memref<10x15xf32, #tpu.memory_space<vmem>>, %arg5: memref<10x1xf32, #tpu.memory_space<vmem>>, %arg6: memref<20x30xf32, #tpu.memory_space<vmem>>, %arg7: memref<20x1xf32, #tpu.memory_space<vmem>>, %arg8: memref<10x60xf32, #tpu.memory_space<vmem>>, %arg9: memref<10x1xf32, #tpu.memory_space<vmem>>, %arg10: memref<5x30xf32, #tpu.memory_space<vmem>>, %arg11: memref<5x1xf32, #tpu.memory_space<vmem>>, %arg12: memref<1x15xf32, #tpu.memory_space<vmem>>, %arg13: memref<1x1xf32, #tpu.memory_space<vmem>>, %arg14: memref<1x1585xf32, #tpu.memory_space<vmem>>, %arg15: memref<1x1xf32, #tpu.memory_space<vmem>>, %arg16: memref<1x1x1xf32, #tpu.memory_space<vmem>>) attributes {dimension_semantics = [#tpu.dimension_semantics<parallel>], iteration_bounds = array<i64: 2>, scalar_prefetch = 0 : i64, scratch_operands = 0 : i64, tpu.core_type = #tpu.core_type<tc>, window_params = [{transform_indices = @transform_0, window_bounds = array<i64: 1, 4, 1662>}, {pipeline_mode = #tpu.pipeline_mode<synchronous>, transform_indices = @transform_1, window_bounds = array<i64: 5, 4>}, {pipeline_mode = #tpu.pipeline_mode<synchronous>, transform_indices = @transform_2, window_bounds = array<i64: 5, 1>}, {pipeline_mode = #tpu.pipeline_mode<synchronous>, transform_indices = @transform_3, window_bounds = array<i64: 10, 15>}, {pipeline_mode = #tpu.pipeline_mode<synchronous>, transform_indices = @transform_4, window_bounds = array<i64: 10, 1>}, {pipeline_mode = #tpu.pipeline_mode<synchronous>, transform_indices = @transform_5, window_bounds = array<i64: 20, 30>}, {pipeline_mode = #tpu.pipeline_mode<synchronous>, transform_indices = @transform_6, window_bounds = array<i64: 20, 1>}, {pipeline_mode = #tpu.pipeline_mode<synchronous>, transform_indices = @transform_7, window_bounds = array<i64: 10, 60>}, {pipeline_mode = #tpu.pipeline_mode<synchronous>, transform_indices = @transform_8, window_bounds = array<i64: 10, 1>}, {pipeline_mode = #tpu.pipeline_mode<synchronous>, transform_indices = @transform_9, window_bounds = array<i64: 5, 30>}, {pipeline_mode = #tpu.pipeline_mode<synchronous>, transform_indices = @transform_10, window_bounds = array<i64: 5, 1>}, {pipeline_mode = #tpu.pipeline_mode<synchronous>, transform_indices = @transform_11, window_bounds = array<i64: 1, 15>}, {pipeline_mode = #tpu.pipeline_mode<synchronous>, transform_indices = @transform_12, window_bounds = array<i64: 1, 1>}, {pipeline_mode = #tpu.pipeline_mode<synchronous>, transform_indices = @transform_13, window_bounds = array<i64: 1, 1585>}, {pipeline_mode = #tpu.pipeline_mode<synchronous>, transform_indices = @transform_14, window_bounds = array<i64: 1, 1>}, {transform_indices = @transform_15, window_bounds = array<i64: 1, 1, 1>}]} {
    %c0 = arith.constant 0 : index
    %c0_0 = arith.constant 0 : index
    %c0_1 = arith.constant 0 : index
    %0 = vector.load %arg1[%c0, %c0_0, %c0_1] : memref<1x4x1662xf32, #tpu.memory_space<vmem>>, vector<1x4x1662xf32>
    %1 = vector.shape_cast %0 : vector<1x4x1662xf32> to vector<4x1662xf32>
    %c0_2 = arith.constant 0 : index
    %c0_3 = arith.constant 0 : index
    %2 = vector.load %arg2[%c0_2, %c0_3] : memref<5x4xf32, #tpu.memory_space<vmem>>, vector<5x4xf32>
    %cst = arith.constant dense<0.000000e+00> : vector<5x1662xf32>
    %3 = tpu.matmul %2, %1, %cst {dimension_numbers = #tpu.dot_dimension_numbers<[1], [0], [0], [1], [0, 0, 1, 1], [], []>} : vector<5x4xf32>, vector<4x1662xf32>, vector<5x1662xf32> -> vector<5x1662xf32>
    %c0_4 = arith.constant 0 : index
    %c0_5 = arith.constant 0 : index
    %4 = vector.load %arg3[%c0_4, %c0_5] : memref<5x1xf32, #tpu.memory_space<vmem>>, vector<5x1xf32>
    %5 = vector.broadcast %4 : vector<5x1xf32> to vector<5x1662xf32>
    %6 = arith.addf %3, %5 : vector<5x1662xf32>
    %7 = vector.extract_strided_slice %6 {offsets = [0, 0], sizes = [5, 1660], strides = [1, 1]} : vector<5x1662xf32> to vector<5x1660xf32>
    %8 = vector.extract_strided_slice %6 {offsets = [0, 1], sizes = [5, 1660], strides = [1, 1]} : vector<5x1662xf32> to vector<5x1660xf32>
    %9 = vector.extract_strided_slice %6 {offsets = [0, 2], sizes = [5, 1660], strides = [1, 1]} : vector<5x1662xf32> to vector<5x1660xf32>
    %10 = tpu.concatenate %7, %8, %9 in 0 : vector<5x1660xf32>, vector<5x1660xf32>, vector<5x1660xf32> -> vector<15x1660xf32>
    %c0_6 = arith.constant 0 : index
    %c0_7 = arith.constant 0 : index
    %11 = vector.load %arg4[%c0_6, %c0_7] : memref<10x15xf32, #tpu.memory_space<vmem>>, vector<10x15xf32>
    %cst_8 = arith.constant dense<0.000000e+00> : vector<10x1660xf32>
    %12 = tpu.matmul %11, %10, %cst_8 {dimension_numbers = #tpu.dot_dimension_numbers<[1], [0], [0], [1], [0, 0, 1, 1], [], []>} : vector<10x15xf32>, vector<15x1660xf32>, vector<10x1660xf32> -> vector<10x1660xf32>
    %c0_9 = arith.constant 0 : index
    %c0_10 = arith.constant 0 : index
    %13 = vector.load %arg5[%c0_9, %c0_10] : memref<10x1xf32, #tpu.memory_space<vmem>>, vector<10x1xf32>
    %14 = vector.broadcast %13 : vector<10x1xf32> to vector<10x1660xf32>
    %15 = arith.addf %12, %14 : vector<10x1660xf32>
    %cst_11 = arith.constant 0.000000e+00 : f32
    %16 = vector.broadcast %cst_11 : f32 to vector<10x1660xf32>
    %17 = arith.maximumf %15, %16 : vector<10x1660xf32>
    %18 = vector.extract_strided_slice %17 {offsets = [0, 0], sizes = [10, 1659], strides = [1, 1]} : vector<10x1660xf32> to vector<10x1659xf32>
    %19 = vector.extract_strided_slice %17 {offsets = [0, 1], sizes = [10, 1659], strides = [1, 1]} : vector<10x1660xf32> to vector<10x1659xf32>
    %20 = arith.maximumf %18, %19 : vector<10x1659xf32>
    %21 = vector.extract_strided_slice %20 {offsets = [0, 0], sizes = [10, 1655], strides = [1, 1]} : vector<10x1659xf32> to vector<10x1655xf32>
    %22 = vector.extract_strided_slice %20 {offsets = [0, 2], sizes = [10, 1655], strides = [1, 1]} : vector<10x1659xf32> to vector<10x1655xf32>
    %23 = vector.extract_strided_slice %20 {offsets = [0, 4], sizes = [10, 1655], strides = [1, 1]} : vector<10x1659xf32> to vector<10x1655xf32>
    %24 = tpu.concatenate %21, %22, %23 in 0 : vector<10x1655xf32>, vector<10x1655xf32>, vector<10x1655xf32> -> vector<30x1655xf32>
    %c0_12 = arith.constant 0 : index
    %c0_13 = arith.constant 0 : index
    %25 = vector.load %arg6[%c0_12, %c0_13] : memref<20x30xf32, #tpu.memory_space<vmem>>, vector<20x30xf32>
    %cst_14 = arith.constant dense<0.000000e+00> : vector<20x1655xf32>
    %26 = tpu.matmul %25, %24, %cst_14 {dimension_numbers = #tpu.dot_dimension_numbers<[1], [0], [0], [1], [0, 0, 1, 1], [], []>} : vector<20x30xf32>, vector<30x1655xf32>, vector<20x1655xf32> -> vector<20x1655xf32>
    %c0_15 = arith.constant 0 : index
    %c0_16 = arith.constant 0 : index
    %27 = vector.load %arg7[%c0_15, %c0_16] : memref<20x1xf32, #tpu.memory_space<vmem>>, vector<20x1xf32>
    %28 = vector.broadcast %27 : vector<20x1xf32> to vector<20x1655xf32>
    %29 = arith.addf %26, %28 : vector<20x1655xf32>
    %cst_17 = arith.constant 0.000000e+00 : f32
    %30 = vector.broadcast %cst_17 : f32 to vector<20x1655xf32>
    %31 = arith.maximumf %29, %30 : vector<20x1655xf32>
    %32 = vector.extract_strided_slice %31 {offsets = [0, 0], sizes = [20, 1653], strides = [1, 1]} : vector<20x1655xf32> to vector<20x1653xf32>
    %33 = vector.extract_strided_slice %31 {offsets = [0, 2], sizes = [20, 1653], strides = [1, 1]} : vector<20x1655xf32> to vector<20x1653xf32>
    %34 = arith.maximumf %32, %33 : vector<20x1653xf32>
    %35 = vector.extract_strided_slice %34 {offsets = [0, 0], sizes = [20, 1645], strides = [1, 1]} : vector<20x1653xf32> to vector<20x1645xf32>
    %36 = vector.extract_strided_slice %34 {offsets = [0, 4], sizes = [20, 1645], strides = [1, 1]} : vector<20x1653xf32> to vector<20x1645xf32>
    %37 = vector.extract_strided_slice %34 {offsets = [0, 8], sizes = [20, 1645], strides = [1, 1]} : vector<20x1653xf32> to vector<20x1645xf32>
    %38 = tpu.concatenate %35, %36, %37 in 0 : vector<20x1645xf32>, vector<20x1645xf32>, vector<20x1645xf32> -> vector<60x1645xf32>
    %c0_18 = arith.constant 0 : index
    %c0_19 = arith.constant 0 : index
    %39 = vector.load %arg8[%c0_18, %c0_19] : memref<10x60xf32, #tpu.memory_space<vmem>>, vector<10x60xf32>
    %cst_20 = arith.constant dense<0.000000e+00> : vector<10x1645xf32>
    %40 = tpu.matmul %39, %38, %cst_20 {dimension_numbers = #tpu.dot_dimension_numbers<[1], [0], [0], [1], [0, 0, 1, 1], [], []>} : vector<10x60xf32>, vector<60x1645xf32>, vector<10x1645xf32> -> vector<10x1645xf32>
    %c0_21 = arith.constant 0 : index
    %c0_22 = arith.constant 0 : index
    %41 = vector.load %arg9[%c0_21, %c0_22] : memref<10x1xf32, #tpu.memory_space<vmem>>, vector<10x1xf32>
    %42 = vector.broadcast %41 : vector<10x1xf32> to vector<10x1645xf32>
    %43 = arith.addf %40, %42 : vector<10x1645xf32>
    %cst_23 = arith.constant 0.000000e+00 : f32
    %44 = vector.broadcast %cst_23 : f32 to vector<10x1645xf32>
    %45 = arith.maximumf %43, %44 : vector<10x1645xf32>
    %46 = vector.extract_strided_slice %45 {offsets = [0, 0], sizes = [10, 1641], strides = [1, 1]} : vector<10x1645xf32> to vector<10x1641xf32>
    %47 = vector.extract_strided_slice %45 {offsets = [0, 4], sizes = [10, 1641], strides = [1, 1]} : vector<10x1645xf32> to vector<10x1641xf32>
    %48 = arith.maximumf %46, %47 : vector<10x1641xf32>
    %49 = vector.extract_strided_slice %48 {offsets = [0, 0], sizes = [10, 1625], strides = [1, 1]} : vector<10x1641xf32> to vector<10x1625xf32>
    %50 = vector.extract_strided_slice %48 {offsets = [0, 8], sizes = [10, 1625], strides = [1, 1]} : vector<10x1641xf32> to vector<10x1625xf32>
    %51 = vector.extract_strided_slice %48 {offsets = [0, 16], sizes = [10, 1625], strides = [1, 1]} : vector<10x1641xf32> to vector<10x1625xf32>
    %52 = tpu.concatenate %49, %50, %51 in 0 : vector<10x1625xf32>, vector<10x1625xf32>, vector<10x1625xf32> -> vector<30x1625xf32>
    %c0_24 = arith.constant 0 : index
    %c0_25 = arith.constant 0 : index
    %53 = vector.load %arg10[%c0_24, %c0_25] : memref<5x30xf32, #tpu.memory_space<vmem>>, vector<5x30xf32>
    %cst_26 = arith.constant dense<0.000000e+00> : vector<5x1625xf32>
    %54 = tpu.matmul %53, %52, %cst_26 {dimension_numbers = #tpu.dot_dimension_numbers<[1], [0], [0], [1], [0, 0, 1, 1], [], []>} : vector<5x30xf32>, vector<30x1625xf32>, vector<5x1625xf32> -> vector<5x1625xf32>
    %c0_27 = arith.constant 0 : index
    %c0_28 = arith.constant 0 : index
    %55 = vector.load %arg11[%c0_27, %c0_28] : memref<5x1xf32, #tpu.memory_space<vmem>>, vector<5x1xf32>
    %56 = vector.broadcast %55 : vector<5x1xf32> to vector<5x1625xf32>
    %57 = arith.addf %54, %56 : vector<5x1625xf32>
    %cst_29 = arith.constant 0.000000e+00 : f32
    %58 = vector.broadcast %cst_29 : f32 to vector<5x1625xf32>
    %59 = arith.maximumf %57, %58 : vector<5x1625xf32>
    %60 = vector.extract_strided_slice %59 {offsets = [0, 0], sizes = [5, 1617], strides = [1, 1]} : vector<5x1625xf32> to vector<5x1617xf32>
    %61 = vector.extract_strided_slice %59 {offsets = [0, 8], sizes = [5, 1617], strides = [1, 1]} : vector<5x1625xf32> to vector<5x1617xf32>
    %62 = arith.maximumf %60, %61 : vector<5x1617xf32>
    %63 = vector.extract_strided_slice %62 {offsets = [0, 0], sizes = [5, 1585], strides = [1, 1]} : vector<5x1617xf32> to vector<5x1585xf32>
    %64 = vector.extract_strided_slice %62 {offsets = [0, 16], sizes = [5, 1585], strides = [1, 1]} : vector<5x1617xf32> to vector<5x1585xf32>
    %65 = vector.extract_strided_slice %62 {offsets = [0, 32], sizes = [5, 1585], strides = [1, 1]} : vector<5x1617xf32> to vector<5x1585xf32>
    %66 = tpu.concatenate %63, %64, %65 in 0 : vector<5x1585xf32>, vector<5x1585xf32>, vector<5x1585xf32> -> vector<15x1585xf32>
    %c0_30 = arith.constant 0 : index
    %c0_31 = arith.constant 0 : index
    %67 = vector.load %arg12[%c0_30, %c0_31] : memref<1x15xf32, #tpu.memory_space<vmem>>, vector<1x15xf32>
    %cst_32 = arith.constant dense<0.000000e+00> : vector<1x1585xf32>
    %68 = tpu.matmul %67, %66, %cst_32 {dimension_numbers = #tpu.dot_dimension_numbers<[1], [0], [0], [1], [0, 0, 1, 1], [], []>} : vector<1x15xf32>, vector<15x1585xf32>, vector<1x1585xf32> -> vector<1x1585xf32>
    %c0_33 = arith.constant 0 : index
    %c0_34 = arith.constant 0 : index
    %69 = vector.load %arg13[%c0_33, %c0_34] : memref<1x1xf32, #tpu.memory_space<vmem>>, vector<1x1xf32>
    %70 = vector.broadcast %69 : vector<1x1xf32> to vector<1x1585xf32>
    %71 = arith.addf %68, %70 : vector<1x1585xf32>
    %c0_35 = arith.constant 0 : index
    %c0_36 = arith.constant 0 : index
    %72 = vector.load %arg14[%c0_35, %c0_36] : memref<1x1585xf32, #tpu.memory_space<vmem>>, vector<1x1585xf32>
    %73 = arith.mulf %72, %71 : vector<1x1585xf32>
    %cst_37 = arith.constant dense<0.000000e+00> : vector<1xf32>
    %74 = vector.multi_reduction <add>, %73, %cst_37 [1] : vector<1x1585xf32> to vector<1xf32>
    %75 = vector.shape_cast %74 : vector<1xf32> to vector<1x1xf32>
    %c0_38 = arith.constant 0 : index
    %c0_39 = arith.constant 0 : index
    %76 = vector.load %arg15[%c0_38, %c0_39] : memref<1x1xf32, #tpu.memory_space<vmem>>, vector<1x1xf32>
    %77 = arith.addf %75, %76 : vector<1x1xf32>
    %78 = arith.negf %77 : vector<1x1xf32>
    %79 = math.exp %78 : vector<1x1xf32>
    %cst_40 = arith.constant 1.000000e+00 : f32
    %80 = vector.broadcast %cst_40 : f32 to vector<1x1xf32>
    %81 = arith.addf %80, %79 : vector<1x1xf32>
    %82 = arith.divf %80, %81 : vector<1x1xf32>
    %83 = vector.shape_cast %82 : vector<1x1xf32> to vector<1x1x1xf32>
    %c0_41 = arith.constant 0 : index
    %c0_42 = arith.constant 0 : index
    %c0_43 = arith.constant 0 : index
    %84 = vector.load %arg16[%c0_41, %c0_42, %c0_43] : memref<1x1x1xf32, #tpu.memory_space<vmem>>, vector<1x1x1xf32>
    tpu.vector_store %arg16[%c0_41, %c0_42, %c0_43], %83 {strides = array<i32>} : memref<1x1x1xf32, #tpu.memory_space<vmem>>, vector<1x1x1xf32>,
    return
  }
  func.func @transform_0(%arg0: i32) -> (i32, i32, i32) {
    %c0_i32 = arith.constant 0 : i32
    %c0_i32_0 = arith.constant 0 : i32
    %c0_i32_1 = arith.constant 0 : i32
    return %arg0, %c0_i32, %c0_i32_0 : i32, i32, i32
  }
  func.func @transform_1(%arg0: i32) -> (i32, i32) {
    %c0_i32 = arith.constant 0 : i32
    %c0_i32_0 = arith.constant 0 : i32
    %c0_i32_1 = arith.constant 0 : i32
    return %c0_i32, %c0_i32_0 : i32, i32
  }
  func.func @transform_2(%arg0: i32) -> (i32, i32) {
    %c0_i32 = arith.constant 0 : i32
    %c0_i32_0 = arith.constant 0 : i32
    %c0_i32_1 = arith.constant 0 : i32
    return %c0_i32, %c0_i32_0 : i32, i32
  }
  func.func @transform_3(%arg0: i32) -> (i32, i32) {
    %c0_i32 = arith.constant 0 : i32
    %c0_i32_0 = arith.constant 0 : i32
    %c0_i32_1 = arith.constant 0 : i32
    return %c0_i32, %c0_i32_0 : i32, i32
  }
  func.func @transform_4(%arg0: i32) -> (i32, i32) {
    %c0_i32 = arith.constant 0 : i32
    %c0_i32_0 = arith.constant 0 : i32
    %c0_i32_1 = arith.constant 0 : i32
    return %c0_i32, %c0_i32_0 : i32, i32
  }
  func.func @transform_5(%arg0: i32) -> (i32, i32) {
    %c0_i32 = arith.constant 0 : i32
    %c0_i32_0 = arith.constant 0 : i32
    %c0_i32_1 = arith.constant 0 : i32
    return %c0_i32, %c0_i32_0 : i32, i32
  }
  func.func @transform_6(%arg0: i32) -> (i32, i32) {
    %c0_i32 = arith.constant 0 : i32
    %c0_i32_0 = arith.constant 0 : i32
    %c0_i32_1 = arith.constant 0 : i32
    return %c0_i32, %c0_i32_0 : i32, i32
  }
  func.func @transform_7(%arg0: i32) -> (i32, i32) {
    %c0_i32 = arith.constant 0 : i32
    %c0_i32_0 = arith.constant 0 : i32
    %c0_i32_1 = arith.constant 0 : i32
    return %c0_i32, %c0_i32_0 : i32, i32
  }
  func.func @transform_8(%arg0: i32) -> (i32, i32) {
    %c0_i32 = arith.constant 0 : i32
    %c0_i32_0 = arith.constant 0 : i32
    %c0_i32_1 = arith.constant 0 : i32
    return %c0_i32, %c0_i32_0 : i32, i32
  }
  func.func @transform_9(%arg0: i32) -> (i32, i32) {
    %c0_i32 = arith.constant 0 : i32
    %c0_i32_0 = arith.constant 0 : i32
    %c0_i32_1 = arith.constant 0 : i32
    return %c0_i32, %c0_i32_0 : i32, i32
  }
  func.func @transform_10(%arg0: i32) -> (i32, i32) {
    %c0_i32 = arith.constant 0 : i32
    %c0_i32_0 = arith.constant 0 : i32
    %c0_i32_1 = arith.constant 0 : i32
    return %c0_i32, %c0_i32_0 : i32, i32
  }
  func.func @transform_11(%arg0: i32) -> (i32, i32) {
    %c0_i32 = arith.constant 0 : i32
    %c0_i32_0 = arith.constant 0 : i32
    %c0_i32_1 = arith.constant 0 : i32
    return %c0_i32, %c0_i32_0 : i32, i32
  }
  func.func @transform_12(%arg0: i32) -> (i32, i32) {
    %c0_i32 = arith.constant 0 : i32
    %c0_i32_0 = arith.constant 0 : i32
    %c0_i32_1 = arith.constant 0 : i32
    return %c0_i32, %c0_i32_0 : i32, i32
  }
  func.func @transform_13(%arg0: i32) -> (i32, i32) {
    %c0_i32 = arith.constant 0 : i32
    %c0_i32_0 = arith.constant 0 : i32
    %c0_i32_1 = arith.constant 0 : i32
    return %c0_i32, %c0_i32_0 : i32, i32
  }
  func.func @transform_14(%arg0: i32) -> (i32, i32) {
    %c0_i32 = arith.constant 0 : i32
    %c0_i32_0 = arith.constant 0 : i32
    %c0_i32_1 = arith.constant 0 : i32
    return %c0_i32, %c0_i32_0 : i32, i32
  }
  func.func @transform_15(%arg0: i32) -> (i32, i32, i32) {
    %c0_i32 = arith.constant 0 : i32
    %c0_i32_0 = arith.constant 0 : i32
    %c0_i32_1 = arith.constant 0 : i32
    return %arg0, %c0_i32, %c0_i32_0 : i32, i32, i32
  }
}

</mosaic_0001>

<llo_original>
// kernel: tpu_custom_call.1
$region0: #{tpu_custom_call.1}
  #allocation0 [shape = 'u32[]', space=smem, size = 0x4, offset = 0x4, fixed_abs, tag = 'smem constant byte address 0x4 - core index']
  #allocation1 [shape = 'u32[144,128]{1,0:T(1,128)}', space=vmem, size = 0x12000, scoped, tag = 'internal scratch']
  #allocation2 [shape = 'f32[1,1]{1,0:T(1,128)S(1)}', space=vmem, size = 0x200, scoped, tag = 'scoped memory for tpu_custom_call.1']
  #allocation3 [shape = 'f32[1,1]{1,0:T(1,128)S(1)}', space=vmem, size = 0x200, scoped, tag = 'scoped memory for tpu_custom_call.1']
  %s0 = inlined_call_operand.hbm [shape: f32[2,4,1662], index: 0, kind: input, shape index: {}]
  %s1 = inlined_call_operand.vmem [shape: f32[5,4], index: 1, kind: input, shape index: {}]
  %s2 = inlined_call_operand.vmem [shape: f32[5,1], index: 2, kind: input, shape index: {}]
  %s3 = inlined_call_operand.vmem [shape: f32[10,15], index: 3, kind: input, shape index: {}]
  %s4 = inlined_call_operand.vmem [shape: f32[10,1], index: 4, kind: input, shape index: {}]
  %s5 = inlined_call_operand.vmem [shape: f32[20,30], index: 5, kind: input, shape index: {}]
  %s6 = inlined_call_operand.vmem [shape: f32[20,1], index: 6, kind: input, shape index: {}]
  %s7 = inlined_call_operand.vmem [shape: f32[10,60], index: 7, kind: input, shape index: {}]
  %s8 = inlined_call_operand.vmem [shape: f32[10,1], index: 8, kind: input, shape index: {}]
  %s9 = inlined_call_operand.vmem [shape: f32[5,30], index: 9, kind: input, shape index: {}]
  %s10 = inlined_call_operand.vmem [shape: f32[5,1], index: 10, kind: input, shape index: {}]
  %s11 = inlined_call_operand.vmem [shape: f32[1,15], index: 11, kind: input, shape index: {}]
  %s12 = inlined_call_operand.<no memory space> [shape: f32[1,1], index: 12, kind: input, shape index: {}]
  %s13 = inlined_call_operand.vmem [shape: f32[1,1585], index: 13, kind: input, shape index: {}]
  %s14 = inlined_call_operand.<no memory space> [shape: f32[1,1], index: 14, kind: input, shape index: {}]
  %s15 = inlined_call_operand.vmem [shape: f32[2,1,1], index: 15, kind: output, shape index: {}]
  %s16 = sld [smem:[#allocation0]]
  $region97: #{tpu_custom_call.1} parent=0
    _
  %s18 = ssub.s32 1, %s16
  %s19 = scalar_select 0, %s18, %s16
  %v20 = vstv %s12
  %21 = vst [vmem:[#allocation2] sm:$0x1] %v20
  %v22 = vstv %s14
  %23 = vst [vmem:[#allocation3] sm:$0x1] %v22
  $region1: #{tpu_custom_call.1} parent=0
    #allocation4 [shape = 'u8[53248]{0}', space=vmem, size = 0xd000, scoped, tag = 'input window, operand 0']
    #allocation5 [shape = 's32[2]{0}', space=sflag, size = 0x8, scoped, tag = 'scoped memory for tpu_custom_call.1']
    %24 = vsyncpa [#allocation5], 0
    %s25 = scalar_lea.sflag [#allocation5], 1
    %26 = vsyncpa %s25, 0
    loop: start=0, step=1, limit=4
    $region2: #{tpu_custom_call.1} parent=1 // loop_pre_header
      _
    $region3: #{tpu_custom_call.1} parent=1 // loop_header
      %s28 = sphi 0, %s32
      %p29 = scmp.ge.s32.totalorder %s28, 4
      %s38 = sphi 0, %s40
      %s41 = sphi 0, %s38
      %s42 = sphi 0, %s41
      %s58 = sphi 0, %s42
      %s62 = sphi 0, %s62
      %s64 = sphi 0, %s62
      %s65 = sphi 0, %s64
      %s79 = sphi 0, %s65
      %s83 = sphi 0, %s83
      %s85 = sphi 0, %s83
      %s86 = sphi 0, %s85
      %s100 = sphi 0, %s86
      %s104 = sphi 0, %s104
      %s106 = sphi 0, %s104
      %s107 = sphi 0, %s106
      %s121 = sphi 0, %s107
      %s125 = sphi 0, %s125
      %s127 = sphi 0, %s125
      %s128 = sphi 0, %s127
      %s142 = sphi 0, %s128
      %s146 = sphi 0, %s146
      %s148 = sphi 0, %s146
      %s149 = sphi 0, %s148
      %s163 = sphi 0, %s149
      %s167 = sphi 0, %s167
      %s169 = sphi 0, %s167
      %s170 = sphi 0, %s169
      %s184 = sphi 0, %s170
      %s188 = sphi 0, %s188
      %s190 = sphi 0, %s188
      %s191 = sphi 0, %s190
      %s205 = sphi 0, %s191
      %s209 = sphi 0, %s209
      %s211 = sphi 0, %s209
      %s212 = sphi 0, %s211
      %s226 = sphi 0, %s212
      %s230 = sphi 0, %s230
      %s232 = sphi 0, %s230
      %s233 = sphi 0, %s232
      %s247 = sphi 0, %s233
      %s251 = sphi 0, %s251
      %s253 = sphi 0, %s251
      %s254 = sphi 0, %s253
      %s268 = sphi 0, %s254
      %s272 = sphi 0, %s272
      %s274 = sphi 0, %s272
      %s275 = sphi 0, %s274
      %s289 = sphi 0, %s275
      %s293 = sphi 0, %s293
      %s295 = sphi 0, %s293
      %s296 = sphi 0, %s295
      %s310 = sphi 0, %s296
      %s314 = sphi 0, %s314
      %s316 = sphi 0, %s314
      %s317 = sphi 0, %s316
      %s331 = sphi 0, %s317
      %s335 = sphi 0, %s335
      %s337 = sphi 0, %s335
      %s338 = sphi 0, %s337
      %s352 = sphi 0, %s338
      %s358 = sphi 0, %s360
      %s361 = sphi 0, %s358
      %s362 = sphi 0, %s361
      %s378 = sphi 0, %s362
    $region4: #{tpu_custom_call.1} parent=1 // loop_header_branch
      %31 = sbr.rel (%p29) target = $region8
    $region5: #{tpu_custom_call.1} parent=1 // loop_body
      %s33 = ssub.s32 %s28, 1
      %s34 = ssub.s32 %s28, 2
      %s35 = sadd.s32 %s28, 1
      %s36 = ssub.s32 %s28, %s35
      %p37 = scmp.eq.s32.totalorder %s36, 0
      %s39 = sadd.s32 %s38, 1
      %s40 = scalar_select %p37, %s38, %s39
      %p43 = pneg %p37
      %p44 = scmp.eq.s32.totalorder %s28, 1
      %p45 = por %p43, %p44
      %p46 = scmp.ne.s32.totalorder %s38, %s41
      %p47 = scmp.eq.s32.totalorder %s28, 0
      %p48 = por %p46, %p47
      %p49 = scmp.ne.s32.totalorder %s38, %s41
      %p50 = scmp.eq.s32.totalorder %s33, 1
      %p51 = por %p49, %p50
      %p52 = scmp.ne.s32.totalorder %s41, %s42
      %p53 = scmp.eq.s32.totalorder %s33, 0
      %p54 = por %p52, %p53
      %p55 = scmp.ne.s32.totalorder %s41, %s42
      %p56 = scmp.eq.s32.totalorder %s34, 1
      %p57 = por %p55, %p56
      %p59 = scmp.ne.s32.totalorder %s42, %s58
      %p60 = scmp.eq.s32.totalorder %s34, 0
      %p61 = por %p59, %p60
      %s63 = sadd.s32 %s62, 1
      %p66 = scmp.eq.s32.totalorder %s28, 1
      %p67 = scmp.ne.s32.totalorder %s62, %s64
      %p68 = scmp.eq.s32.totalorder %s28, 0
      %p69 = por %p67, %p68
      %p70 = scmp.ne.s32.totalorder %s62, %s64
      %p71 = scmp.eq.s32.totalorder %s33, 1
      %p72 = por %p70, %p71
      %p73 = scmp.ne.s32.totalorder %s64, %s65
      %p74 = scmp.eq.s32.totalorder %s33, 0
      %p75 = por %p73, %p74
      %p76 = scmp.ne.s32.totalorder %s64, %s65
      %p77 = scmp.eq.s32.totalorder %s34, 1
      %p78 = por %p76, %p77
      %p80 = scmp.ne.s32.totalorder %s65, %s79
      %p81 = scmp.eq.s32.totalorder %s34, 0
      %p82 = por %p80, %p81
      %s84 = sadd.s32 %s83, 1
      %p87 = scmp.eq.s32.totalorder %s28, 1
      %p88 = scmp.ne.s32.totalorder %s83, %s85
      %p89 = scmp.eq.s32.totalorder %s28, 0
      %p90 = por %p88, %p89
      %p91 = scmp.ne.s32.totalorder %s83, %s85
      %p92 = scmp.eq.s32.totalorder %s33, 1
      %p93 = por %p91, %p92
      %p94 = scmp.ne.s32.totalorder %s85, %s86
      %p95 = scmp.eq.s32.totalorder %s33, 0
      %p96 = por %p94, %p95
      %p97 = scmp.ne.s32.totalorder %s85, %s86
      %p98 = scmp.eq.s32.totalorder %s34, 1
      %p99 = por %p97, %p98
      %p101 = scmp.ne.s32.totalorder %s86, %s100
      %p102 = scmp.eq.s32.totalorder %s34, 0
      %p103 = por %p101, %p102
      %s105 = sadd.s32 %s104, 1
      %p108 = scmp.eq.s32.totalorder %s28, 1
      %p109 = scmp.ne.s32.totalorder %s104, %s106
      %p110 = scmp.eq.s32.totalorder %s28, 0
      %p111 = por %p109, %p110
      %p112 = scmp.ne.s32.totalorder %s104, %s106
      %p113 = scmp.eq.s32.totalorder %s33, 1
      %p114 = por %p112, %p113
      %p115 = scmp.ne.s32.totalorder %s106, %s107
      %p116 = scmp.eq.s32.totalorder %s33, 0
      %p117 = por %p115, %p116
      %p118 = scmp.ne.s32.totalorder %s106, %s107
      %p119 = scmp.eq.s32.totalorder %s34, 1
      %p120 = por %p118, %p119
      %p122 = scmp.ne.s32.totalorder %s107, %s121
      %p123 = scmp.eq.s32.totalorder %s34, 0
      %p124 = por %p122, %p123
      %s126 = sadd.s32 %s125, 1
      %p129 = scmp.eq.s32.totalorder %s28, 1
      %p130 = scmp.ne.s32.totalorder %s125, %s127
      %p131 = scmp.eq.s32.totalorder %s28, 0
      %p132 = por %p130, %p131
      %p133 = scmp.ne.s32.totalorder %s125, %s127
      %p134 = scmp.eq.s32.totalorder %s33, 1
      %p135 = por %p133, %p134
      %p136 = scmp.ne.s32.totalorder %s127, %s128
      %p137 = scmp.eq.s32.totalorder %s33, 0
      %p138 = por %p136, %p137
      %p139 = scmp.ne.s32.totalorder %s127, %s128
      %p140 = scmp.eq.s32.totalorder %s34, 1
      %p141 = por %p139, %p140
      %p143 = scmp.ne.s32.totalorder %s128, %s142
      %p144 = scmp.eq.s32.totalorder %s34, 0
      %p145 = por %p143, %p144
      %s147 = sadd.s32 %s146, 1
      %p150 = scmp.eq.s32.totalorder %s28, 1
      %p151 = scmp.ne.s32.totalorder %s146, %s148
      %p152 = scmp.eq.s32.totalorder %s28, 0
      %p153 = por %p151, %p152
      %p154 = scmp.ne.s32.totalorder %s146, %s148
      %p155 = scmp.eq.s32.totalorder %s33, 1
      %p156 = por %p154, %p155
      %p157 = scmp.ne.s32.totalorder %s148, %s149
      %p158 = scmp.eq.s32.totalorder %s33, 0
      %p159 = por %p157, %p158
      %p160 = scmp.ne.s32.totalorder %s148, %s149
      %p161 = scmp.eq.s32.totalorder %s34, 1
      %p162 = por %p160, %p161
      %p164 = scmp.ne.s32.totalorder %s149, %s163
      %p165 = scmp.eq.s32.totalorder %s34, 0
      %p166 = por %p164, %p165
      %s168 = sadd.s32 %s167, 1
      %p171 = scmp.eq.s32.totalorder %s28, 1
      %p172 = scmp.ne.s32.totalorder %s167, %s169
      %p173 = scmp.eq.s32.totalorder %s28, 0
      %p174 = por %p172, %p173
      %p175 = scmp.ne.s32.totalorder %s167, %s169
      %p176 = scmp.eq.s32.totalorder %s33, 1
      %p177 = por %p175, %p176
      %p178 = scmp.ne.s32.totalorder %s169, %s170
      %p179 = scmp.eq.s32.totalorder %s33, 0
      %p180 = por %p178, %p179
      %p181 = scmp.ne.s32.totalorder %s169, %s170
      %p182 = scmp.eq.s32.totalorder %s34, 1
      %p183 = por %p181, %p182
      %p185 = scmp.ne.s32.totalorder %s170, %s184
      %p186 = scmp.eq.s32.totalorder %s34, 0
      %p187 = por %p185, %p186
      %s189 = sadd.s32 %s188, 1
      %p192 = scmp.eq.s32.totalorder %s28, 1
      %p193 = scmp.ne.s32.totalorder %s188, %s190
      %p194 = scmp.eq.s32.totalorder %s28, 0
      %p195 = por %p193, %p194
      %p196 = scmp.ne.s32.totalorder %s188, %s190
      %p197 = scmp.eq.s32.totalorder %s33, 1
      %p198 = por %p196, %p197
      %p199 = scmp.ne.s32.totalorder %s190, %s191
      %p200 = scmp.eq.s32.totalorder %s33, 0
      %p201 = por %p199, %p200
      %p202 = scmp.ne.s32.totalorder %s190, %s191
      %p203 = scmp.eq.s32.totalorder %s34, 1
      %p204 = por %p202, %p203
      %p206 = scmp.ne.s32.totalorder %s191, %s205
      %p207 = scmp.eq.s32.totalorder %s34, 0
      %p208 = por %p206, %p207
      %s210 = sadd.s32 %s209, 1
      %p213 = scmp.eq.s32.totalorder %s28, 1
      %p214 = scmp.ne.s32.totalorder %s209, %s211
      %p215 = scmp.eq.s32.totalorder %s28, 0
      %p216 = por %p214, %p215
      %p217 = scmp.ne.s32.totalorder %s209, %s211
      %p218 = scmp.eq.s32.totalorder %s33, 1
      %p219 = por %p217, %p218
      %p220 = scmp.ne.s32.totalorder %s211, %s212
      %p221 = scmp.eq.s32.totalorder %s33, 0
      %p222 = por %p220, %p221
      %p223 = scmp.ne.s32.totalorder %s211, %s212
      %p224 = scmp.eq.s32.totalorder %s34, 1
      %p225 = por %p223, %p224
      %p227 = scmp.ne.s32.totalorder %s212, %s226
      %p228 = scmp.eq.s32.totalorder %s34, 0
      %p229 = por %p227, %p228
      %s231 = sadd.s32 %s230, 1
      %p234 = scmp.eq.s32.totalorder %s28, 1
      %p235 = scmp.ne.s32.totalorder %s230, %s232
      %p236 = scmp.eq.s32.totalorder %s28, 0
      %p237 = por %p235, %p236
      %p238 = scmp.ne.s32.totalorder %s230, %s232
      %p239 = scmp.eq.s32.totalorder %s33, 1
      %p240 = por %p238, %p239
      %p241 = scmp.ne.s32.totalorder %s232, %s233
      %p242 = scmp.eq.s32.totalorder %s33, 0
      %p243 = por %p241, %p242
      %p244 = scmp.ne.s32.totalorder %s232, %s233
      %p245 = scmp.eq.s32.totalorder %s34, 1
      %p246 = por %p244, %p245
      %p248 = scmp.ne.s32.totalorder %s233, %s247
      %p249 = scmp.eq.s32.totalorder %s34, 0
      %p250 = por %p248, %p249
      %s252 = sadd.s32 %s251, 1
      %p255 = scmp.eq.s32.totalorder %s28, 1
      %p256 = scmp.ne.s32.totalorder %s251, %s253
      %p257 = scmp.eq.s32.totalorder %s28, 0
      %p258 = por %p256, %p257
      %p259 = scmp.ne.s32.totalorder %s251, %s253
      %p260 = scmp.eq.s32.totalorder %s33, 1
      %p261 = por %p259, %p260
      %p262 = scmp.ne.s32.totalorder %s253, %s254
      %p263 = scmp.eq.s32.totalorder %s33, 0
      %p264 = por %p262, %p263
      %p265 = scmp.ne.s32.totalorder %s253, %s254
      %p266 = scmp.eq.s32.totalorder %s34, 1
      %p267 = por %p265, %p266
      %p269 = scmp.ne.s32.totalorder %s254, %s268
      %p270 = scmp.eq.s32.totalorder %s34, 0
      %p271 = por %p269, %p270
      %s273 = sadd.s32 %s272, 1
      %p276 = scmp.eq.s32.totalorder %s28, 1
      %p277 = scmp.ne.s32.totalorder %s272, %s274
      %p278 = scmp.eq.s32.totalorder %s28, 0
      %p279 = por %p277, %p278
      %p280 = scmp.ne.s32.totalorder %s272, %s274
      %p281 = scmp.eq.s32.totalorder %s33, 1
      %p282 = por %p280, %p281
      %p283 = scmp.ne.s32.totalorder %s274, %s275
      %p284 = scmp.eq.s32.totalorder %s33, 0
      %p285 = por %p283, %p284
      %p286 = scmp.ne.s32.totalorder %s274, %s275
      %p287 = scmp.eq.s32.totalorder %s34, 1
      %p288 = por %p286, %p287
      %p290 = scmp.ne.s32.totalorder %s275, %s289
      %p291 = scmp.eq.s32.totalorder %s34, 0
      %p292 = por %p290, %p291
      %s294 = sadd.s32 %s293, 1
      %p297 = scmp.eq.s32.totalorder %s28, 1
      %p298 = scmp.ne.s32.totalorder %s293, %s295
      %p299 = scmp.eq.s32.totalorder %s28, 0
      %p300 = por %p298, %p299
      %p301 = scmp.ne.s32.totalorder %s293, %s295
      %p302 = scmp.eq.s32.totalorder %s33, 1
      %p303 = por %p301, %p302
      %p304 = scmp.ne.s32.totalorder %s295, %s296
      %p305 = scmp.eq.s32.totalorder %s33, 0
      %p306 = por %p304, %p305
      %p307 = scmp.ne.s32.totalorder %s295, %s296
      %p308 = scmp.eq.s32.totalorder %s34, 1
      %p309 = por %p307, %p308
      %p311 = scmp.ne.s32.totalorder %s296, %s310
      %p312 = scmp.eq.s32.totalorder %s34, 0
      %p313 = por %p311, %p312
      %s315 = sadd.s32 %s314, 1
      %p318 = scmp.eq.s32.totalorder %s28, 1
      %p319 = scmp.ne.s32.totalorder %s314, %s316
      %p320 = scmp.eq.s32.totalorder %s28, 0
      %p321 = por %p319, %p320
      %p322 = scmp.ne.s32.totalorder %s314, %s316
      %p323 = scmp.eq.s32.totalorder %s33, 1
      %p324 = por %p322, %p323
      %p325 = scmp.ne.s32.totalorder %s316, %s317
      %p326 = scmp.eq.s32.totalorder %s33, 0
      %p327 = por %p325, %p326
      %p328 = scmp.ne.s32.totalorder %s316, %s317
      %p329 = scmp.eq.s32.totalorder %s34, 1
      %p330 = por %p328, %p329
      %p332 = scmp.ne.s32.totalorder %s317, %s331
      %p333 = scmp.eq.s32.totalorder %s34, 0
      %p334 = por %p332, %p333
      %s336 = sadd.s32 %s335, 1
      %p339 = scmp.eq.s32.totalorder %s28, 1
      %p340 = scmp.ne.s32.totalorder %s335, %s337
      %p341 = scmp.eq.s32.totalorder %s28, 0
      %p342 = por %p340, %p341
      %p343 = scmp.ne.s32.totalorder %s335, %s337
      %p344 = scmp.eq.s32.totalorder %s33, 1
      %p345 = por %p343, %p344
      %p346 = scmp.ne.s32.totalorder %s337, %s338
      %p347 = scmp.eq.s32.totalorder %s33, 0
      %p348 = por %p346, %p347
      %p349 = scmp.ne.s32.totalorder %s337, %s338
      %p350 = scmp.eq.s32.totalorder %s34, 1
      %p351 = por %p349, %p350
      %p353 = scmp.ne.s32.totalorder %s338, %s352
      %p354 = scmp.eq.s32.totalorder %s34, 0
      %p355 = por %p353, %p354
      %s356 = ssub.s32 %s28, %s35
      %p357 = scmp.eq.s32.totalorder %s356, 0
      %s359 = sadd.s32 %s358, 1
      %s360 = scalar_select %p357, %s358, %s359
      %p363 = pneg %p357
      %p364 = scmp.eq.s32.totalorder %s28, 1
      %p365 = por %p363, %p364
      %p366 = scmp.ne.s32.totalorder %s358, %s361
      %p367 = scmp.eq.s32.totalorder %s28, 0
      %p368 = por %p366, %p367
      %p369 = scmp.ne.s32.totalorder %s358, %s361
      %p370 = scmp.eq.s32.totalorder %s33, 1
      %p371 = por %p369, %p370
      %p372 = scmp.ne.s32.totalorder %s361, %s362
      %p373 = scmp.eq.s32.totalorder %s33, 0
      %p374 = por %p372, %p373
      %p375 = scmp.ne.s32.totalorder %s361, %s362
      %p376 = scmp.eq.s32.totalorder %s34, 1
      %p377 = por %p375, %p376
      %p379 = scmp.ne.s32.totalorder %s362, %s378
      %p380 = scmp.eq.s32.totalorder %s34, 0
      %p381 = por %p379, %p380
      %p382 = scmp.le.s32.totalorder 1, %s28
      %p383 = scmp.lt.s32.totalorder %s28, 3
      %p384 = pnand %p382, %p383
      %p385 = pneg %p384
      // Predicated region
      $region9: #{tpu_custom_call.1} parent=5 // pred_check
        _
      $region10: #{tpu_custom_call.1} parent=5 // pred_check_branch
        %387 = sbr.rel (%p384) target = $region12
      $region11: #{tpu_custom_call.1} parent=5 // pred_region
        %s388 = ssub.s32 %s28, 1
        // Predicated region
        $region13: #{tpu_custom_call.1} parent=11 // pred_check
          %p389 = pneg %p75
        $region14: #{tpu_custom_call.1} parent=11 // pred_check_branch
          %391 = sbr.rel (%p389) target = $region16
        $region15: #{tpu_custom_call.1} parent=11 // pred_region
          _
        $region16: #{tpu_custom_call.1} parent=11 // pred_fallthru
          _
        // Predicated region
        $region17: #{tpu_custom_call.1} parent=11 // pred_check
          %p392 = pneg %p96
        $region18: #{tpu_custom_call.1} parent=11 // pred_check_branch
          %394 = sbr.rel (%p392) target = $region20
        $region19: #{tpu_custom_call.1} parent=11 // pred_region
          _
        $region20: #{tpu_custom_call.1} parent=11 // pred_fallthru
          _
        // Predicated region
        $region21: #{tpu_custom_call.1} parent=11 // pred_check
          %p395 = pneg %p117
        $region22: #{tpu_custom_call.1} parent=11 // pred_check_branch
          %397 = sbr.rel (%p395) target = $region24
        $region23: #{tpu_custom_call.1} parent=11 // pred_region
          _
        $region24: #{tpu_custom_call.1} parent=11 // pred_fallthru
          _
        // Predicated region
        $region25: #{tpu_custom_call.1} parent=11 // pred_check
          %p398 = pneg %p138
        $region26: #{tpu_custom_call.1} parent=11 // pred_check_branch
          %400 = sbr.rel (%p398) target = $region28
        $region27: #{tpu_custom_call.1} parent=11 // pred_region
          _
        $region28: #{tpu_custom_call.1} parent=11 // pred_fallthru
          _
        // Predicated region
        $region29: #{tpu_custom_call.1} parent=11 // pred_check
          %p401 = pneg %p159
        $region30: #{tpu_custom_call.1} parent=11 // pred_check_branch
          %403 = sbr.rel (%p401) target = $region32
        $region31: #{tpu_custom_call.1} parent=11 // pred_region
          _
        $region32: #{tpu_custom_call.1} parent=11 // pred_fallthru
          _
        // Predicated region
        $region33: #{tpu_custom_call.1} parent=11 // pred_check
          %p404 = pneg %p180
        $region34: #{tpu_custom_call.1} parent=11 // pred_check_branch
          %406 = sbr.rel (%p404) target = $region36
        $region35: #{tpu_custom_call.1} parent=11 // pred_region
          _
        $region36: #{tpu_custom_call.1} parent=11 // pred_fallthru
          _
        // Predicated region
        $region37: #{tpu_custom_call.1} parent=11 // pred_check
          %p407 = pneg %p201
        $region38: #{tpu_custom_call.1} parent=11 // pred_check_branch
          %409 = sbr.rel (%p407) target = $region40
        $region39: #{tpu_custom_call.1} parent=11 // pred_region
          _
        $region40: #{tpu_custom_call.1} parent=11 // pred_fallthru
          _
        // Predicated region
        $region41: #{tpu_custom_call.1} parent=11 // pred_check
          %p410 = pneg %p222
        $region42: #{tpu_custom_call.1} parent=11 // pred_check_branch
          %412 = sbr.rel (%p410) target = $region44
        $region43: #{tpu_custom_call.1} parent=11 // pred_region
          _
        $region44: #{tpu_custom_call.1} parent=11 // pred_fallthru
          _
        // Predicated region
        $region45: #{tpu_custom_call.1} parent=11 // pred_check
          %p413 = pneg %p243
        $region46: #{tpu_custom_call.1} parent=11 // pred_check_branch
          %415 = sbr.rel (%p413) target = $region48
        $region47: #{tpu_custom_call.1} parent=11 // pred_region
          _
        $region48: #{tpu_custom_call.1} parent=11 // pred_fallthru
          _
        // Predicated region
        $region49: #{tpu_custom_call.1} parent=11 // pred_check
          %p416 = pneg %p264
        $region50: #{tpu_custom_call.1} parent=11 // pred_check_branch
          %418 = sbr.rel (%p416) target = $region52
        $region51: #{tpu_custom_call.1} parent=11 // pred_region
          _
        $region52: #{tpu_custom_call.1} parent=11 // pred_fallthru
          _
        // Predicated region
        $region53: #{tpu_custom_call.1} parent=11 // pred_check
          %p419 = pneg %p285
        $region54: #{tpu_custom_call.1} parent=11 // pred_check_branch
          %421 = sbr.rel (%p419) target = $region56
        $region55: #{tpu_custom_call.1} parent=11 // pred_region
          _
        $region56: #{tpu_custom_call.1} parent=11 // pred_fallthru
          _
        // Predicated region
        $region57: #{tpu_custom_call.1} parent=11 // pred_check
          %p422 = pneg %p306
        $region58: #{tpu_custom_call.1} parent=11 // pred_check_branch
          %424 = sbr.rel (%p422) target = $region60
        $region59: #{tpu_custom_call.1} parent=11 // pred_region
          _
        $region60: #{tpu_custom_call.1} parent=11 // pred_fallthru
          _
        // Predicated region
        $region61: #{tpu_custom_call.1} parent=11 // pred_check
          %p425 = pneg %p327
        $region62: #{tpu_custom_call.1} parent=11 // pred_check_branch
          %427 = sbr.rel (%p425) target = $region64
        $region63: #{tpu_custom_call.1} parent=11 // pred_region
          _
        $region64: #{tpu_custom_call.1} parent=11 // pred_fallthru
          _
        // Predicated region
        $region65: #{tpu_custom_call.1} parent=11 // pred_check
          %p428 = pneg %p348
        $region66: #{tpu_custom_call.1} parent=11 // pred_check_branch
          %430 = sbr.rel (%p428) target = $region68
        $region67: #{tpu_custom_call.1} parent=11 // pred_region
          _
        $region68: #{tpu_custom_call.1} parent=11 // pred_fallthru
          _
      $region12: #{tpu_custom_call.1} parent=5 // pred_fallthru
        _
      %p431 = scmp.lt.s32.totalorder %s28, 2
      // Predicated region
      $region69: #{tpu_custom_call.1} parent=5 // pred_check
        %p432 = pneg %p431
      $region70: #{tpu_custom_call.1} parent=5 // pred_check_branch
        %434 = sbr.rel (%p432) target = $region72
      $region71: #{tpu_custom_call.1} parent=5 // pred_region
        // Predicated region
        $region73: #{tpu_custom_call.1} parent=71 // pred_check
          %p435 = pneg %p48
        $region74: #{tpu_custom_call.1} parent=71 // pred_check_branch
          %437 = sbr.rel (%p435) target = $region76
        $region75: #{tpu_custom_call.1} parent=71 // pred_region
          %s438 = sand.u32 %s38, 1
          %s439 = scalar_lea.sflag [#allocation5], %s438
          %s440 = sand.u32 %s38, 1
          %s441 = smul.addr %s440, 52
          %s442 = scalar_lea.vmem [#allocation4], %s441
          %s444 = ssub.s32 832, 832
          %445 = vsyncadd %s439, %s444
          %s446 = smul.addr %s28, 13
          %s447 = smul.addr %s446, 64
          %s448 = scalar_lea.hbm %s0, %s447
          %s450 = sshll.u32 %s442, 4
          %s451 = int_to_ptr.vmem [resolvable:$true] %s450
          %453 = dma.hbm_to_vmem [thread:$0]  %s448, 832, %s451, %s439
        $region76: #{tpu_custom_call.1} parent=71 // pred_fallthru
          _
      $region72: #{tpu_custom_call.1} parent=5 // pred_fallthru
        _
      %p454 = scmp.le.s32.totalorder 1, %s28
      %p455 = scmp.lt.s32.totalorder %s28, 3
      %p456 = pnand %p454, %p455
      %p457 = pneg %p456
      // Predicated region
      $region77: #{tpu_custom_call.1} parent=5 // pred_check
        _
      $region78: #{tpu_custom_call.1} parent=5 // pred_check_branch
        %459 = sbr.rel (%p456) target = $region80
      $region79: #{tpu_custom_call.1} parent=5 // pred_region
        %s460 = ssub.s32 %s28, 1
        %s461 = sand.u32 %s41, 1
        %s462 = scalar_lea.sflag [#allocation5], %s461
        %s463 = sand.u32 %s41, 1
        %s464 = smul.addr %s463, 52
        %s465 = scalar_lea.vmem [#allocation4], %s464
        // Predicated region
        $region81: #{tpu_custom_call.1} parent=79 // pred_check
          %p466 = pneg %p54
        $region82: #{tpu_custom_call.1} parent=79 // pred_check_branch
          %468 = sbr.rel (%p466) target = $region84
        $region83: #{tpu_custom_call.1} parent=79 // pred_region
          %469 = dma.done %s462, 832
        $region84: #{tpu_custom_call.1} parent=79 // pred_fallthru
          _
        %s470 = sand.u32 %s41, 1
        %s471 = scalar_lea.sflag [#allocation5], %s470
        %s472 = sand.u32 %s41, 1
        %s473 = smul.addr %s472, 52
        %s474 = scalar_lea.vmem [#allocation4], %s473
        %p475 = pneg %p54
        %p476 = pneg %p51
        %p477 = pneg %p75
        %p478 = pneg %p72
        %p479 = pneg %p96
        %p480 = pneg %p93
        %p481 = pneg %p117
        %p482 = pneg %p114
        %p483 = pneg %p138
        %p484 = pneg %p135
        %p485 = pneg %p159
        %p486 = pneg %p156
        %p487 = pneg %p180
        %p488 = pneg %p177
        %p489 = pneg %p201
        %p490 = pneg %p198
        %p491 = pneg %p222
        %p492 = pneg %p219
        %p493 = pneg %p243
        %p494 = pneg %p240
        %p495 = pneg %p264
        %p496 = pneg %p261
        %p497 = pneg %p285
        %p498 = pneg %p282
        %p499 = pneg %p306
        %p500 = pneg %p303
        %p501 = pneg %p327
        %p502 = pneg %p324
        %p503 = pneg %p348
        %p504 = pneg %p345
        %p505 = pneg %p374
        %p506 = pneg %p371
        %p507 = scmp.lt.s32.totalorder %s33, 1
        %s508 = scalar_select %p507, %s33, 1
        %s509 = scalar_lea.vmem %s15, %s508
        %p510 = scmp.lt.s32.totalorder %s33, 1
        %s511 = scalar_select %p510, %s33, 1
        %s512 = scalar_lea.vmem %s15, %s511
        %v513 = vld [vmem:[%s465] sm:$0xff]
        %v514 = vld [vmem:[%s465 + $0x8] sm:$0xff]
        %v515 = vld [vmem:[%s465 + $0x10] sm:$0xff]
        %v516 = vld [vmem:[%s465 + $0x18] sm:$0xff]
        %v517 = vld [vmem:[%s465 + $0x20] sm:$0xff]
        %v518 = vld [vmem:[%s465 + $0x28] sm:$0xff]
        %v519 = vld [vmem:[%s465 + $0x30] sm:$0xf]
        %v520 = vld [vmem:[%s1] sm:$0x1f]
        %v521 = vld [vmem:[%s2] sm:$0x1f]
        %523 = vset.pattern.permute.xlu0 0
        %524 = vperm.xlu0 %523, %v521
        %v525 = vpop.permute.xlu0 %524
        %v534 = vcombine.high %v513, %v513
        %v535 = vcombine.high %v514, %v514
        %v536 = vcombine.high %v515, %v515
        %v537 = vcombine.high %v516, %v516
        %v538 = vcombine.high %v517, %v517
        %v539 = vcombine.high %v518, %v518
        %vm540 = vcmask 31744
        %v542 = vsel %vm540, %v520, 0
        %vm544 = vcmask 1043456
        %v545 = vsel %vm544, %v513, 0
        %v547 = vsel %vm544, %v534, 0
        %v549 = vsel %vm544, %v514, 0
        %v551 = vsel %vm544, %v535, 0
        %v553 = vsel %vm544, %v515, 0
        %v555 = vsel %vm544, %v536, 0
        %v557 = vsel %vm544, %v516, 0
        %v559 = vsel %vm544, %v537, 0
        %v561 = vsel %vm544, %v517, 0
        %v563 = vsel %vm544, %v538, 0
        %v565 = vsel %vm544, %v518, 0
        %v567 = vsel %vm544, %v539, 0
        %v569 = vsel %vm544, %v519, 0
        %571 = vmatprep.subr.mxu0 %v547
        %572 = vmatpush1.msra.mxu0 %v545
        %573 = vmatprep.subr.mxu0 0.0
        %574 = vmatpush1.msra.mxu0 0.0
        %575 = vmatprep.subr.mxu0 0.0
        %576 = vmatpush1.msra.mxu0 0.0
        %577 = vmatprep.subr.mxu0 0.0
        %578 = vmatpush1.msra.mxu0 0.0
        %579 = vmatprep.subr.mxu0 0.0
        %580 = vmatpush1.msra.mxu0 0.0
        %581 = vmatprep.subr.mxu0 0.0
        %582 = vmatpush1.msra.mxu0 0.0
        %583 = vmatprep.subr.mxu0 0.0
        %584 = vmatpush1.msra.mxu0 0.0
        %585 = vmatprep.subr.mxu0 0.0
        %586 = vmatpush1.msra.mxu0 0.0
        %587 = vmatprep.subr.mxu0 0.0
        %588 = vmatpush1.msra.mxu0 0.0
        %589 = vmatprep.subr.mxu0 0.0
        %590 = vmatpush1.msra.mxu0 0.0
        %591 = vmatprep.subr.mxu0 0.0
        %592 = vmatpush1.msra.mxu0 0.0
        %593 = vmatprep.subr.mxu0 0.0
        %594 = vmatpush1.msra.mxu0 0.0
        %595 = vmatprep.subr.mxu0 0.0
        %596 = vmatpush1.msra.mxu0 0.0
        %597 = vmatprep.subr.mxu0 0.0
        %598 = vmatpush1.msra.mxu0 0.0
        %599 = vmatprep.subr.mxu0 0.0
        %600 = vmatpush1.msra.mxu0 0.0
        %601 = vmatprep.subr.mxu0 0.0
        %602 = vmatpush1.msra.mxu0 0.0
        %603 = vmatprep.subr.mxu0 0.0
        %604 = vmatpush1.msra.mxu0 0.0
        %605 = vmatprep.subr.mxu0 0.0
        %606 = vmatpush1.msra.mxu0 0.0
        %607 = vmatprep.subr.mxu0 0.0
        %608 = vmatpush1.msra.mxu0 0.0
        %609 = vmatprep.subr.mxu0 0.0
        %610 = vmatpush1.msra.mxu0 0.0
        %611 = vmatprep.subr.mxu0 0.0
        %612 = vmatpush1.msra.mxu0 0.0
        %613 = vmatprep.subr.mxu0 0.0
        %614 = vmatpush1.msra.mxu0 0.0
        %615 = vmatprep.subr.mxu0 0.0
        %616 = vmatpush1.msra.mxu0 0.0
        %617 = vmatprep.subr.mxu0 0.0
        %618 = vmatpush1.msra.mxu0 0.0
        %619 = vmatprep.subr.mxu0 0.0
        %620 = vmatpush1.msra.mxu0 0.0
        %621 = vmatprep.subr.mxu0 0.0
        %622 = vmatpush1.msra.mxu0 0.0
        %623 = vmatprep.subr.mxu0 0.0
        %624 = vmatpush1.msra.mxu0 0.0
        %625 = vmatprep.subr.mxu0 0.0
        %626 = vmatpush1.msra.mxu0 0.0
        %627 = vmatprep.subr.mxu0 0.0
        %628 = vmatpush1.msra.mxu0 0.0
        %629 = vmatprep.subr.mxu0 0.0
        %630 = vmatpush1.msra.mxu0 0.0
        %631 = vmatprep.subr.mxu0 0.0
        %632 = vmatpush1.msra.mxu0 0.0
        %633 = vmatprep.subr.mxu0 0.0
        %634 = vmatpush1.msra.mxu0 0.0
        %635 = vmatprep.mubr.f32.mxu0 0.0
        %636 = vmatmul.mubr.f32.gmra.mrb[0].mxu0 %v542
        %v637 = vpop.f32.mrb[0].mxu0
        %v638 = vadd.f32 %v525, %v637
        %v639 = vpop.f32.mrb[0].mxu0
        %v640 = vadd.f32 %v525, %v639
        %641 = vdwg.mxu0
        %642 = vmatprep.subr.mxu0 %v551
        %643 = vmatpush1.msra.mxu0 %v549
        %644 = vmatprep.subr.mxu0 0.0
        %645 = vmatpush1.msra.mxu0 0.0
        %646 = vmatprep.subr.mxu0 0.0
        %647 = vmatpush1.msra.mxu0 0.0
        %648 = vmatprep.subr.mxu0 0.0
        %649 = vmatpush1.msra.mxu0 0.0
        %650 = vmatprep.subr.mxu0 0.0
        %651 = vmatpush1.msra.mxu0 0.0
        %652 = vmatprep.subr.mxu0 0.0
        %653 = vmatpush1.msra.mxu0 0.0
        %654 = vmatprep.subr.mxu0 0.0
        %655 = vmatpush1.msra.mxu0 0.0
        %656 = vmatprep.subr.mxu0 0.0
        %657 = vmatpush1.msra.mxu0 0.0
        %658 = vmatprep.subr.mxu0 0.0
        %659 = vmatpush1.msra.mxu0 0.0
        %660 = vmatprep.subr.mxu0 0.0
        %661 = vmatpush1.msra.mxu0 0.0
        %662 = vmatprep.subr.mxu0 0.0
        %663 = vmatpush1.msra.mxu0 0.0
        %664 = vmatprep.subr.mxu0 0.0
        %665 = vmatpush1.msra.mxu0 0.0
        %666 = vmatprep.subr.mxu0 0.0
        %667 = vmatpush1.msra.mxu0 0.0
        %668 = vmatprep.subr.mxu0 0.0
        %669 = vmatpush1.msra.mxu0 0.0
        %670 = vmatprep.subr.mxu0 0.0
        %671 = vmatpush1.msra.mxu0 0.0
        %672 = vmatprep.subr.mxu0 0.0
        %673 = vmatpush1.msra.mxu0 0.0
        %674 = vmatprep.subr.mxu0 0.0
        %675 = vmatpush1.msra.mxu0 0.0
        %676 = vmatprep.subr.mxu0 0.0
        %677 = vmatpush1.msra.mxu0 0.0
        %678 = vmatprep.subr.mxu0 0.0
        %679 = vmatpush1.msra.mxu0 0.0
        %680 = vmatprep.subr.mxu0 0.0
        %681 = vmatpush1.msra.mxu0 0.0
        %682 = vmatprep.subr.mxu0 0.0
        %683 = vmatpush1.msra.mxu0 0.0
        %684 = vmatprep.subr.mxu0 0.0
        %685 = vmatpush1.msra.mxu0 0.0
        %686 = vmatprep.subr.mxu0 0.0
        %687 = vmatpush1.msra.mxu0 0.0
        %688 = vmatprep.subr.mxu0 0.0
        %689 = vmatpush1.msra.mxu0 0.0
        %690 = vmatprep.subr.mxu0 0.0
        %691 = vmatpush1.msra.mxu0 0.0
        %692 = vmatprep.subr.mxu0 0.0
        %693 = vmatpush1.msra.mxu0 0.0
        %694 = vmatprep.subr.mxu0 0.0
        %695 = vmatpush1.msra.mxu0 0.0
        %696 = vmatprep.subr.mxu0 0.0
        %697 = vmatpush1.msra.mxu0 0.0
        %698 = vmatprep.subr.mxu0 0.0
        %699 = vmatpush1.msra.mxu0 0.0
        %700 = vmatprep.subr.mxu0 0.0
        %701 = vmatpush1.msra.mxu0 0.0
        %702 = vmatprep.subr.mxu0 0.0
        %703 = vmatpush1.msra.mxu0 0.0
        %704 = vmatprep.subr.mxu0 0.0
        %705 = vmatpush1.msra.mxu0 0.0
        %706 = vmatprep.mubr.f32.mxu0 0.0
        %707 = vmatmul.mubr.f32.gmra.mrb[0].mxu0 %v542
        %v708 = vpop.f32.mrb[0].mxu0
        %v709 = vadd.f32 %v525, %v708
        %v710 = vpop.f32.mrb[0].mxu0
        %v711 = vadd.f32 %v525, %v710
        %712 = vdwg.mxu0
        %713 = vmatprep.subr.mxu0 %v555
        %714 = vmatpush1.msra.mxu0 %v553
        %715 = vmatprep.subr.mxu0 0.0
        %716 = vmatpush1.msra.mxu0 0.0
        %717 = vmatprep.subr.mxu0 0.0
        %718 = vmatpush1.msra.mxu0 0.0
        %719 = vmatprep.subr.mxu0 0.0
        %720 = vmatpush1.msra.mxu0 0.0
        %721 = vmatprep.subr.mxu0 0.0
        %722 = vmatpush1.msra.mxu0 0.0
        %723 = vmatprep.subr.mxu0 0.0
        %724 = vmatpush1.msra.mxu0 0.0
        %725 = vmatprep.subr.mxu0 0.0
        %726 = vmatpush1.msra.mxu0 0.0
        %727 = vmatprep.subr.mxu0 0.0
        %728 = vmatpush1.msra.mxu0 0.0
        %729 = vmatprep.subr.mxu0 0.0
        %730 = vmatpush1.msra.mxu0 0.0
        %731 = vmatprep.subr.mxu0 0.0
        %732 = vmatpush1.msra.mxu0 0.0
        %733 = vmatprep.subr.mxu0 0.0
        %734 = vmatpush1.msra.mxu0 0.0
        %735 = vmatprep.subr.mxu0 0.0
        %736 = vmatpush1.msra.mxu0 0.0
        %737 = vmatprep.subr.mxu0 0.0
        %738 = vmatpush1.msra.mxu0 0.0
        %739 = vmatprep.subr.mxu0 0.0
        %740 = vmatpush1.msra.mxu0 0.0
        %741 = vmatprep.subr.mxu0 0.0
        %742 = vmatpush1.msra.mxu0 0.0
        %743 = vmatprep.subr.mxu0 0.0
        %744 = vmatpush1.msra.mxu0 0.0
        %745 = vmatprep.subr.mxu0 0.0
        %746 = vmatpush1.msra.mxu0 0.0
        %747 = vmatprep.subr.mxu0 0.0
        %748 = vmatpush1.msra.mxu0 0.0
        %749 = vmatprep.subr.mxu0 0.0
        %750 = vmatpush1.msra.mxu0 0.0
        %751 = vmatprep.subr.mxu0 0.0
        %752 = vmatpush1.msra.mxu0 0.0
        %753 = vmatprep.subr.mxu0 0.0
        %754 = vmatpush1.msra.mxu0 0.0
        %755 = vmatprep.subr.mxu0 0.0
        %756 = vmatpush1.msra.mxu0 0.0
        %757 = vmatprep.subr.mxu0 0.0
        %758 = vmatpush1.msra.mxu0 0.0
        %759 = vmatprep.subr.mxu0 0.0
        %760 = vmatpush1.msra.mxu0 0.0
        %761 = vmatprep.subr.mxu0 0.0
        %762 = vmatpush1.msra.mxu0 0.0
        %763 = vmatprep.subr.mxu0 0.0
        %764 = vmatpush1.msra.mxu0 0.0
        %765 = vmatprep.subr.mxu0 0.0
        %766 = vmatpush1.msra.mxu0 0.0
        %767 = vmatprep.subr.mxu0 0.0
        %768 = vmatpush1.msra.mxu0 0.0
        %769 = vmatprep.subr.mxu0 0.0
        %770 = vmatpush1.msra.mxu0 0.0
        %771 = vmatprep.subr.mxu0 0.0
        %772 = vmatpush1.msra.mxu0 0.0
        %773 = vmatprep.subr.mxu0 0.0
        %774 = vmatpush1.msra.mxu0 0.0
        %775 = vmatprep.subr.mxu0 0.0
        %776 = vmatpush1.msra.mxu0 0.0
        %777 = vmatprep.mubr.f32.mxu0 0.0
        %778 = vmatmul.mubr.f32.gmra.mrb[0].mxu0 %v542
        %v779 = vpop.f32.mrb[0].mxu0
        %v780 = vadd.f32 %v525, %v779
        %v781 = vpop.f32.mrb[0].mxu0
        %v782 = vadd.f32 %v525, %v781
        %783 = vdwg.mxu0
        %784 = vmatprep.subr.mxu0 %v559
        %785 = vmatpush1.msra.mxu0 %v557
        %786 = vmatprep.subr.mxu0 0.0
        %787 = vmatpush1.msra.mxu0 0.0
        %788 = vmatprep.subr.mxu0 0.0
        %789 = vmatpush1.msra.mxu0 0.0
        %790 = vmatprep.subr.mxu0 0.0
        %791 = vmatpush1.msra.mxu0 0.0
        %792 = vmatprep.subr.mxu0 0.0
        %793 = vmatpush1.msra.mxu0 0.0
        %794 = vmatprep.subr.mxu0 0.0
        %795 = vmatpush1.msra.mxu0 0.0
        %796 = vmatprep.subr.mxu0 0.0
        %797 = vmatpush1.msra.mxu0 0.0
        %798 = vmatprep.subr.mxu0 0.0
        %799 = vmatpush1.msra.mxu0 0.0
        %800 = vmatprep.subr.mxu0 0.0
        %801 = vmatpush1.msra.mxu0 0.0
        %802 = vmatprep.subr.mxu0 0.0
        %803 = vmatpush1.msra.mxu0 0.0
        %804 = vmatprep.subr.mxu0 0.0
        %805 = vmatpush1.msra.mxu0 0.0
        %806 = vmatprep.subr.mxu0 0.0
        %807 = vmatpush1.msra.mxu0 0.0
        %808 = vmatprep.subr.mxu0 0.0
        %809 = vmatpush1.msra.mxu0 0.0
        %810 = vmatprep.subr.mxu0 0.0
        %811 = vmatpush1.msra.mxu0 0.0
        %812 = vmatprep.subr.mxu0 0.0
        %813 = vmatpush1.msra.mxu0 0.0
        %814 = vmatprep.subr.mxu0 0.0
        %815 = vmatpush1.msra.mxu0 0.0
        %816 = vmatprep.subr.mxu0 0.0
        %817 = vmatpush1.msra.mxu0 0.0
        %818 = vmatprep.subr.mxu0 0.0
        %819 = vmatpush1.msra.mxu0 0.0
        %820 = vmatprep.subr.mxu0 0.0
        %821 = vmatpush1.msra.mxu0 0.0
        %822 = vmatprep.subr.mxu0 0.0
        %823 = vmatpush1.msra.mxu0 0.0
        %824 = vmatprep.subr.mxu0 0.0
        %825 = vmatpush1.msra.mxu0 0.0
        %826 = vmatprep.subr.mxu0 0.0
        %827 = vmatpush1.msra.mxu0 0.0
        %828 = vmatprep.subr.mxu0 0.0
        %829 = vmatpush1.msra.mxu0 0.0
        %830 = vmatprep.subr.mxu0 0.0
        %831 = vmatpush1.msra.mxu0 0.0
        %832 = vmatprep.subr.mxu0 0.0
        %833 = vmatpush1.msra.mxu0 0.0
        %834 = vmatprep.subr.mxu0 0.0
        %835 = vmatpush1.msra.mxu0 0.0
        %836 = vmatprep.subr.mxu0 0.0
        %837 = vmatpush1.msra.mxu0 0.0
        %838 = vmatprep.subr.mxu0 0.0
        %839 = vmatpush1.msra.mxu0 0.0
        %840 = vmatprep.subr.mxu0 0.0
        %841 = vmatpush1.msra.mxu0 0.0
        %842 = vmatprep.subr.mxu0 0.0
        %843 = vmatpush1.msra.mxu0 0.0
        %844 = vmatprep.subr.mxu0 0.0
        %845 = vmatpush1.msra.mxu0 0.0
        %846 = vmatprep.subr.mxu0 0.0
        %847 = vmatpush1.msra.mxu0 0.0
        %848 = vmatprep.mubr.f32.mxu0 0.0
        %849 = vmatmul.mubr.f32.gmra.mrb[0].mxu0 %v542
        %v850 = vpop.f32.mrb[0].mxu0
        %v851 = vadd.f32 %v525, %v850
        %v852 = vpop.f32.mrb[0].mxu0
        %v853 = vadd.f32 %v525, %v852
        %854 = vdwg.mxu0
        %855 = vmatprep.subr.mxu0 %v563
        %856 = vmatpush1.msra.mxu0 %v561
        %857 = vmatprep.subr.mxu0 0.0
        %858 = vmatpush1.msra.mxu0 0.0
        %859 = vmatprep.subr.mxu0 0.0
        %860 = vmatpush1.msra.mxu0 0.0
        %861 = vmatprep.subr.mxu0 0.0
        %862 = vmatpush1.msra.mxu0 0.0
        %863 = vmatprep.subr.mxu0 0.0
        %864 = vmatpush1.msra.mxu0 0.0
        %865 = vmatprep.subr.mxu0 0.0
        %866 = vmatpush1.msra.mxu0 0.0
        %867 = vmatprep.subr.mxu0 0.0
        %868 = vmatpush1.msra.mxu0 0.0
        %869 = vmatprep.subr.mxu0 0.0
        %870 = vmatpush1.msra.mxu0 0.0
        %871 = vmatprep.subr.mxu0 0.0
        %872 = vmatpush1.msra.mxu0 0.0
        %873 = vmatprep.subr.mxu0 0.0
        %874 = vmatpush1.msra.mxu0 0.0
        %875 = vmatprep.subr.mxu0 0.0
        %876 = vmatpush1.msra.mxu0 0.0
        %877 = vmatprep.subr.mxu0 0.0
        %878 = vmatpush1.msra.mxu0 0.0
        %879 = vmatprep.subr.mxu0 0.0
        %880 = vmatpush1.msra.mxu0 0.0
        %881 = vmatprep.subr.mxu0 0.0
        %882 = vmatpush1.msra.mxu0 0.0
        %883 = vmatprep.subr.mxu0 0.0
        %884 = vmatpush1.msra.mxu0 0.0
        %885 = vmatprep.subr.mxu0 0.0
        %886 = vmatpush1.msra.mxu0 0.0
        %887 = vmatprep.subr.mxu0 0.0
        %888 = vmatpush1.msra.mxu0 0.0
        %889 = vmatprep.subr.mxu0 0.0
        %890 = vmatpush1.msra.mxu0 0.0
        %891 = vmatprep.subr.mxu0 0.0
        %892 = vmatpush1.msra.mxu0 0.0
        %893 = vmatprep.subr.mxu0 0.0
        %894 = vmatpush1.msra.mxu0 0.0
        %895 = vmatprep.subr.mxu0 0.0
        %896 = vmatpush1.msra.mxu0 0.0
        %897 = vmatprep.subr.mxu0 0.0
        %898 = vmatpush1.msra.mxu0 0.0
        %899 = vmatprep.subr.mxu0 0.0
        %900 = vmatpush1.msra.mxu0 0.0
        %901 = vmatprep.subr.mxu0 0.0
        %902 = vmatpush1.msra.mxu0 0.0
        %903 = vmatprep.subr.mxu0 0.0
        %904 = vmatpush1.msra.mxu0 0.0
        %905 = vmatprep.subr.mxu0 0.0
        %906 = vmatpush1.msra.mxu0 0.0
        %907 = vmatprep.subr.mxu0 0.0
        %908 = vmatpush1.msra.mxu0 0.0
        %909 = vmatprep.subr.mxu0 0.0
        %910 = vmatpush1.msra.mxu0 0.0
        %911 = vmatprep.subr.mxu0 0.0
        %912 = vmatpush1.msra.mxu0 0.0
        %913 = vmatprep.subr.mxu0 0.0
        %914 = vmatpush1.msra.mxu0 0.0
        %915 = vmatprep.subr.mxu0 0.0
        %916 = vmatpush1.msra.mxu0 0.0
        %917 = vmatprep.subr.mxu0 0.0
        %918 = vmatpush1.msra.mxu0 0.0
        %919 = vmatprep.mubr.f32.mxu0 0.0
        %920 = vmatmul.mubr.f32.gmra.mrb[0].mxu0 %v542
        %v921 = vpop.f32.mrb[0].mxu0
        %v922 = vadd.f32 %v525, %v921
        %v923 = vpop.f32.mrb[0].mxu0
        %v924 = vadd.f32 %v525, %v923
        %925 = vdwg.mxu0
        %926 = vmatprep.subr.mxu0 %v567
        %927 = vmatpush1.msra.mxu0 %v565
        %928 = vmatprep.subr.mxu0 0.0
        %929 = vmatpush1.msra.mxu0 0.0
        %930 = vmatprep.subr.mxu0 0.0
        %931 = vmatpush1.msra.mxu0 0.0
        %932 = vmatprep.subr.mxu0 0.0
        %933 = vmatpush1.msra.mxu0 0.0
        %934 = vmatprep.subr.mxu0 0.0
        %935 = vmatpush1.msra.mxu0 0.0
        %936 = vmatprep.subr.mxu0 0.0
        %937 = vmatpush1.msra.mxu0 0.0
        %938 = vmatprep.subr.mxu0 0.0
        %939 = vmatpush1.msra.mxu0 0.0
        %940 = vmatprep.subr.mxu0 0.0
        %941 = vmatpush1.msra.mxu0 0.0
        %942 = vmatprep.subr.mxu0 0.0
        %943 = vmatpush1.msra.mxu0 0.0
        %944 = vmatprep.subr.mxu0 0.0
        %945 = vmatpush1.msra.mxu0 0.0
        %946 = vmatprep.subr.mxu0 0.0
        %947 = vmatpush1.msra.mxu0 0.0
        %948 = vmatprep.subr.mxu0 0.0
        %949 = vmatpush1.msra.mxu0 0.0
        %950 = vmatprep.subr.mxu0 0.0
        %951 = vmatpush1.msra.mxu0 0.0
        %952 = vmatprep.subr.mxu0 0.0
        %953 = vmatpush1.msra.mxu0 0.0
        %954 = vmatprep.subr.mxu0 0.0
        %955 = vmatpush1.msra.mxu0 0.0
        %956 = vmatprep.subr.mxu0 0.0
        %957 = vmatpush1.msra.mxu0 0.0
        %958 = vmatprep.subr.mxu0 0.0
        %959 = vmatpush1.msra.mxu0 0.0
        %960 = vmatprep.subr.mxu0 0.0
        %961 = vmatpush1.msra.mxu0 0.0
        %962 = vmatprep.subr.mxu0 0.0
        %963 = vmatpush1.msra.mxu0 0.0
        %964 = vmatprep.subr.mxu0 0.0
        %965 = vmatpush1.msra.mxu0 0.0
        %966 = vmatprep.subr.mxu0 0.0
        %967 = vmatpush1.msra.mxu0 0.0
        %968 = vmatprep.subr.mxu0 0.0
        %969 = vmatpush1.msra.mxu0 0.0
        %970 = vmatprep.subr.mxu0 0.0
        %971 = vmatpush1.msra.mxu0 0.0
        %972 = vmatprep.subr.mxu0 0.0
        %973 = vmatpush1.msra.mxu0 0.0
        %974 = vmatprep.subr.mxu0 0.0
        %975 = vmatpush1.msra.mxu0 0.0
        %976 = vmatprep.subr.mxu0 0.0
        %977 = vmatpush1.msra.mxu0 0.0
        %978 = vmatprep.subr.mxu0 0.0
        %979 = vmatpush1.msra.mxu0 0.0
        %980 = vmatprep.subr.mxu0 0.0
        %981 = vmatpush1.msra.mxu0 0.0
        %982 = vmatprep.subr.mxu0 0.0
        %983 = vmatpush1.msra.mxu0 0.0
        %984 = vmatprep.subr.mxu0 0.0
        %985 = vmatpush1.msra.mxu0 0.0
        %986 = vmatprep.subr.mxu0 0.0
        %987 = vmatpush1.msra.mxu0 0.0
        %988 = vmatprep.subr.mxu0 0.0
        %989 = vmatpush1.msra.mxu0 0.0
        %990 = vmatprep.mubr.f32.mxu0 0.0
        %991 = vmatmul.mubr.f32.gmra.mrb[0].mxu0 %v542
        %v992 = vpop.f32.mrb[0].mxu0
        %v993 = vadd.f32 %v525, %v992
        %v994 = vpop.f32.mrb[0].mxu0
        %v995 = vadd.f32 %v525, %v994
        %996 = vdwg.mxu0
        %997 = vmatprep.subr.mxu0 0.0
        %998 = vmatpush1.msra.mxu0 %v569
        %999 = vmatprep.subr.mxu0 0.0
        %1000 = vmatpush1.msra.mxu0 0.0
        %1001 = vmatprep.subr.mxu0 0.0
        %1002 = vmatpush1.msra.mxu0 0.0
        %1003 = vmatprep.subr.mxu0 0.0
        %1004 = vmatpush1.msra.mxu0 0.0
        %1005 = vmatprep.subr.mxu0 0.0
        %1006 = vmatpush1.msra.mxu0 0.0
        %1007 = vmatprep.subr.mxu0 0.0
        %1008 = vmatpush1.msra.mxu0 0.0
        %1009 = vmatprep.subr.mxu0 0.0
        %1010 = vmatpush1.msra.mxu0 0.0
        %1011 = vmatprep.subr.mxu0 0.0
        %1012 = vmatpush1.msra.mxu0 0.0
        %1013 = vmatprep.subr.mxu0 0.0
        %1014 = vmatpush1.msra.mxu0 0.0
        %1015 = vmatprep.subr.mxu0 0.0
        %1016 = vmatpush1.msra.mxu0 0.0
        %1017 = vmatprep.subr.mxu0 0.0
        %1018 = vmatpush1.msra.mxu0 0.0
        %1019 = vmatprep.subr.mxu0 0.0
        %1020 = vmatpush1.msra.mxu0 0.0
        %1021 = vmatprep.subr.mxu0 0.0
        %1022 = vmatpush1.msra.mxu0 0.0
        %1023 = vmatprep.subr.mxu0 0.0
        %1024 = vmatpush1.msra.mxu0 0.0
        %1025 = vmatprep.subr.mxu0 0.0
        %1026 = vmatpush1.msra.mxu0 0.0
        %1027 = vmatprep.subr.mxu0 0.0
        %1028 = vmatpush1.msra.mxu0 0.0
        %1029 = vmatprep.subr.mxu0 0.0
        %1030 = vmatpush1.msra.mxu0 0.0
        %1031 = vmatprep.subr.mxu0 0.0
        %1032 = vmatpush1.msra.mxu0 0.0
        %1033 = vmatprep.subr.mxu0 0.0
        %1034 = vmatpush1.msra.mxu0 0.0
        %1035 = vmatprep.subr.mxu0 0.0
        %1036 = vmatpush1.msra.mxu0 0.0
        %1037 = vmatprep.subr.mxu0 0.0
        %1038 = vmatpush1.msra.mxu0 0.0
        %1039 = vmatprep.subr.mxu0 0.0
        %1040 = vmatpush1.msra.mxu0 0.0
        %1041 = vmatprep.subr.mxu0 0.0
        %1042 = vmatpush1.msra.mxu0 0.0
        %1043 = vmatprep.subr.mxu0 0.0
        %1044 = vmatpush1.msra.mxu0 0.0
        %1045 = vmatprep.subr.mxu0 0.0
        %1046 = vmatpush1.msra.mxu0 0.0
        %1047 = vmatprep.subr.mxu0 0.0
        %1048 = vmatpush1.msra.mxu0 0.0
        %1049 = vmatprep.subr.mxu0 0.0
        %1050 = vmatpush1.msra.mxu0 0.0
        %1051 = vmatprep.subr.mxu0 0.0
        %1052 = vmatpush1.msra.mxu0 0.0
        %1053 = vmatprep.subr.mxu0 0.0
        %1054 = vmatpush1.msra.mxu0 0.0
        %1055 = vmatprep.subr.mxu0 0.0
        %1056 = vmatpush1.msra.mxu0 0.0
        %1057 = vmatprep.subr.mxu0 0.0
        %1058 = vmatpush1.msra.mxu0 0.0
        %1059 = vmatprep.subr.mxu0 0.0
        %1060 = vmatpush1.msra.mxu0 0.0
        %1061 = vmatprep.mubr.f32.mxu0 0.0
        %1062 = vmatmul.mubr.f32.gmra.mrb[0].mxu0 %v542
        %v1063 = vpop.f32.mrb[0].mxu0
        %v1064 = vadd.f32 %v525, %v1063
        %v1065 = vpop.f32.mrb[0].mxu0
        %1066 = vdwg.mxu0
        %v1080 = vrot.slane %v638, 3
        %v1081 = vrot.slane %v640, 3
        %v1082 = vrot.slane %v709, 3
        %v1083 = vrot.slane %v711, 3
        %v1084 = vrot.slane %v780, 3
        %v1085 = vrot.slane %v782, 3
        %v1086 = vrot.slane %v851, 3
        %v1087 = vrot.slane %v853, 3
        %v1088 = vrot.slane %v922, 3
        %v1089 = vrot.slane %v924, 3
        %v1090 = vrot.slane %v993, 3
        %v1091 = vrot.slane %v995, 3
        %v1092 = vrot.slane %v1064, 3
        %1093 = vrot.lane.b32.xlu0 %v1080, 127
        %v1094 = vpop.permute.xlu0 %1093
        %1095 = vrot.lane.b32.xlu0 %v1081, 127
        %v1096 = vpop.permute.xlu0 %1095
        %1097 = vrot.lane.b32.xlu0 %v1082, 127
        %v1098 = vpop.permute.xlu0 %1097
        %1099 = vrot.lane.b32.xlu0 %v1083, 127
        %v1100 = vpop.permute.xlu0 %1099
        %1101 = vrot.lane.b32.xlu0 %v1084, 127
        %v1102 = vpop.permute.xlu0 %1101
        %1103 = vrot.lane.b32.xlu0 %v1085, 127
        %v1104 = vpop.permute.xlu0 %1103
        %1105 = vrot.lane.b32.xlu0 %v1086, 127
        %v1106 = vpop.permute.xlu0 %1105
        %1107 = vrot.lane.b32.xlu0 %v1087, 127
        %v1108 = vpop.permute.xlu0 %1107
        %1109 = vrot.lane.b32.xlu0 %v1088, 127
        %v1110 = vpop.permute.xlu0 %1109
        %1111 = vrot.lane.b32.xlu0 %v1089, 127
        %v1112 = vpop.permute.xlu0 %1111
        %1113 = vrot.lane.b32.xlu0 %v1090, 127
        %v1114 = vpop.permute.xlu0 %1113
        %1115 = vrot.lane.b32.xlu0 %v1091, 127
        %v1116 = vpop.permute.xlu0 %1115
        %1117 = vrot.lane.b32.xlu0 %v1092, 127
        %v1118 = vpop.permute.xlu0 %1117
        %vm1119 = vcmask 1039360
        %v1120 = vsel %vm1119, %v1094, %v1096
        %v1121 = vsel %vm1119, %v1096, %v1098
        %v1122 = vsel %vm1119, %v1098, %v1100
        %v1123 = vsel %vm1119, %v1100, %v1102
        %v1124 = vsel %vm1119, %v1102, %v1104
        %v1125 = vsel %vm1119, %v1104, %v1106
        %v1126 = vsel %vm1119, %v1106, %v1108
        %v1127 = vsel %vm1119, %v1108, %v1110
        %v1128 = vsel %vm1119, %v1110, %v1112
        %v1129 = vsel %vm1119, %v1112, %v1114
        %v1130 = vsel %vm1119, %v1114, %v1116
        %v1131 = vsel %vm1119, %v1116, %v1118
        %v1145 = vrot.slane %v638, 6
        %v1146 = vrot.slane %v640, 6
        %v1147 = vrot.slane %v709, 6
        %v1148 = vrot.slane %v711, 6
        %v1149 = vrot.slane %v780, 6
        %v1150 = vrot.slane %v782, 6
        %v1151 = vrot.slane %v851, 6
        %v1152 = vrot.slane %v853, 6
        %v1153 = vrot.slane %v922, 6
        %v1154 = vrot.slane %v924, 6
        %v1155 = vrot.slane %v993, 6
        %v1156 = vrot.slane %v995, 6
        %v1157 = vrot.slane %v1064, 6
        %1158 = vrot.lane.b32.xlu0 %v1145, 126
        %v1159 = vpop.permute.xlu0 %1158
        %1160 = vrot.lane.b32.xlu0 %v1146, 126
        %v1161 = vpop.permute.xlu0 %1160
        %1162 = vrot.lane.b32.xlu0 %v1147, 126
        %v1163 = vpop.permute.xlu0 %1162
        %1164 = vrot.lane.b32.xlu0 %v1148, 126
        %v1165 = vpop.permute.xlu0 %1164
        %1166 = vrot.lane.b32.xlu0 %v1149, 126
        %v1167 = vpop.permute.xlu0 %1166
        %1168 = vrot.lane.b32.xlu0 %v1150, 126
        %v1169 = vpop.permute.xlu0 %1168
        %1170 = vrot.lane.b32.xlu0 %v1151, 126
        %v1171 = vpop.permute.xlu0 %1170
        %1172 = vrot.lane.b32.xlu0 %v1152, 126
        %v1173 = vpop.permute.xlu0 %1172
        %1174 = vrot.lane.b32.xlu0 %v1153, 126
        %v1175 = vpop.permute.xlu0 %1174
        %1176 = vrot.lane.b32.xlu0 %v1154, 126
        %v1177 = vpop.permute.xlu0 %1176
        %1178 = vrot.lane.b32.xlu0 %v1155, 126
        %v1179 = vpop.permute.xlu0 %1178
        %1180 = vrot.lane.b32.xlu0 %v1156, 126
        %v1181 = vpop.permute.xlu0 %1180
        %1182 = vrot.lane.b32.xlu0 %v1157, 126
        %v1183 = vpop.permute.xlu0 %1182
        %vm1184 = vcmask 1031168
        %v1185 = vsel %vm1184, %v1159, %v1161
        %v1186 = vsel %vm1184, %v1161, %v1163
        %v1187 = vsel %vm1184, %v1163, %v1165
        %v1188 = vsel %vm1184, %v1165, %v1167
        %v1189 = vsel %vm1184, %v1167, %v1169
        %v1190 = vsel %vm1184, %v1169, %v1171
        %v1191 = vsel %vm1184, %v1171, %v1173
        %v1192 = vsel %vm1184, %v1173, %v1175
        %v1193 = vsel %vm1184, %v1175, %v1177
        %v1194 = vsel %vm1184, %v1177, %v1179
        %v1195 = vsel %vm1184, %v1179, %v1181
        %v1196 = vsel %vm1184, %v1181, %v1183
        %vm1210 = vcmask 1044480
        %v1211 = vsel %vm1210, %v638, %v1120
        %v1212 = vsel %vm1210, %v640, %v1121
        %v1213 = vsel %vm1210, %v709, %v1122
        %v1214 = vsel %vm1210, %v711, %v1123
        %v1215 = vsel %vm1210, %v780, %v1124
        %v1216 = vsel %vm1210, %v782, %v1125
        %v1217 = vsel %vm1210, %v851, %v1126
        %v1218 = vsel %vm1210, %v853, %v1127
        %v1219 = vsel %vm1210, %v922, %v1128
        %v1220 = vsel %vm1210, %v924, %v1129
        %v1221 = vsel %vm1210, %v993, %v1130
        %v1222 = vsel %vm1210, %v995, %v1131
        %v1223 = vsel %vm1210, %v1064, %v1118
        %vm1224 = vcmask 1041408
        %v1225 = vsel %vm1224, %v1120, %v1185
        %v1226 = vsel %vm1224, %v1121, %v1186
        %v1227 = vsel %vm1224, %v1122, %v1187
        %v1228 = vsel %vm1224, %v1123, %v1188
        %v1229 = vsel %vm1224, %v1124, %v1189
        %v1230 = vsel %vm1224, %v1125, %v1190
        %v1231 = vsel %vm1224, %v1126, %v1191
        %v1232 = vsel %vm1224, %v1127, %v1192
        %v1233 = vsel %vm1224, %v1128, %v1193
        %v1234 = vsel %vm1224, %v1129, %v1194
        %v1235 = vsel %vm1224, %v1130, %v1195
        %v1236 = vsel %vm1224, %v1131, %v1196
        %v1237 = vsel %vm1224, %v1118, %v1183
        %v1238 = vld [vmem:[%s3] sm:$0xff]
        %v1239 = vld [vmem:[%s3 + $0x8] sm:$0x3]
        %v1240 = vld [vmem:[%s4] sm:$0xff]
        %v1241 = vld [vmem:[%s4 + $0x8] sm:$0x3]
        %1243 = vset.pattern.permute.xlu0 0
        %1244 = vperm.xlu0 %1243, %v1240
        %v1245 = vpop.permute.xlu0 %1244
        %1248 = vset.pattern.permute.xlu0 0
        %1249 = vperm.xlu0 %1248, %v1241
        %v1250 = vpop.permute.xlu0 %1249
        %vm1252 = vcmask 121856
        %v1254 = vsel %vm1252, %v1238, 0
        %v1257 = vsel %vm1252, %v1239, 0
        %vm1259 = vcmask 1046528
        %v1261 = vsel %vm1259, %v1225, 0
        %v1264 = vsel %vm1259, %v1226, 0
        %v1267 = vsel %vm1259, %v1227, 0
        %v1270 = vsel %vm1259, %v1228, 0
        %v1273 = vsel %vm1259, %v1229, 0
        %v1276 = vsel %vm1259, %v1230, 0
        %v1279 = vsel %vm1259, %v1231, 0
        %v1282 = vsel %vm1259, %v1232, 0
        %v1285 = vsel %vm1259, %v1233, 0
        %v1288 = vsel %vm1259, %v1234, 0
        %v1291 = vsel %vm1259, %v1235, 0
        %v1294 = vsel %vm1259, %v1236, 0
        %v1297 = vsel %vm1259, %v1237, 0
        %1299 = vmatprep.subr.mxu0 %v1212
        %1300 = vmatpush1.msra.mxu0 %v1211
        %1301 = vmatprep.subr.mxu0 %v1264
        %1302 = vmatpush1.msra.mxu0 %v1261
        %1303 = vmatprep.subr.mxu0 0.0
        %1304 = vmatpush1.msra.mxu0 0.0
        %1305 = vmatprep.subr.mxu0 0.0
        %1306 = vmatpush1.msra.mxu0 0.0
        %1307 = vmatprep.subr.mxu0 0.0
        %1308 = vmatpush1.msra.mxu0 0.0
        %1309 = vmatprep.subr.mxu0 0.0
        %1310 = vmatpush1.msra.mxu0 0.0
        %1311 = vmatprep.subr.mxu0 0.0
        %1312 = vmatpush1.msra.mxu0 0.0
        %1313 = vmatprep.subr.mxu0 0.0
        %1314 = vmatpush1.msra.mxu0 0.0
        %1315 = vmatprep.subr.mxu0 0.0
        %1316 = vmatpush1.msra.mxu0 0.0
        %1317 = vmatprep.subr.mxu0 0.0
        %1318 = vmatpush1.msra.mxu0 0.0
        %1319 = vmatprep.subr.mxu0 0.0
        %1320 = vmatpush1.msra.mxu0 0.0
        %1321 = vmatprep.subr.mxu0 0.0
        %1322 = vmatpush1.msra.mxu0 0.0
        %1323 = vmatprep.subr.mxu0 0.0
        %1324 = vmatpush1.msra.mxu0 0.0
        %1325 = vmatprep.subr.mxu0 0.0
        %1326 = vmatpush1.msra.mxu0 0.0
        %1327 = vmatprep.subr.mxu0 0.0
        %1328 = vmatpush1.msra.mxu0 0.0
        %1329 = vmatprep.subr.mxu0 0.0
        %1330 = vmatpush1.msra.mxu0 0.0
        %1331 = vmatprep.subr.mxu0 0.0
        %1332 = vmatpush1.msra.mxu0 0.0
        %1333 = vmatprep.subr.mxu0 0.0
        %1334 = vmatpush1.msra.mxu0 0.0
        %1335 = vmatprep.subr.mxu0 0.0
        %1336 = vmatpush1.msra.mxu0 0.0
        %1337 = vmatprep.subr.mxu0 0.0
        %1338 = vmatpush1.msra.mxu0 0.0
        %1339 = vmatprep.subr.mxu0 0.0
        %1340 = vmatpush1.msra.mxu0 0.0
        %1341 = vmatprep.subr.mxu0 0.0
        %1342 = vmatpush1.msra.mxu0 0.0
        %1343 = vmatprep.subr.mxu0 0.0
        %1344 = vmatpush1.msra.mxu0 0.0
        %1345 = vmatprep.subr.mxu0 0.0
        %1346 = vmatpush1.msra.mxu0 0.0
        %1347 = vmatprep.subr.mxu0 0.0
        %1348 = vmatpush1.msra.mxu0 0.0
        %1349 = vmatprep.subr.mxu0 0.0
        %1350 = vmatpush1.msra.mxu0 0.0
        %1351 = vmatprep.subr.mxu0 0.0
        %1352 = vmatpush1.msra.mxu0 0.0
        %1353 = vmatprep.subr.mxu0 0.0
        %1354 = vmatpush1.msra.mxu0 0.0
        %1355 = vmatprep.subr.mxu0 0.0
        %1356 = vmatpush1.msra.mxu0 0.0
        %1357 = vmatprep.subr.mxu0 0.0
        %1358 = vmatpush1.msra.mxu0 0.0
        %1359 = vmatprep.subr.mxu0 0.0
        %1360 = vmatpush1.msra.mxu0 0.0
        %1361 = vmatprep.subr.mxu0 0.0
        %1362 = vmatpush1.msra.mxu0 0.0
        %1363 = vmatprep.mubr.f32.mxu0 0.0
        %1364 = vmatmul.mubr.f32.gmra.mrb[0].mxu0 %v1254
        %v1365 = vpop.f32.mrb[0].mxu0
        %v1366 = vadd.f32 %v1245, %v1365
        %v1367 = vpop.f32.mrb[0].mxu0
        %v1368 = vadd.f32 %v1245, %v1367
        %1369 = vmatprep.mubr.f32.mxu0 0.0
        %1370 = vmatmul.mubr.f32.gmra.mrb[0].mxu0 %v1257
        %v1371 = vpop.f32.mrb[0].mxu0
        %v1372 = vadd.f32 %v1250, %v1371
        %v1373 = vpop.f32.mrb[0].mxu0
        %v1374 = vadd.f32 %v1250, %v1373
        %1375 = vdwg.mxu0
        %1376 = vmatprep.subr.mxu0 %v1214
        %1377 = vmatpush1.msra.mxu0 %v1213
        %1378 = vmatprep.subr.mxu0 %v1270
        %1379 = vmatpush1.msra.mxu0 %v1267
        %1380 = vmatprep.subr.mxu0 0.0
        %1381 = vmatpush1.msra.mxu0 0.0
        %1382 = vmatprep.subr.mxu0 0.0
        %1383 = vmatpush1.msra.mxu0 0.0
        %1384 = vmatprep.subr.mxu0 0.0
        %1385 = vmatpush1.msra.mxu0 0.0
        %1386 = vmatprep.subr.mxu0 0.0
        %1387 = vmatpush1.msra.mxu0 0.0
        %1388 = vmatprep.subr.mxu0 0.0
        %1389 = vmatpush1.msra.mxu0 0.0
        %1390 = vmatprep.subr.mxu0 0.0
        %1391 = vmatpush1.msra.mxu0 0.0
        %1392 = vmatprep.subr.mxu0 0.0
        %1393 = vmatpush1.msra.mxu0 0.0
        %1394 = vmatprep.subr.mxu0 0.0
        %1395 = vmatpush1.msra.mxu0 0.0
        %1396 = vmatprep.subr.mxu0 0.0
        %1397 = vmatpush1.msra.mxu0 0.0
        %1398 = vmatprep.subr.mxu0 0.0
        %1399 = vmatpush1.msra.mxu0 0.0
        %1400 = vmatprep.subr.mxu0 0.0
        %1401 = vmatpush1.msra.mxu0 0.0
        %1402 = vmatprep.subr.mxu0 0.0
        %1403 = vmatpush1.msra.mxu0 0.0
        %1404 = vmatprep.subr.mxu0 0.0
        %1405 = vmatpush1.msra.mxu0 0.0
        %1406 = vmatprep.subr.mxu0 0.0
        %1407 = vmatpush1.msra.mxu0 0.0
        %1408 = vmatprep.subr.mxu0 0.0
        %1409 = vmatpush1.msra.mxu0 0.0
        %1410 = vmatprep.subr.mxu0 0.0
        %1411 = vmatpush1.msra.mxu0 0.0
        %1412 = vmatprep.subr.mxu0 0.0
        %1413 = vmatpush1.msra.mxu0 0.0
        %1414 = vmatprep.subr.mxu0 0.0
        %1415 = vmatpush1.msra.mxu0 0.0
        %1416 = vmatprep.subr.mxu0 0.0
        %1417 = vmatpush1.msra.mxu0 0.0
        %1418 = vmatprep.subr.mxu0 0.0
        %1419 = vmatpush1.msra.mxu0 0.0
        %1420 = vmatprep.subr.mxu0 0.0
        %1421 = vmatpush1.msra.mxu0 0.0
        %1422 = vmatprep.subr.mxu0 0.0
        %1423 = vmatpush1.msra.mxu0 0.0
        %1424 = vmatprep.subr.mxu0 0.0
        %1425 = vmatpush1.msra.mxu0 0.0
        %1426 = vmatprep.subr.mxu0 0.0
        %1427 = vmatpush1.msra.mxu0 0.0
        %1428 = vmatprep.subr.mxu0 0.0
        %1429 = vmatpush1.msra.mxu0 0.0
        %1430 = vmatprep.subr.mxu0 0.0
        %1431 = vmatpush1.msra.mxu0 0.0
        %1432 = vmatprep.subr.mxu0 0.0
        %1433 = vmatpush1.msra.mxu0 0.0
        %1434 = vmatprep.subr.mxu0 0.0
        %1435 = vmatpush1.msra.mxu0 0.0
        %1436 = vmatprep.subr.mxu0 0.0
        %1437 = vmatpush1.msra.mxu0 0.0
        %1438 = vmatprep.subr.mxu0 0.0
        %1439 = vmatpush1.msra.mxu0 0.0
        %1440 = vmatprep.mubr.f32.mxu0 0.0
        %1441 = vmatmul.mubr.f32.gmra.mrb[0].mxu0 %v1254
        %v1442 = vpop.f32.mrb[0].mxu0
        %v1443 = vadd.f32 %v1245, %v1442
        %v1444 = vpop.f32.mrb[0].mxu0
        %v1445 = vadd.f32 %v1245, %v1444
        %1446 = vmatprep.mubr.f32.mxu0 0.0
        %1447 = vmatmul.mubr.f32.gmra.mrb[0].mxu0 %v1257
        %v1448 = vpop.f32.mrb[0].mxu0
        %v1449 = vadd.f32 %v1250, %v1448
        %v1450 = vpop.f32.mrb[0].mxu0
        %v1451 = vadd.f32 %v1250, %v1450
        %1452 = vdwg.mxu0
        %1453 = vmatprep.subr.mxu0 %v1216
        %1454 = vmatpush1.msra.mxu0 %v1215
        %1455 = vmatprep.subr.mxu0 %v1276
        %1456 = vmatpush1.msra.mxu0 %v1273
        %1457 = vmatprep.subr.mxu0 0.0
        %1458 = vmatpush1.msra.mxu0 0.0
        %1459 = vmatprep.subr.mxu0 0.0
        %1460 = vmatpush1.msra.mxu0 0.0
        %1461 = vmatprep.subr.mxu0 0.0
        %1462 = vmatpush1.msra.mxu0 0.0
        %1463 = vmatprep.subr.mxu0 0.0
        %1464 = vmatpush1.msra.mxu0 0.0
        %1465 = vmatprep.subr.mxu0 0.0
        %1466 = vmatpush1.msra.mxu0 0.0
        %1467 = vmatprep.subr.mxu0 0.0
        %1468 = vmatpush1.msra.mxu0 0.0
        %1469 = vmatprep.subr.mxu0 0.0
        %1470 = vmatpush1.msra.mxu0 0.0
        %1471 = vmatprep.subr.mxu0 0.0
        %1472 = vmatpush1.msra.mxu0 0.0
        %1473 = vmatprep.subr.mxu0 0.0
        %1474 = vmatpush1.msra.mxu0 0.0
        %1475 = vmatprep.subr.mxu0 0.0
        %1476 = vmatpush1.msra.mxu0 0.0
        %1477 = vmatprep.subr.mxu0 0.0
        %1478 = vmatpush1.msra.mxu0 0.0
        %1479 = vmatprep.subr.mxu0 0.0
        %1480 = vmatpush1.msra.mxu0 0.0
        %1481 = vmatprep.subr.mxu0 0.0
        %1482 = vmatpush1.msra.mxu0 0.0
        %1483 = vmatprep.subr.mxu0 0.0
        %1484 = vmatpush1.msra.mxu0 0.0
        %1485 = vmatprep.subr.mxu0 0.0
        %1486 = vmatpush1.msra.mxu0 0.0
        %1487 = vmatprep.subr.mxu0 0.0
        %1488 = vmatpush1.msra.mxu0 0.0
        %1489 = vmatprep.subr.mxu0 0.0
        %1490 = vmatpush1.msra.mxu0 0.0
        %1491 = vmatprep.subr.mxu0 0.0
        %1492 = vmatpush1.msra.mxu0 0.0
        %1493 = vmatprep.subr.mxu0 0.0
        %1494 = vmatpush1.msra.mxu0 0.0
        %1495 = vmatprep.subr.mxu0 0.0
        %1496 = vmatpush1.msra.mxu0 0.0
        %1497 = vmatprep.subr.mxu0 0.0
        %1498 = vmatpush1.msra.mxu0 0.0
        %1499 = vmatprep.subr.mxu0 0.0
        %1500 = vmatpush1.msra.mxu0 0.0
        %1501 = vmatprep.subr.mxu0 0.0
        %1502 = vmatpush1.msra.mxu0 0.0
        %1503 = vmatprep.subr.mxu0 0.0
        %1504 = vmatpush1.msra.mxu0 0.0
        %1505 = vmatprep.subr.mxu0 0.0
        %1506 = vmatpush1.msra.mxu0 0.0
        %1507 = vmatprep.subr.mxu0 0.0
        %1508 = vmatpush1.msra.mxu0 0.0
        %1509 = vmatprep.subr.mxu0 0.0
        %1510 = vmatpush1.msra.mxu0 0.0
        %1511 = vmatprep.subr.mxu0 0.0
        %1512 = vmatpush1.msra.mxu0 0.0
        %1513 = vmatprep.subr.mxu0 0.0
        %1514 = vmatpush1.msra.mxu0 0.0
        %1515 = vmatprep.subr.mxu0 0.0
        %1516 = vmatpush1.msra.mxu0 0.0
        %1517 = vmatprep.mubr.f32.mxu0 0.0
        %1518 = vmatmul.mubr.f32.gmra.mrb[0].mxu0 %v1254
        %v1519 = vpop.f32.mrb[0].mxu0
        %v1520 = vadd.f32 %v1245, %v1519
        %v1521 = vpop.f32.mrb[0].mxu0
        %v1522 = vadd.f32 %v1245, %v1521
        %1523 = vmatprep.mubr.f32.mxu0 0.0
        %1524 = vmatmul.mubr.f32.gmra.mrb[0].mxu0 %v1257
        %v1525 = vpop.f32.mrb[0].mxu0
        %v1526 = vadd.f32 %v1250, %v1525
        %v1527 = vpop.f32.mrb[0].mxu0
        %v1528 = vadd.f32 %v1250, %v1527
        %1529 = vdwg.mxu0
        %1530 = vmatprep.subr.mxu0 %v1218
        %1531 = vmatpush1.msra.mxu0 %v1217
        %1532 = vmatprep.subr.mxu0 %v1282
        %1533 = vmatpush1.msra.mxu0 %v1279
        %1534 = vmatprep.subr.mxu0 0.0
        %1535 = vmatpush1.msra.mxu0 0.0
        %1536 = vmatprep.subr.mxu0 0.0
        %1537 = vmatpush1.msra.mxu0 0.0
        %1538 = vmatprep.subr.mxu0 0.0
        %1539 = vmatpush1.msra.mxu0 0.0
        %1540 = vmatprep.subr.mxu0 0.0
        %1541 = vmatpush1.msra.mxu0 0.0
        %1542 = vmatprep.subr.mxu0 0.0
        %1543 = vmatpush1.msra.mxu0 0.0
        %1544 = vmatprep.subr.mxu0 0.0
        %1545 = vmatpush1.msra.mxu0 0.0
        %1546 = vmatprep.subr.mxu0 0.0
        %1547 = vmatpush1.msra.mxu0 0.0
        %1548 = vmatprep.subr.mxu0 0.0
        %1549 = vmatpush1.msra.mxu0 0.0
        %1550 = vmatprep.subr.mxu0 0.0
        %1551 = vmatpush1.msra.mxu0 0.0
        %1552 = vmatprep.subr.mxu0 0.0
        %1553 = vmatpush1.msra.mxu0 0.0
        %1554 = vmatprep.subr.mxu0 0.0
        %1555 = vmatpush1.msra.mxu0 0.0
        %1556 = vmatprep.subr.mxu0 0.0
        %1557 = vmatpush1.msra.mxu0 0.0
        %1558 = vmatprep.subr.mxu0 0.0
        %1559 = vmatpush1.msra.mxu0 0.0
        %1560 = vmatprep.subr.mxu0 0.0
        %1561 = vmatpush1.msra.mxu0 0.0
        %1562 = vmatprep.subr.mxu0 0.0
        %1563 = vmatpush1.msra.mxu0 0.0
        %1564 = vmatprep.subr.mxu0 0.0
        %1565 = vmatpush1.msra.mxu0 0.0
        %1566 = vmatprep.subr.mxu0 0.0
        %1567 = vmatpush1.msra.mxu0 0.0
        %1568 = vmatprep.subr.mxu0 0.0
        %1569 = vmatpush1.msra.mxu0 0.0
        %1570 = vmatprep.subr.mxu0 0.0
        %1571 = vmatpush1.msra.mxu0 0.0
        %1572 = vmatprep.subr.mxu0 0.0
        %1573 = vmatpush1.msra.mxu0 0.0
        %1574 = vmatprep.subr.mxu0 0.0
        %1575 = vmatpush1.msra.mxu0 0.0
        %1576 = vmatprep.subr.mxu0 0.0
        %1577 = vmatpush1.msra.mxu0 0.0
        %1578 = vmatprep.subr.mxu0 0.0
        %1579 = vmatpush1.msra.mxu0 0.0
        %1580 = vmatprep.subr.mxu0 0.0
        %1581 = vmatpush1.msra.mxu0 0.0
        %1582 = vmatprep.subr.mxu0 0.0
        %1583 = vmatpush1.msra.mxu0 0.0
        %1584 = vmatprep.subr.mxu0 0.0
        %1585 = vmatpush1.msra.mxu0 0.0
        %1586 = vmatprep.subr.mxu0 0.0
        %1587 = vmatpush1.msra.mxu0 0.0
        %1588 = vmatprep.subr.mxu0 0.0
        %1589 = vmatpush1.msra.mxu0 0.0
        %1590 = vmatprep.subr.mxu0 0.0
        %1591 = vmatpush1.msra.mxu0 0.0
        %1592 = vmatprep.subr.mxu0 0.0
        %1593 = vmatpush1.msra.mxu0 0.0
        %1594 = vmatprep.mubr.f32.mxu0 0.0
        %1595 = vmatmul.mubr.f32.gmra.mrb[0].mxu0 %v1254
        %v1596 = vpop.f32.mrb[0].mxu0
        %v1597 = vadd.f32 %v1245, %v1596
        %v1598 = vpop.f32.mrb[0].mxu0
        %v1599 = vadd.f32 %v1245, %v1598
        %1600 = vmatprep.mubr.f32.mxu0 0.0
        %1601 = vmatmul.mubr.f32.gmra.mrb[0].mxu0 %v1257
        %v1602 = vpop.f32.mrb[0].mxu0
        %v1603 = vadd.f32 %v1250, %v1602
        %v1604 = vpop.f32.mrb[0].mxu0
        %v1605 = vadd.f32 %v1250, %v1604
        %1606 = vdwg.mxu0
        %1607 = vmatprep.subr.mxu0 %v1220
        %1608 = vmatpush1.msra.mxu0 %v1219
        %1609 = vmatprep.subr.mxu0 %v1288
        %1610 = vmatpush1.msra.mxu0 %v1285
        %1611 = vmatprep.subr.mxu0 0.0
        %1612 = vmatpush1.msra.mxu0 0.0
        %1613 = vmatprep.subr.mxu0 0.0
        %1614 = vmatpush1.msra.mxu0 0.0
        %1615 = vmatprep.subr.mxu0 0.0
        %1616 = vmatpush1.msra.mxu0 0.0
        %1617 = vmatprep.subr.mxu0 0.0
        %1618 = vmatpush1.msra.mxu0 0.0
        %1619 = vmatprep.subr.mxu0 0.0
        %1620 = vmatpush1.msra.mxu0 0.0
        %1621 = vmatprep.subr.mxu0 0.0
        %1622 = vmatpush1.msra.mxu0 0.0
        %1623 = vmatprep.subr.mxu0 0.0
        %1624 = vmatpush1.msra.mxu0 0.0
        %1625 = vmatprep.subr.mxu0 0.0
        %1626 = vmatpush1.msra.mxu0 0.0
        %1627 = vmatprep.subr.mxu0 0.0
        %1628 = vmatpush1.msra.mxu0 0.0
        %1629 = vmatprep.subr.mxu0 0.0
        %1630 = vmatpush1.msra.mxu0 0.0
        %1631 = vmatprep.subr.mxu0 0.0
        %1632 = vmatpush1.msra.mxu0 0.0
        %1633 = vmatprep.subr.mxu0 0.0
        %1634 = vmatpush1.msra.mxu0 0.0
        %1635 = vmatprep.subr.mxu0 0.0
        %1636 = vmatpush1.msra.mxu0 0.0
        %1637 = vmatprep.subr.mxu0 0.0
        %1638 = vmatpush1.msra.mxu0 0.0
        %1639 = vmatprep.subr.mxu0 0.0
        %1640 = vmatpush1.msra.mxu0 0.0
        %1641 = vmatprep.subr.mxu0 0.0
        %1642 = vmatpush1.msra.mxu0 0.0
        %1643 = vmatprep.subr.mxu0 0.0
        %1644 = vmatpush1.msra.mxu0 0.0
        %1645 = vmatprep.subr.mxu0 0.0
        %1646 = vmatpush1.msra.mxu0 0.0
        %1647 = vmatprep.subr.mxu0 0.0
        %1648 = vmatpush1.msra.mxu0 0.0
        %1649 = vmatprep.subr.mxu0 0.0
        %1650 = vmatpush1.msra.mxu0 0.0
        %1651 = vmatprep.subr.mxu0 0.0
        %1652 = vmatpush1.msra.mxu0 0.0
        %1653 = vmatprep.subr.mxu0 0.0
        %1654 = vmatpush1.msra.mxu0 0.0
        %1655 = vmatprep.subr.mxu0 0.0
        %1656 = vmatpush1.msra.mxu0 0.0
        %1657 = vmatprep.subr.mxu0 0.0
        %1658 = vmatpush1.msra.mxu0 0.0
        %1659 = vmatprep.subr.mxu0 0.0
        %1660 = vmatpush1.msra.mxu0 0.0
        %1661 = vmatprep.subr.mxu0 0.0
        %1662 = vmatpush1.msra.mxu0 0.0
        %1663 = vmatprep.subr.mxu0 0.0
        %1664 = vmatpush1.msra.mxu0 0.0
        %1665 = vmatprep.subr.mxu0 0.0
        %1666 = vmatpush1.msra.mxu0 0.0
        %1667 = vmatprep.subr.mxu0 0.0
        %1668 = vmatpush1.msra.mxu0 0.0
        %1669 = vmatprep.subr.mxu0 0.0
        %1670 = vmatpush1.msra.mxu0 0.0
        %1671 = vmatprep.mubr.f32.mxu0 0.0
        %1672 = vmatmul.mubr.f32.gmra.mrb[0].mxu0 %v1254
        %v1673 = vpop.f32.mrb[0].mxu0
        %v1674 = vadd.f32 %v1245, %v1673
        %v1675 = vpop.f32.mrb[0].mxu0
        %v1676 = vadd.f32 %v1245, %v1675
        %1677 = vmatprep.mubr.f32.mxu0 0.0
        %1678 = vmatmul.mubr.f32.gmra.mrb[0].mxu0 %v1257
        %v1679 = vpop.f32.mrb[0].mxu0
        %v1680 = vadd.f32 %v1250, %v1679
        %v1681 = vpop.f32.mrb[0].mxu0
        %v1682 = vadd.f32 %v1250, %v1681
        %1683 = vdwg.mxu0
        %1684 = vmatprep.subr.mxu0 %v1222
        %1685 = vmatpush1.msra.mxu0 %v1221
        %1686 = vmatprep.subr.mxu0 %v1294
        %1687 = vmatpush1.msra.mxu0 %v1291
        %1688 = vmatprep.subr.mxu0 0.0
        %1689 = vmatpush1.msra.mxu0 0.0
        %1690 = vmatprep.subr.mxu0 0.0
        %1691 = vmatpush1.msra.mxu0 0.0
        %1692 = vmatprep.subr.mxu0 0.0
        %1693 = vmatpush1.msra.mxu0 0.0
        %1694 = vmatprep.subr.mxu0 0.0
        %1695 = vmatpush1.msra.mxu0 0.0
        %1696 = vmatprep.subr.mxu0 0.0
        %1697 = vmatpush1.msra.mxu0 0.0
        %1698 = vmatprep.subr.mxu0 0.0
        %1699 = vmatpush1.msra.mxu0 0.0
        %1700 = vmatprep.subr.mxu0 0.0
        %1701 = vmatpush1.msra.mxu0 0.0
        %1702 = vmatprep.subr.mxu0 0.0
        %1703 = vmatpush1.msra.mxu0 0.0
        %1704 = vmatprep.subr.mxu0 0.0
        %1705 = vmatpush1.msra.mxu0 0.0
        %1706 = vmatprep.subr.mxu0 0.0
        %1707 = vmatpush1.msra.mxu0 0.0
        %1708 = vmatprep.subr.mxu0 0.0
        %1709 = vmatpush1.msra.mxu0 0.0
        %1710 = vmatprep.subr.mxu0 0.0
        %1711 = vmatpush1.msra.mxu0 0.0
        %1712 = vmatprep.subr.mxu0 0.0
        %1713 = vmatpush1.msra.mxu0 0.0
        %1714 = vmatprep.subr.mxu0 0.0
        %1715 = vmatpush1.msra.mxu0 0.0
        %1716 = vmatprep.subr.mxu0 0.0
        %1717 = vmatpush1.msra.mxu0 0.0
        %1718 = vmatprep.subr.mxu0 0.0
        %1719 = vmatpush1.msra.mxu0 0.0
        %1720 = vmatprep.subr.mxu0 0.0
        %1721 = vmatpush1.msra.mxu0 0.0
        %1722 = vmatprep.subr.mxu0 0.0
        %1723 = vmatpush1.msra.mxu0 0.0
        %1724 = vmatprep.subr.mxu0 0.0
        %1725 = vmatpush1.msra.mxu0 0.0
        %1726 = vmatprep.subr.mxu0 0.0
        %1727 = vmatpush1.msra.mxu0 0.0
        %1728 = vmatprep.subr.mxu0 0.0
        %1729 = vmatpush1.msra.mxu0 0.0
        %1730 = vmatprep.subr.mxu0 0.0
        %1731 = vmatpush1.msra.mxu0 0.0
        %1732 = vmatprep.subr.mxu0 0.0
        %1733 = vmatpush1.msra.mxu0 0.0
        %1734 = vmatprep.subr.mxu0 0.0
        %1735 = vmatpush1.msra.mxu0 0.0
        %1736 = vmatprep.subr.mxu0 0.0
        %1737 = vmatpush1.msra.mxu0 0.0
        %1738 = vmatprep.subr.mxu0 0.0
        %1739 = vmatpush1.msra.mxu0 0.0
        %1740 = vmatprep.subr.mxu0 0.0
        %1741 = vmatpush1.msra.mxu0 0.0
        %1742 = vmatprep.subr.mxu0 0.0
        %1743 = vmatpush1.msra.mxu0 0.0
        %1744 = vmatprep.subr.mxu0 0.0
        %1745 = vmatpush1.msra.mxu0 0.0
        %1746 = vmatprep.subr.mxu0 0.0
        %1747 = vmatpush1.msra.mxu0 0.0
        %1748 = vmatprep.mubr.f32.mxu0 0.0
        %1749 = vmatmul.mubr.f32.gmra.mrb[0].mxu0 %v1254
        %v1750 = vpop.f32.mrb[0].mxu0
        %v1751 = vadd.f32 %v1245, %v1750
        %v1752 = vpop.f32.mrb[0].mxu0
        %v1753 = vadd.f32 %v1245, %v1752
        %1754 = vmatprep.mubr.f32.mxu0 0.0
        %1755 = vmatmul.mubr.f32.gmra.mrb[0].mxu0 %v1257
        %v1756 = vpop.f32.mrb[0].mxu0
        %v1757 = vadd.f32 %v1250, %v1756
        %v1758 = vpop.f32.mrb[0].mxu0
        %v1759 = vadd.f32 %v1250, %v1758
        %1760 = vdwg.mxu0
        %1761 = vmatprep.subr.mxu0 0.0
        %1762 = vmatpush1.msra.mxu0 %v1223
        %1763 = vmatprep.subr.mxu0 0.0
        %1764 = vmatpush1.msra.mxu0 %v1297
        %1765 = vmatprep.subr.mxu0 0.0
        %1766 = vmatpush1.msra.mxu0 0.0
        %1767 = vmatprep.subr.mxu0 0.0
        %1768 = vmatpush1.msra.mxu0 0.0
        %1769 = vmatprep.subr.mxu0 0.0
        %1770 = vmatpush1.msra.mxu0 0.0
        %1771 = vmatprep.subr.mxu0 0.0
        %1772 = vmatpush1.msra.mxu0 0.0
        %1773 = vmatprep.subr.mxu0 0.0
        %1774 = vmatpush1.msra.mxu0 0.0
        %1775 = vmatprep.subr.mxu0 0.0
        %1776 = vmatpush1.msra.mxu0 0.0
        %1777 = vmatprep.subr.mxu0 0.0
        %1778 = vmatpush1.msra.mxu0 0.0
        %1779 = vmatprep.subr.mxu0 0.0
        %1780 = vmatpush1.msra.mxu0 0.0
        %1781 = vmatprep.subr.mxu0 0.0
        %1782 = vmatpush1.msra.mxu0 0.0
        %1783 = vmatprep.subr.mxu0 0.0
        %1784 = vmatpush1.msra.mxu0 0.0
        %1785 = vmatprep.subr.mxu0 0.0
        %1786 = vmatpush1.msra.mxu0 0.0
        %1787 = vmatprep.subr.mxu0 0.0
        %1788 = vmatpush1.msra.mxu0 0.0
        %1789 = vmatprep.subr.mxu0 0.0
        %1790 = vmatpush1.msra.mxu0 0.0
        %1791 = vmatprep.subr.mxu0 0.0
        %1792 = vmatpush1.msra.mxu0 0.0
        %1793 = vmatprep.subr.mxu0 0.0
        %1794 = vmatpush1.msra.mxu0 0.0
        %1795 = vmatprep.subr.mxu0 0.0
        %1796 = vmatpush1.msra.mxu0 0.0
        %1797 = vmatprep.subr.mxu0 0.0
        %1798 = vmatpush1.msra.mxu0 0.0
        %1799 = vmatprep.subr.mxu0 0.0
        %1800 = vmatpush1.msra.mxu0 0.0
        %1801 = vmatprep.subr.mxu0 0.0
        %1802 = vmatpush1.msra.mxu0 0.0
        %1803 = vmatprep.subr.mxu0 0.0
        %1804 = vmatpush1.msra.mxu0 0.0
        %1805 = vmatprep.subr.mxu0 0.0
        %1806 = vmatpush1.msra.mxu0 0.0
        %1807 = vmatprep.subr.mxu0 0.0
        %1808 = vmatpush1.msra.mxu0 0.0
        %1809 = vmatprep.subr.mxu0 0.0
        %1810 = vmatpush1.msra.mxu0 0.0
        %1811 = vmatprep.subr.mxu0 0.0
        %1812 = vmatpush1.msra.mxu0 0.0
        %1813 = vmatprep.subr.mxu0 0.0
        %1814 = vmatpush1.msra.mxu0 0.0
        %1815 = vmatprep.subr.mxu0 0.0
        %1816 = vmatpush1.msra.mxu0 0.0
        %1817 = vmatprep.subr.mxu0 0.0
        %1818 = vmatpush1.msra.mxu0 0.0
        %1819 = vmatprep.subr.mxu0 0.0
        %1820 = vmatpush1.msra.mxu0 0.0
        %1821 = vmatprep.subr.mxu0 0.0
        %1822 = vmatpush1.msra.mxu0 0.0
        %1823 = vmatprep.subr.mxu0 0.0
        %1824 = vmatpush1.msra.mxu0 0.0
        %1825 = vmatprep.mubr.f32.mxu0 0.0
        %1826 = vmatmul.mubr.f32.gmra.mrb[0].mxu0 %v1254
        %v1827 = vpop.f32.mrb[0].mxu0
        %v1828 = vadd.f32 %v1245, %v1827
        %v1829 = vpop.f32.mrb[0].mxu0
        %1830 = vmatprep.mubr.f32.mxu0 0.0
        %1831 = vmatmul.mubr.f32.gmra.mrb[0].mxu0 %v1257
        %v1832 = vpop.f32.mrb[0].mxu0
        %v1833 = vadd.f32 %v1250, %v1832
        %v1834 = vpop.f32.mrb[0].mxu0
        %1835 = vdwg.mxu0
        %v1836 = vmax.f32 %v1366, 0.0
        %v1837 = vmax.f32 %v1368, 0.0
        %v1838 = vmax.f32 %v1443, 0.0
        %v1839 = vmax.f32 %v1445, 0.0
        %v1840 = vmax.f32 %v1520, 0.0
        %v1841 = vmax.f32 %v1522, 0.0
        %v1842 = vmax.f32 %v1597, 0.0
        %v1843 = vmax.f32 %v1599, 0.0
        %v1844 = vmax.f32 %v1674, 0.0
        %v1845 = vmax.f32 %v1676, 0.0
        %v1846 = vmax.f32 %v1751, 0.0
        %v1847 = vmax.f32 %v1753, 0.0
        %v1848 = vmax.f32 %v1828, 0.0
        %v1849 = vmax.f32 %v1372, 0.0
        %v1850 = vmax.f32 %v1374, 0.0
        %v1851 = vmax.f32 %v1449, 0.0
        %v1852 = vmax.f32 %v1451, 0.0
        %v1853 = vmax.f32 %v1526, 0.0
        %v1854 = vmax.f32 %v1528, 0.0
        %v1855 = vmax.f32 %v1603, 0.0
        %v1856 = vmax.f32 %v1605, 0.0
        %v1857 = vmax.f32 %v1680, 0.0
        %v1858 = vmax.f32 %v1682, 0.0
        %v1859 = vmax.f32 %v1757, 0.0
        %v1860 = vmax.f32 %v1759, 0.0
        %v1861 = vmax.f32 %v1833, 0.0
        %1888 = vrot.lane.b32.xlu0 %v1836, 127
        %v1889 = vpop.permute.xlu0 %1888
        %1890 = vrot.lane.b32.xlu0 %v1837, 127
        %v1891 = vpop.permute.xlu0 %1890
        %1892 = vrot.lane.b32.xlu0 %v1838, 127
        %v1893 = vpop.permute.xlu0 %1892
        %1894 = vrot.lane.b32.xlu0 %v1839, 127
        %v1895 = vpop.permute.xlu0 %1894
        %1896 = vrot.lane.b32.xlu0 %v1840, 127
        %v1897 = vpop.permute.xlu0 %1896
        %1898 = vrot.lane.b32.xlu0 %v1841, 127
        %v1899 = vpop.permute.xlu0 %1898
        %1900 = vrot.lane.b32.xlu0 %v1842, 127
        %v1901 = vpop.permute.xlu0 %1900
        %1902 = vrot.lane.b32.xlu0 %v1843, 127
        %v1903 = vpop.permute.xlu0 %1902
        %1904 = vrot.lane.b32.xlu0 %v1844, 127
        %v1905 = vpop.permute.xlu0 %1904
        %1906 = vrot.lane.b32.xlu0 %v1845, 127
        %v1907 = vpop.permute.xlu0 %1906
        %1908 = vrot.lane.b32.xlu0 %v1846, 127
        %v1909 = vpop.permute.xlu0 %1908
        %1910 = vrot.lane.b32.xlu0 %v1847, 127
        %v1911 = vpop.permute.xlu0 %1910
        %1912 = vrot.lane.b32.xlu0 %v1848, 127
        %v1913 = vpop.permute.xlu0 %1912
        %1914 = vrot.lane.b32.xlu0 %v1849, 127
        %v1915 = vpop.permute.xlu0 %1914
        %1916 = vrot.lane.b32.xlu0 %v1850, 127
        %v1917 = vpop.permute.xlu0 %1916
        %1918 = vrot.lane.b32.xlu0 %v1851, 127
        %v1919 = vpop.permute.xlu0 %1918
        %1920 = vrot.lane.b32.xlu0 %v1852, 127
        %v1921 = vpop.permute.xlu0 %1920
        %1922 = vrot.lane.b32.xlu0 %v1853, 127
        %v1923 = vpop.permute.xlu0 %1922
        %1924 = vrot.lane.b32.xlu0 %v1854, 127
        %v1925 = vpop.permute.xlu0 %1924
        %1926 = vrot.lane.b32.xlu0 %v1855, 127
        %v1927 = vpop.permute.xlu0 %1926
        %1928 = vrot.lane.b32.xlu0 %v1856, 127
        %v1929 = vpop.permute.xlu0 %1928
        %1930 = vrot.lane.b32.xlu0 %v1857, 127
        %v1931 = vpop.permute.xlu0 %1930
        %1932 = vrot.lane.b32.xlu0 %v1858, 127
        %v1933 = vpop.permute.xlu0 %1932
        %1934 = vrot.lane.b32.xlu0 %v1859, 127
        %v1935 = vpop.permute.xlu0 %1934
        %1936 = vrot.lane.b32.xlu0 %v1860, 127
        %v1937 = vpop.permute.xlu0 %1936
        %1938 = vrot.lane.b32.xlu0 %v1861, 127
        %v1939 = vpop.permute.xlu0 %1938
        %v1940 = vsel %vm1119, %v1889, %v1891
        %v1941 = vsel %vm1119, %v1891, %v1893
        %v1942 = vsel %vm1119, %v1893, %v1895
        %v1943 = vsel %vm1119, %v1895, %v1897
        %v1944 = vsel %vm1119, %v1897, %v1899
        %v1945 = vsel %vm1119, %v1899, %v1901
        %v1946 = vsel %vm1119, %v1901, %v1903
        %v1947 = vsel %vm1119, %v1903, %v1905
        %v1948 = vsel %vm1119, %v1905, %v1907
        %v1949 = vsel %vm1119, %v1907, %v1909
        %v1950 = vsel %vm1119, %v1909, %v1911
        %v1951 = vsel %vm1119, %v1911, %v1913
        %v1952 = vsel %vm1119, %v1915, %v1917
        %v1953 = vsel %vm1119, %v1917, %v1919
        %v1954 = vsel %vm1119, %v1919, %v1921
        %v1955 = vsel %vm1119, %v1921, %v1923
        %v1956 = vsel %vm1119, %v1923, %v1925
        %v1957 = vsel %vm1119, %v1925, %v1927
        %v1958 = vsel %vm1119, %v1927, %v1929
        %v1959 = vsel %vm1119, %v1929, %v1931
        %v1960 = vsel %vm1119, %v1931, %v1933
        %v1961 = vsel %vm1119, %v1933, %v1935
        %v1962 = vsel %vm1119, %v1935, %v1937
        %v1963 = vsel %vm1119, %v1937, %v1939
        %v1990 = vmax.f32 %v1836, %v1940
        %v1991 = vmax.f32 %v1837, %v1941
        %v1992 = vmax.f32 %v1838, %v1942
        %v1993 = vmax.f32 %v1839, %v1943
        %v1994 = vmax.f32 %v1840, %v1944
        %v1995 = vmax.f32 %v1841, %v1945
        %v1996 = vmax.f32 %v1842, %v1946
        %v1997 = vmax.f32 %v1843, %v1947
        %v1998 = vmax.f32 %v1844, %v1948
        %v1999 = vmax.f32 %v1845, %v1949
        %v2000 = vmax.f32 %v1846, %v1950
        %v2001 = vmax.f32 %v1847, %v1951
        %v2002 = vmax.f32 %v1848, %v1913
        %v2003 = vmax.f32 %v1849, %v1952
        %v2004 = vmax.f32 %v1850, %v1953
        %v2005 = vmax.f32 %v1851, %v1954
        %v2006 = vmax.f32 %v1852, %v1955
        %v2007 = vmax.f32 %v1853, %v1956
        %v2008 = vmax.f32 %v1854, %v1957
        %v2009 = vmax.f32 %v1855, %v1958
        %v2010 = vmax.f32 %v1856, %v1959
        %v2011 = vmax.f32 %v1857, %v1960
        %v2012 = vmax.f32 %v1858, %v1961
        %v2013 = vmax.f32 %v1859, %v1962
        %v2014 = vmax.f32 %v1860, %v1963
        %v2015 = vmax.f32 %v1861, %v1939
        %v2042 = vrot.slane %v1990, 6
        %v2043 = vrot.slane %v1991, 6
        %v2044 = vrot.slane %v1992, 6
        %v2045 = vrot.slane %v1993, 6
        %v2046 = vrot.slane %v1994, 6
        %v2047 = vrot.slane %v1995, 6
        %v2048 = vrot.slane %v1996, 6
        %v2049 = vrot.slane %v1997, 6
        %v2050 = vrot.slane %v1998, 6
        %v2051 = vrot.slane %v1999, 6
        %v2052 = vrot.slane %v2000, 6
        %v2053 = vrot.slane %v2001, 6
        %v2054 = vrot.slane %v2002, 6
        %v2055 = vrot.slane %v2003, 6
        %v2056 = vsel %vm1224, %v2042, %v2055
        %v2057 = vrot.slane %v2004, 6
        %v2058 = vsel %vm1224, %v2043, %v2057
        %v2059 = vrot.slane %v2005, 6
        %v2060 = vsel %vm1224, %v2044, %v2059
        %v2061 = vrot.slane %v2006, 6
        %v2062 = vsel %vm1224, %v2045, %v2061
        %v2063 = vrot.slane %v2007, 6
        %v2064 = vsel %vm1224, %v2046, %v2063
        %v2065 = vrot.slane %v2008, 6
        %v2066 = vsel %vm1224, %v2047, %v2065
        %v2067 = vrot.slane %v2009, 6
        %v2068 = vsel %vm1224, %v2048, %v2067
        %v2069 = vrot.slane %v2010, 6
        %v2070 = vsel %vm1224, %v2049, %v2069
        %v2071 = vrot.slane %v2011, 6
        %v2072 = vsel %vm1224, %v2050, %v2071
        %v2073 = vrot.slane %v2012, 6
        %v2074 = vsel %vm1224, %v2051, %v2073
        %v2075 = vrot.slane %v2013, 6
        %v2076 = vsel %vm1224, %v2052, %v2075
        %v2077 = vrot.slane %v2014, 6
        %v2078 = vsel %vm1224, %v2053, %v2077
        %v2079 = vrot.slane %v2015, 6
        %v2080 = vsel %vm1224, %v2054, %v2079
        %2081 = vrot.lane.b32.xlu0 %v2042, 126
        %v2082 = vpop.permute.xlu0 %2081
        %2083 = vrot.lane.b32.xlu0 %v2043, 126
        %v2084 = vpop.permute.xlu0 %2083
        %2085 = vrot.lane.b32.xlu0 %v2044, 126
        %v2086 = vpop.permute.xlu0 %2085
        %2087 = vrot.lane.b32.xlu0 %v2045, 126
        %v2088 = vpop.permute.xlu0 %2087
        %2089 = vrot.lane.b32.xlu0 %v2046, 126
        %v2090 = vpop.permute.xlu0 %2089
        %2091 = vrot.lane.b32.xlu0 %v2047, 126
        %v2092 = vpop.permute.xlu0 %2091
        %2093 = vrot.lane.b32.xlu0 %v2048, 126
        %v2094 = vpop.permute.xlu0 %2093
        %2095 = vrot.lane.b32.xlu0 %v2049, 126
        %v2096 = vpop.permute.xlu0 %2095
        %2097 = vrot.lane.b32.xlu0 %v2050, 126
        %v2098 = vpop.permute.xlu0 %2097
        %2099 = vrot.lane.b32.xlu0 %v2051, 126
        %v2100 = vpop.permute.xlu0 %2099
        %2101 = vrot.lane.b32.xlu0 %v2052, 126
        %v2102 = vpop.permute.xlu0 %2101
        %2103 = vrot.lane.b32.xlu0 %v2053, 126
        %v2104 = vpop.permute.xlu0 %2103
        %2105 = vrot.lane.b32.xlu0 %v2054, 126
        %v2106 = vpop.permute.xlu0 %2105
        %2107 = vrot.lane.b32.xlu0 %v2056, 126
        %v2108 = vpop.permute.xlu0 %2107
        %2109 = vrot.lane.b32.xlu0 %v2058, 126
        %v2110 = vpop.permute.xlu0 %2109
        %2111 = vrot.lane.b32.xlu0 %v2060, 126
        %v2112 = vpop.permute.xlu0 %2111
        %2113 = vrot.lane.b32.xlu0 %v2062, 126
        %v2114 = vpop.permute.xlu0 %2113
        %2115 = vrot.lane.b32.xlu0 %v2064, 126
        %v2116 = vpop.permute.xlu0 %2115
        %2117 = vrot.lane.b32.xlu0 %v2066, 126
        %v2118 = vpop.permute.xlu0 %2117
        %2119 = vrot.lane.b32.xlu0 %v2068, 126
        %v2120 = vpop.permute.xlu0 %2119
        %2121 = vrot.lane.b32.xlu0 %v2070, 126
        %v2122 = vpop.permute.xlu0 %2121
        %2123 = vrot.lane.b32.xlu0 %v2072, 126
        %v2124 = vpop.permute.xlu0 %2123
        %2125 = vrot.lane.b32.xlu0 %v2074, 126
        %v2126 = vpop.permute.xlu0 %2125
        %2127 = vrot.lane.b32.xlu0 %v2076, 126
        %v2128 = vpop.permute.xlu0 %2127
        %2129 = vrot.lane.b32.xlu0 %v2078, 126
        %v2130 = vpop.permute.xlu0 %2129
        %2131 = vrot.lane.b32.xlu0 %v2080, 126
        %v2132 = vpop.permute.xlu0 %2131
        %v2133 = vsel %vm1184, %v2082, %v2084
        %v2134 = vsel %vm1184, %v2084, %v2086
        %v2135 = vsel %vm1184, %v2086, %v2088
        %v2136 = vsel %vm1184, %v2088, %v2090
        %v2137 = vsel %vm1184, %v2090, %v2092
        %v2138 = vsel %vm1184, %v2092, %v2094
        %v2139 = vsel %vm1184, %v2094, %v2096
        %v2140 = vsel %vm1184, %v2096, %v2098
        %v2141 = vsel %vm1184, %v2098, %v2100
        %v2142 = vsel %vm1184, %v2100, %v2102
        %v2143 = vsel %vm1184, %v2102, %v2104
        %v2144 = vsel %vm1184, %v2104, %v2106
        %v2145 = vsel %vm1184, %v2108, %v2110
        %v2146 = vsel %vm1184, %v2110, %v2112
        %v2147 = vsel %vm1184, %v2112, %v2114
        %v2148 = vsel %vm1184, %v2114, %v2116
        %v2149 = vsel %vm1184, %v2116, %v2118
        %v2150 = vsel %vm1184, %v2118, %v2120
        %v2151 = vsel %vm1184, %v2120, %v2122
        %v2152 = vsel %vm1184, %v2122, %v2124
        %v2153 = vsel %vm1184, %v2124, %v2126
        %v2154 = vsel %vm1184, %v2126, %v2128
        %v2155 = vsel %vm1184, %v2128, %v2130
        %v2156 = vsel %vm1184, %v2130, %v2132
        %v2183 = vrot.slane %v1990, 4
        %v2184 = vrot.slane %v1991, 4
        %v2185 = vrot.slane %v1992, 4
        %v2186 = vrot.slane %v1993, 4
        %v2187 = vrot.slane %v1994, 4
        %v2188 = vrot.slane %v1995, 4
        %v2189 = vrot.slane %v1996, 4
        %v2190 = vrot.slane %v1997, 4
        %v2191 = vrot.slane %v1998, 4
        %v2192 = vrot.slane %v1999, 4
        %v2193 = vrot.slane %v2000, 4
        %v2194 = vrot.slane %v2001, 4
        %v2195 = vrot.slane %v2002, 4
        %v2196 = vrot.slane %v2003, 4
        %v2197 = vsel %vm544, %v2183, %v2196
        %v2198 = vrot.slane %v2004, 4
        %v2199 = vsel %vm544, %v2184, %v2198
        %v2200 = vrot.slane %v2005, 4
        %v2201 = vsel %vm544, %v2185, %v2200
        %v2202 = vrot.slane %v2006, 4
        %v2203 = vsel %vm544, %v2186, %v2202
        %v2204 = vrot.slane %v2007, 4
        %v2205 = vsel %vm544, %v2187, %v2204
        %v2206 = vrot.slane %v2008, 4
        %v2207 = vsel %vm544, %v2188, %v2206
        %v2208 = vrot.slane %v2009, 4
        %v2209 = vsel %vm544, %v2189, %v2208
        %v2210 = vrot.slane %v2010, 4
        %v2211 = vsel %vm544, %v2190, %v2210
        %v2212 = vrot.slane %v2011, 4
        %v2213 = vsel %vm544, %v2191, %v2212
        %v2214 = vrot.slane %v2012, 4
        %v2215 = vsel %vm544, %v2192, %v2214
        %v2216 = vrot.slane %v2013, 4
        %v2217 = vsel %vm544, %v2193, %v2216
        %v2218 = vrot.slane %v2014, 4
        %v2219 = vsel %vm544, %v2194, %v2218
        %v2220 = vrot.slane %v2015, 4
        %v2221 = vsel %vm544, %v2195, %v2220
        %2222 = vrot.lane.b32.xlu0 %v2183, 124
        %v2223 = vpop.permute.xlu0 %2222
        %2224 = vrot.lane.b32.xlu0 %v2184, 124
        %v2225 = vpop.permute.xlu0 %2224
        %2226 = vrot.lane.b32.xlu0 %v2185, 124
        %v2227 = vpop.permute.xlu0 %2226
        %2228 = vrot.lane.b32.xlu0 %v2186, 124
        %v2229 = vpop.permute.xlu0 %2228
        %2230 = vrot.lane.b32.xlu0 %v2187, 124
        %v2231 = vpop.permute.xlu0 %2230
        %2232 = vrot.lane.b32.xlu0 %v2188, 124
        %v2233 = vpop.permute.xlu0 %2232
        %2234 = vrot.lane.b32.xlu0 %v2189, 124
        %v2235 = vpop.permute.xlu0 %2234
        %2236 = vrot.lane.b32.xlu0 %v2190, 124
        %v2237 = vpop.permute.xlu0 %2236
        %2238 = vrot.lane.b32.xlu0 %v2191, 124
        %v2239 = vpop.permute.xlu0 %2238
        %2240 = vrot.lane.b32.xlu0 %v2192, 124
        %v2241 = vpop.permute.xlu0 %2240
        %2242 = vrot.lane.b32.xlu0 %v2193, 124
        %v2243 = vpop.permute.xlu0 %2242
        %2244 = vrot.lane.b32.xlu0 %v2194, 124
        %v2245 = vpop.permute.xlu0 %2244
        %2246 = vrot.lane.b32.xlu0 %v2195, 124
        %v2247 = vpop.permute.xlu0 %2246
        %2248 = vrot.lane.b32.xlu0 %v2197, 124
        %v2249 = vpop.permute.xlu0 %2248
        %2250 = vrot.lane.b32.xlu0 %v2199, 124
        %v2251 = vpop.permute.xlu0 %2250
        %2252 = vrot.lane.b32.xlu0 %v2201, 124
        %v2253 = vpop.permute.xlu0 %2252
        %2254 = vrot.lane.b32.xlu0 %v2203, 124
        %v2255 = vpop.permute.xlu0 %2254
        %2256 = vrot.lane.b32.xlu0 %v2205, 124
        %v2257 = vpop.permute.xlu0 %2256
        %2258 = vrot.lane.b32.xlu0 %v2207, 124
        %v2259 = vpop.permute.xlu0 %2258
        %2260 = vrot.lane.b32.xlu0 %v2209, 124
        %v2261 = vpop.permute.xlu0 %2260
        %2262 = vrot.lane.b32.xlu0 %v2211, 124
        %v2263 = vpop.permute.xlu0 %2262
        %2264 = vrot.lane.b32.xlu0 %v2213, 124
        %v2265 = vpop.permute.xlu0 %2264
        %2266 = vrot.lane.b32.xlu0 %v2215, 124
        %v2267 = vpop.permute.xlu0 %2266
        %2268 = vrot.lane.b32.xlu0 %v2217, 124
        %v2269 = vpop.permute.xlu0 %2268
        %2270 = vrot.lane.b32.xlu0 %v2219, 124
        %v2271 = vpop.permute.xlu0 %2270
        %2272 = vrot.lane.b32.xlu0 %v2221, 124
        %v2273 = vpop.permute.xlu0 %2272
        %vm2274 = vcmask 1014784
        %v2275 = vsel %vm2274, %v2223, %v2225
        %v2276 = vsel %vm2274, %v2225, %v2227
        %v2277 = vsel %vm2274, %v2227, %v2229
        %v2278 = vsel %vm2274, %v2229, %v2231
        %v2279 = vsel %vm2274, %v2231, %v2233
        %v2280 = vsel %vm2274, %v2233, %v2235
        %v2281 = vsel %vm2274, %v2235, %v2237
        %v2282 = vsel %vm2274, %v2237, %v2239
        %v2283 = vsel %vm2274, %v2239, %v2241
        %v2284 = vsel %vm2274, %v2241, %v2243
        %v2285 = vsel %vm2274, %v2243, %v2245
        %v2286 = vsel %vm2274, %v2245, %v2247
        %v2287 = vsel %vm2274, %v2249, %v2251
        %v2288 = vsel %vm2274, %v2251, %v2253
        %v2289 = vsel %vm2274, %v2253, %v2255
        %v2290 = vsel %vm2274, %v2255, %v2257
        %v2291 = vsel %vm2274, %v2257, %v2259
        %v2292 = vsel %vm2274, %v2259, %v2261
        %v2293 = vsel %vm2274, %v2261, %v2263
        %v2294 = vsel %vm2274, %v2263, %v2265
        %v2295 = vsel %vm2274, %v2265, %v2267
        %v2296 = vsel %vm2274, %v2267, %v2269
        %v2297 = vsel %vm2274, %v2269, %v2271
        %v2298 = vsel %vm2274, %v2271, %v2273
        %v2312 = vsel %vm1224, %v2003, %v2133
        %v2313 = vsel %vm1224, %v2004, %v2134
        %v2314 = vsel %vm1224, %v2005, %v2135
        %v2315 = vsel %vm1224, %v2006, %v2136
        %v2316 = vsel %vm1224, %v2007, %v2137
        %v2317 = vsel %vm1224, %v2008, %v2138
        %v2318 = vsel %vm1224, %v2009, %v2139
        %v2319 = vsel %vm1224, %v2010, %v2140
        %v2320 = vsel %vm1224, %v2011, %v2141
        %v2321 = vsel %vm1224, %v2012, %v2142
        %v2322 = vsel %vm1224, %v2013, %v2143
        %v2323 = vsel %vm1224, %v2014, %v2144
        %v2324 = vsel %vm1224, %v2015, %v2106
        %v2325 = vsel %vm544, %v2145, %v2275
        %v2326 = vsel %vm544, %v2146, %v2276
        %v2327 = vsel %vm544, %v2147, %v2277
        %v2328 = vsel %vm544, %v2148, %v2278
        %v2329 = vsel %vm544, %v2149, %v2279
        %v2330 = vsel %vm544, %v2150, %v2280
        %v2331 = vsel %vm544, %v2151, %v2281
        %v2332 = vsel %vm544, %v2152, %v2282
        %v2333 = vsel %vm544, %v2153, %v2283
        %v2334 = vsel %vm544, %v2154, %v2284
        %v2335 = vsel %vm544, %v2155, %v2285
        %v2336 = vsel %vm544, %v2156, %v2286
        %v2337 = vsel %vm544, %v2132, %v2247
        %v2338 = vld [vmem:[%s5] sm:$0xff]
        %v2339 = vld [vmem:[%s5 + $0x8] sm:$0xff]
        %v2340 = vld [vmem:[%s5 + $0x10] sm:$0xf]
        %v2341 = vld [vmem:[%s6] sm:$0xff]
        %v2342 = vld [vmem:[%s6 + $0x8] sm:$0xff]
        %v2343 = vld [vmem:[%s6 + $0x10] sm:$0xf]
        %2345 = vset.pattern.permute.xlu0 0
        %2346 = vperm.xlu0 %2345, %v2341
        %v2347 = vpop.permute.xlu0 %2346
        %2350 = vset.pattern.permute.xlu0 0
        %2351 = vperm.xlu0 %2350, %v2342
        %v2352 = vpop.permute.xlu0 %2351
        %2355 = vset.pattern.permute.xlu0 0
        %2356 = vperm.xlu0 %2355, %v2343
        %v2357 = vpop.permute.xlu0 %2356
        %vm2359 = vcmask 244736
        %v2361 = vsel %vm2359, %v2338, 0
        %v2364 = vsel %vm2359, %v2339, 0
        %v2367 = vsel %vm2359, %v2340, 0
        %vm2369 = vcmask 1045504
        %v2370 = vsel %vm2369, %v2287, 0
        %v2372 = vsel %vm2369, %v2288, 0
        %v2374 = vsel %vm2369, %v2289, 0
        %v2376 = vsel %vm2369, %v2290, 0
        %v2378 = vsel %vm2369, %v2291, 0
        %v2380 = vsel %vm2369, %v2292, 0
        %v2382 = vsel %vm2369, %v2293, 0
        %v2384 = vsel %vm2369, %v2294, 0
        %v2386 = vsel %vm2369, %v2295, 0
        %v2388 = vsel %vm2369, %v2296, 0
        %v2390 = vsel %vm2369, %v2297, 0
        %v2392 = vsel %vm2369, %v2298, 0
        %v2394 = vsel %vm2369, %v2273, 0
        %2396 = vmatprep.subr.mxu0 %v1991
        %2397 = vmatpush1.msra.mxu0 %v1990
        %2398 = vmatprep.subr.mxu0 %v2313
        %2399 = vmatpush1.msra.mxu0 %v2312
        %2400 = vmatprep.subr.mxu0 %v2326
        %2401 = vmatpush1.msra.mxu0 %v2325
        %2402 = vmatprep.subr.mxu0 %v2372
        %2403 = vmatpush1.msra.mxu0 %v2370
        %2404 = vmatprep.subr.mxu0 0.0
        %2405 = vmatpush1.msra.mxu0 0.0
        %2406 = vmatprep.subr.mxu0 0.0
        %2407 = vmatpush1.msra.mxu0 0.0
        %2408 = vmatprep.subr.mxu0 0.0
        %2409 = vmatpush1.msra.mxu0 0.0
        %2410 = vmatprep.subr.mxu0 0.0
        %2411 = vmatpush1.msra.mxu0 0.0
        %2412 = vmatprep.subr.mxu0 0.0
        %2413 = vmatpush1.msra.mxu0 0.0
        %2414 = vmatprep.subr.mxu0 0.0
        %2415 = vmatpush1.msra.mxu0 0.0
        %2416 = vmatprep.subr.mxu0 0.0
        %2417 = vmatpush1.msra.mxu0 0.0
        %2418 = vmatprep.subr.mxu0 0.0
        %2419 = vmatpush1.msra.mxu0 0.0
        %2420 = vmatprep.subr.mxu0 0.0
        %2421 = vmatpush1.msra.mxu0 0.0
        %2422 = vmatprep.subr.mxu0 0.0
        %2423 = vmatpush1.msra.mxu0 0.0
        %2424 = vmatprep.subr.mxu0 0.0
        %2425 = vmatpush1.msra.mxu0 0.0
        %2426 = vmatprep.subr.mxu0 0.0
        %2427 = vmatpush1.msra.mxu0 0.0
        %2428 = vmatprep.subr.mxu0 0.0
        %2429 = vmatpush1.msra.mxu0 0.0
        %2430 = vmatprep.subr.mxu0 0.0
        %2431 = vmatpush1.msra.mxu0 0.0
        %2432 = vmatprep.subr.mxu0 0.0
        %2433 = vmatpush1.msra.mxu0 0.0
        %2434 = vmatprep.subr.mxu0 0.0
        %2435 = vmatpush1.msra.mxu0 0.0
        %2436 = vmatprep.subr.mxu0 0.0
        %2437 = vmatpush1.msra.mxu0 0.0
        %2438 = vmatprep.subr.mxu0 0.0
        %2439 = vmatpush1.msra.mxu0 0.0
        %2440 = vmatprep.subr.mxu0 0.0
        %2441 = vmatpush1.msra.mxu0 0.0
        %2442 = vmatprep.subr.mxu0 0.0
        %2443 = vmatpush1.msra.mxu0 0.0
        %2444 = vmatprep.subr.mxu0 0.0
        %2445 = vmatpush1.msra.mxu0 0.0
        %2446 = vmatprep.subr.mxu0 0.0
        %2447 = vmatpush1.msra.mxu0 0.0
        %2448 = vmatprep.subr.mxu0 0.0
        %2449 = vmatpush1.msra.mxu0 0.0
        %2450 = vmatprep.subr.mxu0 0.0
        %2451 = vmatpush1.msra.mxu0 0.0
        %2452 = vmatprep.subr.mxu0 0.0
        %2453 = vmatpush1.msra.mxu0 0.0
        %2454 = vmatprep.subr.mxu0 0.0
        %2455 = vmatpush1.msra.mxu0 0.0
        %2456 = vmatprep.subr.mxu0 0.0
        %2457 = vmatpush1.msra.mxu0 0.0
        %2458 = vmatprep.subr.mxu0 0.0
        %2459 = vmatpush1.msra.mxu0 0.0
        %2460 = vmatprep.mubr.f32.mxu0 0.0
        %2461 = vmatmul.mubr.f32.gmra.mrb[0].mxu0 %v2361
        %v2462 = vpop.f32.mrb[0].mxu0
        %v2463 = vadd.f32 %v2347, %v2462
        %v2464 = vpop.f32.mrb[0].mxu0
        %v2465 = vadd.f32 %v2347, %v2464
        %2466 = vmatprep.mubr.f32.mxu0 0.0
        %2467 = vmatmul.mubr.f32.gmra.mrb[0].mxu0 %v2364
        %v2468 = vpop.f32.mrb[0].mxu0
        %v2469 = vadd.f32 %v2352, %v2468
        %v2470 = vpop.f32.mrb[0].mxu0
        %v2471 = vadd.f32 %v2352, %v2470
        %2472 = vmatprep.mubr.f32.mxu0 0.0
        %2473 = vmatmul.mubr.f32.gmra.mrb[0].mxu0 %v2367
        %v2474 = vpop.f32.mrb[0].mxu0
        %v2475 = vadd.f32 %v2357, %v2474
        %v2476 = vpop.f32.mrb[0].mxu0
        %v2477 = vadd.f32 %v2357, %v2476
        %2478 = vdwg.mxu0
        %2479 = vmatprep.subr.mxu0 %v1993
        %2480 = vmatpush1.msra.mxu0 %v1992
        %2481 = vmatprep.subr.mxu0 %v2315
        %2482 = vmatpush1.msra.mxu0 %v2314
        %2483 = vmatprep.subr.mxu0 %v2328
        %2484 = vmatpush1.msra.mxu0 %v2327
        %2485 = vmatprep.subr.mxu0 %v2376
        %2486 = vmatpush1.msra.mxu0 %v2374
        %2487 = vmatprep.subr.mxu0 0.0
        %2488 = vmatpush1.msra.mxu0 0.0
        %2489 = vmatprep.subr.mxu0 0.0
        %2490 = vmatpush1.msra.mxu0 0.0
        %2491 = vmatprep.subr.mxu0 0.0
        %2492 = vmatpush1.msra.mxu0 0.0
        %2493 = vmatprep.subr.mxu0 0.0
        %2494 = vmatpush1.msra.mxu0 0.0
        %2495 = vmatprep.subr.mxu0 0.0
        %2496 = vmatpush1.msra.mxu0 0.0
        %2497 = vmatprep.subr.mxu0 0.0
        %2498 = vmatpush1.msra.mxu0 0.0
        %2499 = vmatprep.subr.mxu0 0.0
        %2500 = vmatpush1.msra.mxu0 0.0
        %2501 = vmatprep.subr.mxu0 0.0
        %2502 = vmatpush1.msra.mxu0 0.0
        %2503 = vmatprep.subr.mxu0 0.0
        %2504 = vmatpush1.msra.mxu0 0.0
        %2505 = vmatprep.subr.mxu0 0.0
        %2506 = vmatpush1.msra.mxu0 0.0
        %2507 = vmatprep.subr.mxu0 0.0
        %2508 = vmatpush1.msra.mxu0 0.0
        %2509 = vmatprep.subr.mxu0 0.0
        %2510 = vmatpush1.msra.mxu0 0.0
        %2511 = vmatprep.subr.mxu0 0.0
        %2512 = vmatpush1.msra.mxu0 0.0
        %2513 = vmatprep.subr.mxu0 0.0
        %2514 = vmatpush1.msra.mxu0 0.0
        %2515 = vmatprep.subr.mxu0 0.0
        %2516 = vmatpush1.msra.mxu0 0.0
        %2517 = vmatprep.subr.mxu0 0.0
        %2518 = vmatpush1.msra.mxu0 0.0
        %2519 = vmatprep.subr.mxu0 0.0
        %2520 = vmatpush1.msra.mxu0 0.0
        %2521 = vmatprep.subr.mxu0 0.0
        %2522 = vmatpush1.msra.mxu0 0.0
        %2523 = vmatprep.subr.mxu0 0.0
        %2524 = vmatpush1.msra.mxu0 0.0
        %2525 = vmatprep.subr.mxu0 0.0
        %2526 = vmatpush1.msra.mxu0 0.0
        %2527 = vmatprep.subr.mxu0 0.0
        %2528 = vmatpush1.msra.mxu0 0.0
        %2529 = vmatprep.subr.mxu0 0.0
        %2530 = vmatpush1.msra.mxu0 0.0
        %2531 = vmatprep.subr.mxu0 0.0
        %2532 = vmatpush1.msra.mxu0 0.0
        %2533 = vmatprep.subr.mxu0 0.0
        %2534 = vmatpush1.msra.mxu0 0.0
        %2535 = vmatprep.subr.mxu0 0.0
        %2536 = vmatpush1.msra.mxu0 0.0
        %2537 = vmatprep.subr.mxu0 0.0
        %2538 = vmatpush1.msra.mxu0 0.0
        %2539 = vmatprep.subr.mxu0 0.0
        %2540 = vmatpush1.msra.mxu0 0.0
        %2541 = vmatprep.subr.mxu0 0.0
        %2542 = vmatpush1.msra.mxu0 0.0
        %2543 = vmatprep.mubr.f32.mxu0 0.0
        %2544 = vmatmul.mubr.f32.gmra.mrb[0].mxu0 %v2361
        %v2545 = vpop.f32.mrb[0].mxu0
        %v2546 = vadd.f32 %v2347, %v2545
        %v2547 = vpop.f32.mrb[0].mxu0
        %v2548 = vadd.f32 %v2347, %v2547
        %2549 = vmatprep.mubr.f32.mxu0 0.0
        %2550 = vmatmul.mubr.f32.gmra.mrb[0].mxu0 %v2364
        %v2551 = vpop.f32.mrb[0].mxu0
        %v2552 = vadd.f32 %v2352, %v2551
        %v2553 = vpop.f32.mrb[0].mxu0
        %v2554 = vadd.f32 %v2352, %v2553
        %2555 = vmatprep.mubr.f32.mxu0 0.0
        %2556 = vmatmul.mubr.f32.gmra.mrb[0].mxu0 %v2367
        %v2557 = vpop.f32.mrb[0].mxu0
        %v2558 = vadd.f32 %v2357, %v2557
        %v2559 = vpop.f32.mrb[0].mxu0
        %v2560 = vadd.f32 %v2357, %v2559
        %2561 = vdwg.mxu0
        %2562 = vmatprep.subr.mxu0 %v1995
        %2563 = vmatpush1.msra.mxu0 %v1994
        %2564 = vmatprep.subr.mxu0 %v2317
        %2565 = vmatpush1.msra.mxu0 %v2316
        %2566 = vmatprep.subr.mxu0 %v2330
        %2567 = vmatpush1.msra.mxu0 %v2329
        %2568 = vmatprep.subr.mxu0 %v2380
        %2569 = vmatpush1.msra.mxu0 %v2378
        %2570 = vmatprep.subr.mxu0 0.0
        %2571 = vmatpush1.msra.mxu0 0.0
        %2572 = vmatprep.subr.mxu0 0.0
        %2573 = vmatpush1.msra.mxu0 0.0
        %2574 = vmatprep.subr.mxu0 0.0
        %2575 = vmatpush1.msra.mxu0 0.0
        %2576 = vmatprep.subr.mxu0 0.0
        %2577 = vmatpush1.msra.mxu0 0.0
        %2578 = vmatprep.subr.mxu0 0.0
        %2579 = vmatpush1.msra.mxu0 0.0
        %2580 = vmatprep.subr.mxu0 0.0
        %2581 = vmatpush1.msra.mxu0 0.0
        %2582 = vmatprep.subr.mxu0 0.0
        %2583 = vmatpush1.msra.mxu0 0.0
        %2584 = vmatprep.subr.mxu0 0.0
        %2585 = vmatpush1.msra.mxu0 0.0
        %2586 = vmatprep.subr.mxu0 0.0
        %2587 = vmatpush1.msra.mxu0 0.0
        %2588 = vmatprep.subr.mxu0 0.0
        %2589 = vmatpush1.msra.mxu0 0.0
        %2590 = vmatprep.subr.mxu0 0.0
        %2591 = vmatpush1.msra.mxu0 0.0
        %2592 = vmatprep.subr.mxu0 0.0
        %2593 = vmatpush1.msra.mxu0 0.0
        %2594 = vmatprep.subr.mxu0 0.0
        %2595 = vmatpush1.msra.mxu0 0.0
        %2596 = vmatprep.subr.mxu0 0.0
        %2597 = vmatpush1.msra.mxu0 0.0
        %2598 = vmatprep.subr.mxu0 0.0
        %2599 = vmatpush1.msra.mxu0 0.0
        %2600 = vmatprep.subr.mxu0 0.0
        %2601 = vmatpush1.msra.mxu0 0.0
        %2602 = vmatprep.subr.mxu0 0.0
        %2603 = vmatpush1.msra.mxu0 0.0
        %2604 = vmatprep.subr.mxu0 0.0
        %2605 = vmatpush1.msra.mxu0 0.0
        %2606 = vmatprep.subr.mxu0 0.0
        %2607 = vmatpush1.msra.mxu0 0.0
        %2608 = vmatprep.subr.mxu0 0.0
        %2609 = vmatpush1.msra.mxu0 0.0
        %2610 = vmatprep.subr.mxu0 0.0
        %2611 = vmatpush1.msra.mxu0 0.0
        %2612 = vmatprep.subr.mxu0 0.0
        %2613 = vmatpush1.msra.mxu0 0.0
        %2614 = vmatprep.subr.mxu0 0.0
        %2615 = vmatpush1.msra.mxu0 0.0
        %2616 = vmatprep.subr.mxu0 0.0
        %2617 = vmatpush1.msra.mxu0 0.0
        %2618 = vmatprep.subr.mxu0 0.0
        %2619 = vmatpush1.msra.mxu0 0.0
        %2620 = vmatprep.subr.mxu0 0.0
        %2621 = vmatpush1.msra.mxu0 0.0
        %2622 = vmatprep.subr.mxu0 0.0
        %2623 = vmatpush1.msra.mxu0 0.0
        %2624 = vmatprep.subr.mxu0 0.0
        %2625 = vmatpush1.msra.mxu0 0.0
        %2626 = vmatprep.mubr.f32.mxu0 0.0
        %2627 = vmatmul.mubr.f32.gmra.mrb[0].mxu0 %v2361
        %v2628 = vpop.f32.mrb[0].mxu0
        %v2629 = vadd.f32 %v2347, %v2628
        %v2630 = vpop.f32.mrb[0].mxu0
        %v2631 = vadd.f32 %v2347, %v2630
        %2632 = vmatprep.mubr.f32.mxu0 0.0
        %2633 = vmatmul.mubr.f32.gmra.mrb[0].mxu0 %v2364
        %v2634 = vpop.f32.mrb[0].mxu0
        %v2635 = vadd.f32 %v2352, %v2634
        %v2636 = vpop.f32.mrb[0].mxu0
        %v2637 = vadd.f32 %v2352, %v2636
        %2638 = vmatprep.mubr.f32.mxu0 0.0
        %2639 = vmatmul.mubr.f32.gmra.mrb[0].mxu0 %v2367
        %v2640 = vpop.f32.mrb[0].mxu0
        %v2641 = vadd.f32 %v2357, %v2640
        %v2642 = vpop.f32.mrb[0].mxu0
        %v2643 = vadd.f32 %v2357, %v2642
        %2644 = vdwg.mxu0
        %2645 = vmatprep.subr.mxu0 %v1997
        %2646 = vmatpush1.msra.mxu0 %v1996
        %2647 = vmatprep.subr.mxu0 %v2319
        %2648 = vmatpush1.msra.mxu0 %v2318
        %2649 = vmatprep.subr.mxu0 %v2332
        %2650 = vmatpush1.msra.mxu0 %v2331
        %2651 = vmatprep.subr.mxu0 %v2384
        %2652 = vmatpush1.msra.mxu0 %v2382
        %2653 = vmatprep.subr.mxu0 0.0
        %2654 = vmatpush1.msra.mxu0 0.0
        %2655 = vmatprep.subr.mxu0 0.0
        %2656 = vmatpush1.msra.mxu0 0.0
        %2657 = vmatprep.subr.mxu0 0.0
        %2658 = vmatpush1.msra.mxu0 0.0
        %2659 = vmatprep.subr.mxu0 0.0
        %2660 = vmatpush1.msra.mxu0 0.0
        %2661 = vmatprep.subr.mxu0 0.0
        %2662 = vmatpush1.msra.mxu0 0.0
        %2663 = vmatprep.subr.mxu0 0.0
        %2664 = vmatpush1.msra.mxu0 0.0
        %2665 = vmatprep.subr.mxu0 0.0
        %2666 = vmatpush1.msra.mxu0 0.0
        %2667 = vmatprep.subr.mxu0 0.0
        %2668 = vmatpush1.msra.mxu0 0.0
        %2669 = vmatprep.subr.mxu0 0.0
        %2670 = vmatpush1.msra.mxu0 0.0
        %2671 = vmatprep.subr.mxu0 0.0
        %2672 = vmatpush1.msra.mxu0 0.0
        %2673 = vmatprep.subr.mxu0 0.0
        %2674 = vmatpush1.msra.mxu0 0.0
        %2675 = vmatprep.subr.mxu0 0.0
        %2676 = vmatpush1.msra.mxu0 0.0
        %2677 = vmatprep.subr.mxu0 0.0
        %2678 = vmatpush1.msra.mxu0 0.0
        %2679 = vmatprep.subr.mxu0 0.0
        %2680 = vmatpush1.msra.mxu0 0.0
        %2681 = vmatprep.subr.mxu0 0.0
        %2682 = vmatpush1.msra.mxu0 0.0
        %2683 = vmatprep.subr.mxu0 0.0
        %2684 = vmatpush1.msra.mxu0 0.0
        %2685 = vmatprep.subr.mxu0 0.0
        %2686 = vmatpush1.msra.mxu0 0.0
        %2687 = vmatprep.subr.mxu0 0.0
        %2688 = vmatpush1.msra.mxu0 0.0
        %2689 = vmatprep.subr.mxu0 0.0
        %2690 = vmatpush1.msra.mxu0 0.0
        %2691 = vmatprep.subr.mxu0 0.0
        %2692 = vmatpush1.msra.mxu0 0.0
        %2693 = vmatprep.subr.mxu0 0.0
        %2694 = vmatpush1.msra.mxu0 0.0
        %2695 = vmatprep.subr.mxu0 0.0
        %2696 = vmatpush1.msra.mxu0 0.0
        %2697 = vmatprep.subr.mxu0 0.0
        %2698 = vmatpush1.msra.mxu0 0.0
        %2699 = vmatprep.subr.mxu0 0.0
        %2700 = vmatpush1.msra.mxu0 0.0
        %2701 = vmatprep.subr.mxu0 0.0
        %2702 = vmatpush1.msra.mxu0 0.0
        %2703 = vmatprep.subr.mxu0 0.0
        %2704 = vmatpush1.msra.mxu0 0.0
        %2705 = vmatprep.subr.mxu0 0.0
        %2706 = vmatpush1.msra.mxu0 0.0
        %2707 = vmatprep.subr.mxu0 0.0
        %2708 = vmatpush1.msra.mxu0 0.0
        %2709 = vmatprep.mubr.f32.mxu0 0.0
        %2710 = vmatmul.mubr.f32.gmra.mrb[0].mxu0 %v2361
        %v2711 = vpop.f32.mrb[0].mxu0
        %v2712 = vadd.f32 %v2347, %v2711
        %v2713 = vpop.f32.mrb[0].mxu0
        %v2714 = vadd.f32 %v2347, %v2713
        %2715 = vmatprep.mubr.f32.mxu0 0.0
        %2716 = vmatmul.mubr.f32.gmra.mrb[0].mxu0 %v2364
        %v2717 = vpop.f32.mrb[0].mxu0
        %v2718 = vadd.f32 %v2352, %v2717
        %v2719 = vpop.f32.mrb[0].mxu0
        %v2720 = vadd.f32 %v2352, %v2719
        %2721 = vmatprep.mubr.f32.mxu0 0.0
        %2722 = vmatmul.mubr.f32.gmra.mrb[0].mxu0 %v2367
        %v2723 = vpop.f32.mrb[0].mxu0
        %v2724 = vadd.f32 %v2357, %v2723
        %v2725 = vpop.f32.mrb[0].mxu0
        %v2726 = vadd.f32 %v2357, %v2725
        %2727 = vdwg.mxu0
        %2728 = vmatprep.subr.mxu0 %v1999
        %2729 = vmatpush1.msra.mxu0 %v1998
        %2730 = vmatprep.subr.mxu0 %v2321
        %2731 = vmatpush1.msra.mxu0 %v2320
        %2732 = vmatprep.subr.mxu0 %v2334
        %2733 = vmatpush1.msra.mxu0 %v2333
        %2734 = vmatprep.subr.mxu0 %v2388
        %2735 = vmatpush1.msra.mxu0 %v2386
        %2736 = vmatprep.subr.mxu0 0.0
        %2737 = vmatpush1.msra.mxu0 0.0
        %2738 = vmatprep.subr.mxu0 0.0
        %2739 = vmatpush1.msra.mxu0 0.0
        %2740 = vmatprep.subr.mxu0 0.0
        %2741 = vmatpush1.msra.mxu0 0.0
        %2742 = vmatprep.subr.mxu0 0.0
        %2743 = vmatpush1.msra.mxu0 0.0
        %2744 = vmatprep.subr.mxu0 0.0
        %2745 = vmatpush1.msra.mxu0 0.0
        %2746 = vmatprep.subr.mxu0 0.0
        %2747 = vmatpush1.msra.mxu0 0.0
        %2748 = vmatprep.subr.mxu0 0.0
        %2749 = vmatpush1.msra.mxu0 0.0
        %2750 = vmatprep.subr.mxu0 0.0
        %2751 = vmatpush1.msra.mxu0 0.0
        %2752 = vmatprep.subr.mxu0 0.0
        %2753 = vmatpush1.msra.mxu0 0.0
        %2754 = vmatprep.subr.mxu0 0.0
        %2755 = vmatpush1.msra.mxu0 0.0
        %2756 = vmatprep.subr.mxu0 0.0
        %2757 = vmatpush1.msra.mxu0 0.0
        %2758 = vmatprep.subr.mxu0 0.0
        %2759 = vmatpush1.msra.mxu0 0.0
        %2760 = vmatprep.subr.mxu0 0.0
        %2761 = vmatpush1.msra.mxu0 0.0
        %2762 = vmatprep.subr.mxu0 0.0
        %2763 = vmatpush1.msra.mxu0 0.0
        %2764 = vmatprep.subr.mxu0 0.0
        %2765 = vmatpush1.msra.mxu0 0.0
        %2766 = vmatprep.subr.mxu0 0.0
        %2767 = vmatpush1.msra.mxu0 0.0
        %2768 = vmatprep.subr.mxu0 0.0
        %2769 = vmatpush1.msra.mxu0 0.0
        %2770 = vmatprep.subr.mxu0 0.0
        %2771 = vmatpush1.msra.mxu0 0.0
        %2772 = vmatprep.subr.mxu0 0.0
        %2773 = vmatpush1.msra.mxu0 0.0
        %2774 = vmatprep.subr.mxu0 0.0
        %2775 = vmatpush1.msra.mxu0 0.0
        %2776 = vmatprep.subr.mxu0 0.0
        %2777 = vmatpush1.msra.mxu0 0.0
        %2778 = vmatprep.subr.mxu0 0.0
        %2779 = vmatpush1.msra.mxu0 0.0
        %2780 = vmatprep.subr.mxu0 0.0
        %2781 = vmatpush1.msra.mxu0 0.0
        %2782 = vmatprep.subr.mxu0 0.0
        %2783 = vmatpush1.msra.mxu0 0.0
        %2784 = vmatprep.subr.mxu0 0.0
        %2785 = vmatpush1.msra.mxu0 0.0
        %2786 = vmatprep.subr.mxu0 0.0
        %2787 = vmatpush1.msra.mxu0 0.0
        %2788 = vmatprep.subr.mxu0 0.0
        %2789 = vmatpush1.msra.mxu0 0.0
        %2790 = vmatprep.subr.mxu0 0.0
        %2791 = vmatpush1.msra.mxu0 0.0
        %2792 = vmatprep.mubr.f32.mxu0 0.0
        %2793 = vmatmul.mubr.f32.gmra.mrb[0].mxu0 %v2361
        %v2794 = vpop.f32.mrb[0].mxu0
        %v2795 = vadd.f32 %v2347, %v2794
        %v2796 = vpop.f32.mrb[0].mxu0
        %v2797 = vadd.f32 %v2347, %v2796
        %2798 = vmatprep.mubr.f32.mxu0 0.0
        %2799 = vmatmul.mubr.f32.gmra.mrb[0].mxu0 %v2364
        %v2800 = vpop.f32.mrb[0].mxu0
        %v2801 = vadd.f32 %v2352, %v2800
        %v2802 = vpop.f32.mrb[0].mxu0
        %v2803 = vadd.f32 %v2352, %v2802
        %2804 = vmatprep.mubr.f32.mxu0 0.0
        %2805 = vmatmul.mubr.f32.gmra.mrb[0].mxu0 %v2367
        %v2806 = vpop.f32.mrb[0].mxu0
        %v2807 = vadd.f32 %v2357, %v2806
        %v2808 = vpop.f32.mrb[0].mxu0
        %v2809 = vadd.f32 %v2357, %v2808
        %2810 = vdwg.mxu0
        %2811 = vmatprep.subr.mxu0 %v2001
        %2812 = vmatpush1.msra.mxu0 %v2000
        %2813 = vmatprep.subr.mxu0 %v2323
        %2814 = vmatpush1.msra.mxu0 %v2322
        %2815 = vmatprep.subr.mxu0 %v2336
        %2816 = vmatpush1.msra.mxu0 %v2335
        %2817 = vmatprep.subr.mxu0 %v2392
        %2818 = vmatpush1.msra.mxu0 %v2390
        %2819 = vmatprep.subr.mxu0 0.0
        %2820 = vmatpush1.msra.mxu0 0.0
        %2821 = vmatprep.subr.mxu0 0.0
        %2822 = vmatpush1.msra.mxu0 0.0
        %2823 = vmatprep.subr.mxu0 0.0
        %2824 = vmatpush1.msra.mxu0 0.0
        %2825 = vmatprep.subr.mxu0 0.0
        %2826 = vmatpush1.msra.mxu0 0.0
        %2827 = vmatprep.subr.mxu0 0.0
        %2828 = vmatpush1.msra.mxu0 0.0
        %2829 = vmatprep.subr.mxu0 0.0
        %2830 = vmatpush1.msra.mxu0 0.0
        %2831 = vmatprep.subr.mxu0 0.0
        %2832 = vmatpush1.msra.mxu0 0.0
        %2833 = vmatprep.subr.mxu0 0.0
        %2834 = vmatpush1.msra.mxu0 0.0
        %2835 = vmatprep.subr.mxu0 0.0
        %2836 = vmatpush1.msra.mxu0 0.0
        %2837 = vmatprep.subr.mxu0 0.0
        %2838 = vmatpush1.msra.mxu0 0.0
        %2839 = vmatprep.subr.mxu0 0.0
        %2840 = vmatpush1.msra.mxu0 0.0
        %2841 = vmatprep.subr.mxu0 0.0
        %2842 = vmatpush1.msra.mxu0 0.0
        %2843 = vmatprep.subr.mxu0 0.0
        %2844 = vmatpush1.msra.mxu0 0.0
        %2845 = vmatprep.subr.mxu0 0.0
        %2846 = vmatpush1.msra.mxu0 0.0
        %2847 = vmatprep.subr.mxu0 0.0
        %2848 = vmatpush1.msra.mxu0 0.0
        %2849 = vmatprep.subr.mxu0 0.0
        %2850 = vmatpush1.msra.mxu0 0.0
        %2851 = vmatprep.subr.mxu0 0.0
        %2852 = vmatpush1.msra.mxu0 0.0
        %2853 = vmatprep.subr.mxu0 0.0
        %2854 = vmatpush1.msra.mxu0 0.0
        %2855 = vmatprep.subr.mxu0 0.0
        %2856 = vmatpush1.msra.mxu0 0.0
        %2857 = vmatprep.subr.mxu0 0.0
        %2858 = vmatpush1.msra.mxu0 0.0
        %2859 = vmatprep.subr.mxu0 0.0
        %2860 = vmatpush1.msra.mxu0 0.0
        %2861 = vmatprep.subr.mxu0 0.0
        %2862 = vmatpush1.msra.mxu0 0.0
        %2863 = vmatprep.subr.mxu0 0.0
        %2864 = vmatpush1.msra.mxu0 0.0
        %2865 = vmatprep.subr.mxu0 0.0
        %2866 = vmatpush1.msra.mxu0 0.0
        %2867 = vmatprep.subr.mxu0 0.0
        %2868 = vmatpush1.msra.mxu0 0.0
        %2869 = vmatprep.subr.mxu0 0.0
        %2870 = vmatpush1.msra.mxu0 0.0
        %2871 = vmatprep.subr.mxu0 0.0
        %2872 = vmatpush1.msra.mxu0 0.0
        %2873 = vmatprep.subr.mxu0 0.0
        %2874 = vmatpush1.msra.mxu0 0.0
        %2875 = vmatprep.mubr.f32.mxu0 0.0
        %2876 = vmatmul.mubr.f32.gmra.mrb[0].mxu0 %v2361
        %v2877 = vpop.f32.mrb[0].mxu0
        %v2878 = vadd.f32 %v2347, %v2877
        %v2879 = vpop.f32.mrb[0].mxu0
        %v2880 = vadd.f32 %v2347, %v2879
        %2881 = vmatprep.mubr.f32.mxu0 0.0
        %2882 = vmatmul.mubr.f32.gmra.mrb[0].mxu0 %v2364
        %v2883 = vpop.f32.mrb[0].mxu0
        %v2884 = vadd.f32 %v2352, %v2883
        %v2885 = vpop.f32.mrb[0].mxu0
        %v2886 = vadd.f32 %v2352, %v2885
        %2887 = vmatprep.mubr.f32.mxu0 0.0
        %2888 = vmatmul.mubr.f32.gmra.mrb[0].mxu0 %v2367
        %v2889 = vpop.f32.mrb[0].mxu0
        %v2890 = vadd.f32 %v2357, %v2889
        %v2891 = vpop.f32.mrb[0].mxu0
        %v2892 = vadd.f32 %v2357, %v2891
        %2893 = vdwg.mxu0
        %2894 = vmatprep.subr.mxu0 0.0
        %2895 = vmatpush1.msra.mxu0 %v2002
        %2896 = vmatprep.subr.mxu0 0.0
        %2897 = vmatpush1.msra.mxu0 %v2324
        %2898 = vmatprep.subr.mxu0 0.0
        %2899 = vmatpush1.msra.mxu0 %v2337
        %2900 = vmatprep.subr.mxu0 0.0
        %2901 = vmatpush1.msra.mxu0 %v2394
        %2902 = vmatprep.subr.mxu0 0.0
        %2903 = vmatpush1.msra.mxu0 0.0
        %2904 = vmatprep.subr.mxu0 0.0
        %2905 = vmatpush1.msra.mxu0 0.0
        %2906 = vmatprep.subr.mxu0 0.0
        %2907 = vmatpush1.msra.mxu0 0.0
        %2908 = vmatprep.subr.mxu0 0.0
        %2909 = vmatpush1.msra.mxu0 0.0
        %2910 = vmatprep.subr.mxu0 0.0
        %2911 = vmatpush1.msra.mxu0 0.0
        %2912 = vmatprep.subr.mxu0 0.0
        %2913 = vmatpush1.msra.mxu0 0.0
        %2914 = vmatprep.subr.mxu0 0.0
        %2915 = vmatpush1.msra.mxu0 0.0
        %2916 = vmatprep.subr.mxu0 0.0
        %2917 = vmatpush1.msra.mxu0 0.0
        %2918 = vmatprep.subr.mxu0 0.0
        %2919 = vmatpush1.msra.mxu0 0.0
        %2920 = vmatprep.subr.mxu0 0.0
        %2921 = vmatpush1.msra.mxu0 0.0
        %2922 = vmatprep.subr.mxu0 0.0
        %2923 = vmatpush1.msra.mxu0 0.0
        %2924 = vmatprep.subr.mxu0 0.0
        %2925 = vmatpush1.msra.mxu0 0.0
        %2926 = vmatprep.subr.mxu0 0.0
        %2927 = vmatpush1.msra.mxu0 0.0
        %2928 = vmatprep.subr.mxu0 0.0
        %2929 = vmatpush1.msra.mxu0 0.0
        %2930 = vmatprep.subr.mxu0 0.0
        %2931 = vmatpush1.msra.mxu0 0.0
        %2932 = vmatprep.subr.mxu0 0.0
        %2933 = vmatpush1.msra.mxu0 0.0
        %2934 = vmatprep.subr.mxu0 0.0
        %2935 = vmatpush1.msra.mxu0 0.0
        %2936 = vmatprep.subr.mxu0 0.0
        %2937 = vmatpush1.msra.mxu0 0.0
        %2938 = vmatprep.subr.mxu0 0.0
        %2939 = vmatpush1.msra.mxu0 0.0
        %2940 = vmatprep.subr.mxu0 0.0
        %2941 = vmatpush1.msra.mxu0 0.0
        %2942 = vmatprep.subr.mxu0 0.0
        %2943 = vmatpush1.msra.mxu0 0.0
        %2944 = vmatprep.subr.mxu0 0.0
        %2945 = vmatpush1.msra.mxu0 0.0
        %2946 = vmatprep.subr.mxu0 0.0
        %2947 = vmatpush1.msra.mxu0 0.0
        %2948 = vmatprep.subr.mxu0 0.0
        %2949 = vmatpush1.msra.mxu0 0.0
        %2950 = vmatprep.subr.mxu0 0.0
        %2951 = vmatpush1.msra.mxu0 0.0
        %2952 = vmatprep.subr.mxu0 0.0
        %2953 = vmatpush1.msra.mxu0 0.0
        %2954 = vmatprep.subr.mxu0 0.0
        %2955 = vmatpush1.msra.mxu0 0.0
        %2956 = vmatprep.subr.mxu0 0.0
        %2957 = vmatpush1.msra.mxu0 0.0
        %2958 = vmatprep.mubr.f32.mxu0 0.0
        %2959 = vmatmul.mubr.f32.gmra.mrb[0].mxu0 %v2361
        %v2960 = vpop.f32.mrb[0].mxu0
        %v2961 = vadd.f32 %v2347, %v2960
        %v2962 = vpop.f32.mrb[0].mxu0
        %2963 = vmatprep.mubr.f32.mxu0 0.0
        %2964 = vmatmul.mubr.f32.gmra.mrb[0].mxu0 %v2364
        %v2965 = vpop.f32.mrb[0].mxu0
        %v2966 = vadd.f32 %v2352, %v2965
        %v2967 = vpop.f32.mrb[0].mxu0
        %2968 = vmatprep.mubr.f32.mxu0 0.0
        %2969 = vmatmul.mubr.f32.gmra.mrb[0].mxu0 %v2367
        %v2970 = vpop.f32.mrb[0].mxu0
        %v2971 = vadd.f32 %v2357, %v2970
        %v2972 = vpop.f32.mrb[0].mxu0
        %2973 = vdwg.mxu0
        %v2974 = vmax.f32 %v2463, 0.0
        %v2975 = vmax.f32 %v2465, 0.0
        %v2976 = vmax.f32 %v2546, 0.0
        %v2977 = vmax.f32 %v2548, 0.0
        %v2978 = vmax.f32 %v2629, 0.0
        %v2979 = vmax.f32 %v2631, 0.0
        %v2980 = vmax.f32 %v2712, 0.0
        %v2981 = vmax.f32 %v2714, 0.0
        %v2982 = vmax.f32 %v2795, 0.0
        %v2983 = vmax.f32 %v2797, 0.0
        %v2984 = vmax.f32 %v2878, 0.0
        %v2985 = vmax.f32 %v2880, 0.0
        %v2986 = vmax.f32 %v2961, 0.0
        %v2987 = vmax.f32 %v2469, 0.0
        %v2988 = vmax.f32 %v2471, 0.0
        %v2989 = vmax.f32 %v2552, 0.0
        %v2990 = vmax.f32 %v2554, 0.0
        %v2991 = vmax.f32 %v2635, 0.0
        %v2992 = vmax.f32 %v2637, 0.0
        %v2993 = vmax.f32 %v2718, 0.0
        %v2994 = vmax.f32 %v2720, 0.0
        %v2995 = vmax.f32 %v2801, 0.0
        %v2996 = vmax.f32 %v2803, 0.0
        %v2997 = vmax.f32 %v2884, 0.0
        %v2998 = vmax.f32 %v2886, 0.0
        %v2999 = vmax.f32 %v2966, 0.0
        %v3000 = vmax.f32 %v2475, 0.0
        %v3001 = vmax.f32 %v2477, 0.0
        %v3002 = vmax.f32 %v2558, 0.0
        %v3003 = vmax.f32 %v2560, 0.0
        %v3004 = vmax.f32 %v2641, 0.0
        %v3005 = vmax.f32 %v2643, 0.0
        %v3006 = vmax.f32 %v2724, 0.0
        %v3007 = vmax.f32 %v2726, 0.0
        %v3008 = vmax.f32 %v2807, 0.0
        %v3009 = vmax.f32 %v2809, 0.0
        %v3010 = vmax.f32 %v2890, 0.0
        %v3011 = vmax.f32 %v2892, 0.0
        %v3012 = vmax.f32 %v2971, 0.0
        %3052 = vrot.lane.b32.xlu0 %v2974, 126
        %v3053 = vpop.permute.xlu0 %3052
        %3054 = vrot.lane.b32.xlu0 %v2975, 126
        %v3055 = vpop.permute.xlu0 %3054
        %3056 = vrot.lane.b32.xlu0 %v2976, 126
        %v3057 = vpop.permute.xlu0 %3056
        %3058 = vrot.lane.b32.xlu0 %v2977, 126
        %v3059 = vpop.permute.xlu0 %3058
        %3060 = vrot.lane.b32.xlu0 %v2978, 126
        %v3061 = vpop.permute.xlu0 %3060
        %3062 = vrot.lane.b32.xlu0 %v2979, 126
        %v3063 = vpop.permute.xlu0 %3062
        %3064 = vrot.lane.b32.xlu0 %v2980, 126
        %v3065 = vpop.permute.xlu0 %3064
        %3066 = vrot.lane.b32.xlu0 %v2981, 126
        %v3067 = vpop.permute.xlu0 %3066
        %3068 = vrot.lane.b32.xlu0 %v2982, 126
        %v3069 = vpop.permute.xlu0 %3068
        %3070 = vrot.lane.b32.xlu0 %v2983, 126
        %v3071 = vpop.permute.xlu0 %3070
        %3072 = vrot.lane.b32.xlu0 %v2984, 126
        %v3073 = vpop.permute.xlu0 %3072
        %3074 = vrot.lane.b32.xlu0 %v2985, 126
        %v3075 = vpop.permute.xlu0 %3074
        %3076 = vrot.lane.b32.xlu0 %v2986, 126
        %v3077 = vpop.permute.xlu0 %3076
        %3078 = vrot.lane.b32.xlu0 %v2987, 126
        %v3079 = vpop.permute.xlu0 %3078
        %3080 = vrot.lane.b32.xlu0 %v2988, 126
        %v3081 = vpop.permute.xlu0 %3080
        %3082 = vrot.lane.b32.xlu0 %v2989, 126
        %v3083 = vpop.permute.xlu0 %3082
        %3084 = vrot.lane.b32.xlu0 %v2990, 126
        %v3085 = vpop.permute.xlu0 %3084
        %3086 = vrot.lane.b32.xlu0 %v2991, 126
        %v3087 = vpop.permute.xlu0 %3086
        %3088 = vrot.lane.b32.xlu0 %v2992, 126
        %v3089 = vpop.permute.xlu0 %3088
        %3090 = vrot.lane.b32.xlu0 %v2993, 126
        %v3091 = vpop.permute.xlu0 %3090
        %3092 = vrot.lane.b32.xlu0 %v2994, 126
        %v3093 = vpop.permute.xlu0 %3092
        %3094 = vrot.lane.b32.xlu0 %v2995, 126
        %v3095 = vpop.permute.xlu0 %3094
        %3096 = vrot.lane.b32.xlu0 %v2996, 126
        %v3097 = vpop.permute.xlu0 %3096
        %3098 = vrot.lane.b32.xlu0 %v2997, 126
        %v3099 = vpop.permute.xlu0 %3098
        %3100 = vrot.lane.b32.xlu0 %v2998, 126
        %v3101 = vpop.permute.xlu0 %3100
        %3102 = vrot.lane.b32.xlu0 %v2999, 126
        %v3103 = vpop.permute.xlu0 %3102
        %3104 = vrot.lane.b32.xlu0 %v3000, 126
        %v3105 = vpop.permute.xlu0 %3104
        %3106 = vrot.lane.b32.xlu0 %v3001, 126
        %v3107 = vpop.permute.xlu0 %3106
        %3108 = vrot.lane.b32.xlu0 %v3002, 126
        %v3109 = vpop.permute.xlu0 %3108
        %3110 = vrot.lane.b32.xlu0 %v3003, 126
        %v3111 = vpop.permute.xlu0 %3110
        %3112 = vrot.lane.b32.xlu0 %v3004, 126
        %v3113 = vpop.permute.xlu0 %3112
        %3114 = vrot.lane.b32.xlu0 %v3005, 126
        %v3115 = vpop.permute.xlu0 %3114
        %3116 = vrot.lane.b32.xlu0 %v3006, 126
        %v3117 = vpop.permute.xlu0 %3116
        %3118 = vrot.lane.b32.xlu0 %v3007, 126
        %v3119 = vpop.permute.xlu0 %3118
        %3120 = vrot.lane.b32.xlu0 %v3008, 126
        %v3121 = vpop.permute.xlu0 %3120
        %3122 = vrot.lane.b32.xlu0 %v3009, 126
        %v3123 = vpop.permute.xlu0 %3122
        %3124 = vrot.lane.b32.xlu0 %v3010, 126
        %v3125 = vpop.permute.xlu0 %3124
        %3126 = vrot.lane.b32.xlu0 %v3011, 126
        %v3127 = vpop.permute.xlu0 %3126
        %3128 = vrot.lane.b32.xlu0 %v3012, 126
        %v3129 = vpop.permute.xlu0 %3128
        %v3130 = vsel %vm1184, %v3053, %v3055
        %v3131 = vsel %vm1184, %v3055, %v3057
        %v3132 = vsel %vm1184, %v3057, %v3059
        %v3133 = vsel %vm1184, %v3059, %v3061
        %v3134 = vsel %vm1184, %v3061, %v3063
        %v3135 = vsel %vm1184, %v3063, %v3065
        %v3136 = vsel %vm1184, %v3065, %v3067
        %v3137 = vsel %vm1184, %v3067, %v3069
        %v3138 = vsel %vm1184, %v3069, %v3071
        %v3139 = vsel %vm1184, %v3071, %v3073
        %v3140 = vsel %vm1184, %v3073, %v3075
        %v3141 = vsel %vm1184, %v3075, %v3077
        %v3142 = vsel %vm1184, %v3079, %v3081
        %v3143 = vsel %vm1184, %v3081, %v3083
        %v3144 = vsel %vm1184, %v3083, %v3085
        %v3145 = vsel %vm1184, %v3085, %v3087
        %v3146 = vsel %vm1184, %v3087, %v3089
        %v3147 = vsel %vm1184, %v3089, %v3091
        %v3148 = vsel %vm1184, %v3091, %v3093
        %v3149 = vsel %vm1184, %v3093, %v3095
        %v3150 = vsel %vm1184, %v3095, %v3097
        %v3151 = vsel %vm1184, %v3097, %v3099
        %v3152 = vsel %vm1184, %v3099, %v3101
        %v3153 = vsel %vm1184, %v3101, %v3103
        %v3154 = vsel %vm1184, %v3105, %v3107
        %v3155 = vsel %vm1184, %v3107, %v3109
        %v3156 = vsel %vm1184, %v3109, %v3111
        %v3157 = vsel %vm1184, %v3111, %v3113
        %v3158 = vsel %vm1184, %v3113, %v3115
        %v3159 = vsel %vm1184, %v3115, %v3117
        %v3160 = vsel %vm1184, %v3117, %v3119
        %v3161 = vsel %vm1184, %v3119, %v3121
        %v3162 = vsel %vm1184, %v3121, %v3123
        %v3163 = vsel %vm1184, %v3123, %v3125
        %v3164 = vsel %vm1184, %v3125, %v3127
        %v3165 = vsel %vm1184, %v3127, %v3129
        %v3205 = vmax.f32 %v2974, %v3130
        %v3206 = vmax.f32 %v2975, %v3131
        %v3207 = vmax.f32 %v2976, %v3132
        %v3208 = vmax.f32 %v2977, %v3133
        %v3209 = vmax.f32 %v2978, %v3134
        %v3210 = vmax.f32 %v2979, %v3135
        %v3211 = vmax.f32 %v2980, %v3136
        %v3212 = vmax.f32 %v2981, %v3137
        %v3213 = vmax.f32 %v2982, %v3138
        %v3214 = vmax.f32 %v2983, %v3139
        %v3215 = vmax.f32 %v2984, %v3140
        %v3216 = vmax.f32 %v2985, %v3141
        %v3217 = vmax.f32 %v2986, %v3077
        %v3218 = vmax.f32 %v2987, %v3142
        %v3219 = vmax.f32 %v2988, %v3143
        %v3220 = vmax.f32 %v2989, %v3144
        %v3221 = vmax.f32 %v2990, %v3145
        %v3222 = vmax.f32 %v2991, %v3146
        %v3223 = vmax.f32 %v2992, %v3147
        %v3224 = vmax.f32 %v2993, %v3148
        %v3225 = vmax.f32 %v2994, %v3149
        %v3226 = vmax.f32 %v2995, %v3150
        %v3227 = vmax.f32 %v2996, %v3151
        %v3228 = vmax.f32 %v2997, %v3152
        %v3229 = vmax.f32 %v2998, %v3153
        %v3230 = vmax.f32 %v2999, %v3103
        %v3231 = vmax.f32 %v3000, %v3154
        %v3232 = vmax.f32 %v3001, %v3155
        %v3233 = vmax.f32 %v3002, %v3156
        %v3234 = vmax.f32 %v3003, %v3157
        %v3235 = vmax.f32 %v3004, %v3158
        %v3236 = vmax.f32 %v3005, %v3159
        %v3237 = vmax.f32 %v3006, %v3160
        %v3238 = vmax.f32 %v3007, %v3161
        %v3239 = vmax.f32 %v3008, %v3162
        %v3240 = vmax.f32 %v3009, %v3163
        %v3241 = vmax.f32 %v3010, %v3164
        %v3242 = vmax.f32 %v3011, %v3165
        %v3243 = vmax.f32 %v3012, %v3129
        %v3283 = vrot.slane %v3205, 4
        %v3284 = vrot.slane %v3206, 4
        %v3285 = vrot.slane %v3207, 4
        %v3286 = vrot.slane %v3208, 4
        %v3287 = vrot.slane %v3209, 4
        %v3288 = vrot.slane %v3210, 4
        %v3289 = vrot.slane %v3211, 4
        %v3290 = vrot.slane %v3212, 4
        %v3291 = vrot.slane %v3213, 4
        %v3292 = vrot.slane %v3214, 4
        %v3293 = vrot.slane %v3215, 4
        %v3294 = vrot.slane %v3216, 4
        %v3295 = vrot.slane %v3217, 4
        %v3296 = vrot.slane %v3218, 4
        %v3297 = vsel %vm544, %v3283, %v3296
        %v3298 = vrot.slane %v3219, 4
        %v3299 = vsel %vm544, %v3284, %v3298
        %v3300 = vrot.slane %v3220, 4
        %v3301 = vsel %vm544, %v3285, %v3300
        %v3302 = vrot.slane %v3221, 4
        %v3303 = vsel %vm544, %v3286, %v3302
        %v3304 = vrot.slane %v3222, 4
        %v3305 = vsel %vm544, %v3287, %v3304
        %v3306 = vrot.slane %v3223, 4
        %v3307 = vsel %vm544, %v3288, %v3306
        %v3308 = vrot.slane %v3224, 4
        %v3309 = vsel %vm544, %v3289, %v3308
        %v3310 = vrot.slane %v3225, 4
        %v3311 = vsel %vm544, %v3290, %v3310
        %v3312 = vrot.slane %v3226, 4
        %v3313 = vsel %vm544, %v3291, %v3312
        %v3314 = vrot.slane %v3227, 4
        %v3315 = vsel %vm544, %v3292, %v3314
        %v3316 = vrot.slane %v3228, 4
        %v3317 = vsel %vm544, %v3293, %v3316
        %v3318 = vrot.slane %v3229, 4
        %v3319 = vsel %vm544, %v3294, %v3318
        %v3320 = vrot.slane %v3230, 4
        %v3321 = vsel %vm544, %v3295, %v3320
        %v3322 = vrot.slane %v3231, 4
        %v3323 = vsel %vm544, %v3296, %v3322
        %v3324 = vrot.slane %v3232, 4
        %v3325 = vsel %vm544, %v3298, %v3324
        %v3326 = vrot.slane %v3233, 4
        %v3327 = vsel %vm544, %v3300, %v3326
        %v3328 = vrot.slane %v3234, 4
        %v3329 = vsel %vm544, %v3302, %v3328
        %v3330 = vrot.slane %v3235, 4
        %v3331 = vsel %vm544, %v3304, %v3330
        %v3332 = vrot.slane %v3236, 4
        %v3333 = vsel %vm544, %v3306, %v3332
        %v3334 = vrot.slane %v3237, 4
        %v3335 = vsel %vm544, %v3308, %v3334
        %v3336 = vrot.slane %v3238, 4
        %v3337 = vsel %vm544, %v3310, %v3336
        %v3338 = vrot.slane %v3239, 4
        %v3339 = vsel %vm544, %v3312, %v3338
        %v3340 = vrot.slane %v3240, 4
        %v3341 = vsel %vm544, %v3314, %v3340
        %v3342 = vrot.slane %v3241, 4
        %v3343 = vsel %vm544, %v3316, %v3342
        %v3344 = vrot.slane %v3242, 4
        %v3345 = vsel %vm544, %v3318, %v3344
        %v3346 = vrot.slane %v3243, 4
        %v3347 = vsel %vm544, %v3320, %v3346
        %3348 = vrot.lane.b32.xlu0 %v3283, 124
        %v3349 = vpop.permute.xlu0 %3348
        %3350 = vrot.lane.b32.xlu0 %v3284, 124
        %v3351 = vpop.permute.xlu0 %3350
        %3352 = vrot.lane.b32.xlu0 %v3285, 124
        %v3353 = vpop.permute.xlu0 %3352
        %3354 = vrot.lane.b32.xlu0 %v3286, 124
        %v3355 = vpop.permute.xlu0 %3354
        %3356 = vrot.lane.b32.xlu0 %v3287, 124
        %v3357 = vpop.permute.xlu0 %3356
        %3358 = vrot.lane.b32.xlu0 %v3288, 124
        %v3359 = vpop.permute.xlu0 %3358
        %3360 = vrot.lane.b32.xlu0 %v3289, 124
        %v3361 = vpop.permute.xlu0 %3360
        %3362 = vrot.lane.b32.xlu0 %v3290, 124
        %v3363 = vpop.permute.xlu0 %3362
        %3364 = vrot.lane.b32.xlu0 %v3291, 124
        %v3365 = vpop.permute.xlu0 %3364
        %3366 = vrot.lane.b32.xlu0 %v3292, 124
        %v3367 = vpop.permute.xlu0 %3366
        %3368 = vrot.lane.b32.xlu0 %v3293, 124
        %v3369 = vpop.permute.xlu0 %3368
        %3370 = vrot.lane.b32.xlu0 %v3294, 124
        %v3371 = vpop.permute.xlu0 %3370
        %3372 = vrot.lane.b32.xlu0 %v3295, 124
        %v3373 = vpop.permute.xlu0 %3372
        %3374 = vrot.lane.b32.xlu0 %v3297, 124
        %v3375 = vpop.permute.xlu0 %3374
        %3376 = vrot.lane.b32.xlu0 %v3299, 124
        %v3377 = vpop.permute.xlu0 %3376
        %3378 = vrot.lane.b32.xlu0 %v3301, 124
        %v3379 = vpop.permute.xlu0 %3378
        %3380 = vrot.lane.b32.xlu0 %v3303, 124
        %v3381 = vpop.permute.xlu0 %3380
        %3382 = vrot.lane.b32.xlu0 %v3305, 124
        %v3383 = vpop.permute.xlu0 %3382
        %3384 = vrot.lane.b32.xlu0 %v3307, 124
        %v3385 = vpop.permute.xlu0 %3384
        %3386 = vrot.lane.b32.xlu0 %v3309, 124
        %v3387 = vpop.permute.xlu0 %3386
        %3388 = vrot.lane.b32.xlu0 %v3311, 124
        %v3389 = vpop.permute.xlu0 %3388
        %3390 = vrot.lane.b32.xlu0 %v3313, 124
        %v3391 = vpop.permute.xlu0 %3390
        %3392 = vrot.lane.b32.xlu0 %v3315, 124
        %v3393 = vpop.permute.xlu0 %3392
        %3394 = vrot.lane.b32.xlu0 %v3317, 124
        %v3395 = vpop.permute.xlu0 %3394
        %3396 = vrot.lane.b32.xlu0 %v3319, 124
        %v3397 = vpop.permute.xlu0 %3396
        %3398 = vrot.lane.b32.xlu0 %v3321, 124
        %v3399 = vpop.permute.xlu0 %3398
        %3400 = vrot.lane.b32.xlu0 %v3323, 124
        %v3401 = vpop.permute.xlu0 %3400
        %3402 = vrot.lane.b32.xlu0 %v3325, 124
        %v3403 = vpop.permute.xlu0 %3402
        %3404 = vrot.lane.b32.xlu0 %v3327, 124
        %v3405 = vpop.permute.xlu0 %3404
        %3406 = vrot.lane.b32.xlu0 %v3329, 124
        %v3407 = vpop.permute.xlu0 %3406
        %3408 = vrot.lane.b32.xlu0 %v3331, 124
        %v3409 = vpop.permute.xlu0 %3408
        %3410 = vrot.lane.b32.xlu0 %v3333, 124
        %v3411 = vpop.permute.xlu0 %3410
        %3412 = vrot.lane.b32.xlu0 %v3335, 124
        %v3413 = vpop.permute.xlu0 %3412
        %3414 = vrot.lane.b32.xlu0 %v3337, 124
        %v3415 = vpop.permute.xlu0 %3414
        %3416 = vrot.lane.b32.xlu0 %v3339, 124
        %v3417 = vpop.permute.xlu0 %3416
        %3418 = vrot.lane.b32.xlu0 %v3341, 124
        %v3419 = vpop.permute.xlu0 %3418
        %3420 = vrot.lane.b32.xlu0 %v3343, 124
        %v3421 = vpop.permute.xlu0 %3420
        %3422 = vrot.lane.b32.xlu0 %v3345, 124
        %v3423 = vpop.permute.xlu0 %3422
        %3424 = vrot.lane.b32.xlu0 %v3347, 124
        %v3425 = vpop.permute.xlu0 %3424
        %v3426 = vsel %vm2274, %v3349, %v3351
        %v3427 = vsel %vm2274, %v3351, %v3353
        %v3428 = vsel %vm2274, %v3353, %v3355
        %v3429 = vsel %vm2274, %v3355, %v3357
        %v3430 = vsel %vm2274, %v3357, %v3359
        %v3431 = vsel %vm2274, %v3359, %v3361
        %v3432 = vsel %vm2274, %v3361, %v3363
        %v3433 = vsel %vm2274, %v3363, %v3365
        %v3434 = vsel %vm2274, %v3365, %v3367
        %v3435 = vsel %vm2274, %v3367, %v3369
        %v3436 = vsel %vm2274, %v3369, %v3371
        %v3437 = vsel %vm2274, %v3371, %v3373
        %v3438 = vsel %vm2274, %v3375, %v3377
        %v3439 = vsel %vm2274, %v3377, %v3379
        %v3440 = vsel %vm2274, %v3379, %v3381
        %v3441 = vsel %vm2274, %v3381, %v3383
        %v3442 = vsel %vm2274, %v3383, %v3385
        %v3443 = vsel %vm2274, %v3385, %v3387
        %v3444 = vsel %vm2274, %v3387, %v3389
        %v3445 = vsel %vm2274, %v3389, %v3391
        %v3446 = vsel %vm2274, %v3391, %v3393
        %v3447 = vsel %vm2274, %v3393, %v3395
        %v3448 = vsel %vm2274, %v3395, %v3397
        %v3449 = vsel %vm2274, %v3397, %v3399
        %v3450 = vsel %vm2274, %v3401, %v3403
        %v3451 = vsel %vm2274, %v3403, %v3405
        %v3452 = vsel %vm2274, %v3405, %v3407
        %v3453 = vsel %vm2274, %v3407, %v3409
        %v3454 = vsel %vm2274, %v3409, %v3411
        %v3455 = vsel %vm2274, %v3411, %v3413
        %v3456 = vsel %vm2274, %v3413, %v3415
        %v3457 = vsel %vm2274, %v3415, %v3417
        %v3458 = vsel %vm2274, %v3417, %v3419
        %v3459 = vsel %vm2274, %v3419, %v3421
        %v3460 = vsel %vm2274, %v3421, %v3423
        %v3461 = vsel %vm2274, %v3423, %v3425
        %3501 = vrot.lane.b32.xlu0 %v3205, 120
        %v3502 = vpop.permute.xlu0 %3501
        %3503 = vrot.lane.b32.xlu0 %v3206, 120
        %v3504 = vpop.permute.xlu0 %3503
        %3505 = vrot.lane.b32.xlu0 %v3207, 120
        %v3506 = vpop.permute.xlu0 %3505
        %3507 = vrot.lane.b32.xlu0 %v3208, 120
        %v3508 = vpop.permute.xlu0 %3507
        %3509 = vrot.lane.b32.xlu0 %v3209, 120
        %v3510 = vpop.permute.xlu0 %3509
        %3511 = vrot.lane.b32.xlu0 %v3210, 120
        %v3512 = vpop.permute.xlu0 %3511
        %3513 = vrot.lane.b32.xlu0 %v3211, 120
        %v3514 = vpop.permute.xlu0 %3513
        %3515 = vrot.lane.b32.xlu0 %v3212, 120
        %v3516 = vpop.permute.xlu0 %3515
        %3517 = vrot.lane.b32.xlu0 %v3213, 120
        %v3518 = vpop.permute.xlu0 %3517
        %3519 = vrot.lane.b32.xlu0 %v3214, 120
        %v3520 = vpop.permute.xlu0 %3519
        %3521 = vrot.lane.b32.xlu0 %v3215, 120
        %v3522 = vpop.permute.xlu0 %3521
        %3523 = vrot.lane.b32.xlu0 %v3216, 120
        %v3524 = vpop.permute.xlu0 %3523
        %3525 = vrot.lane.b32.xlu0 %v3217, 120
        %v3526 = vpop.permute.xlu0 %3525
        %3527 = vrot.lane.b32.xlu0 %v3218, 120
        %v3528 = vpop.permute.xlu0 %3527
        %3529 = vrot.lane.b32.xlu0 %v3219, 120
        %v3530 = vpop.permute.xlu0 %3529
        %3531 = vrot.lane.b32.xlu0 %v3220, 120
        %v3532 = vpop.permute.xlu0 %3531
        %3533 = vrot.lane.b32.xlu0 %v3221, 120
        %v3534 = vpop.permute.xlu0 %3533
        %3535 = vrot.lane.b32.xlu0 %v3222, 120
        %v3536 = vpop.permute.xlu0 %3535
        %3537 = vrot.lane.b32.xlu0 %v3223, 120
        %v3538 = vpop.permute.xlu0 %3537
        %3539 = vrot.lane.b32.xlu0 %v3224, 120
        %v3540 = vpop.permute.xlu0 %3539
        %3541 = vrot.lane.b32.xlu0 %v3225, 120
        %v3542 = vpop.permute.xlu0 %3541
        %3543 = vrot.lane.b32.xlu0 %v3226, 120
        %v3544 = vpop.permute.xlu0 %3543
        %3545 = vrot.lane.b32.xlu0 %v3227, 120
        %v3546 = vpop.permute.xlu0 %3545
        %3547 = vrot.lane.b32.xlu0 %v3228, 120
        %v3548 = vpop.permute.xlu0 %3547
        %3549 = vrot.lane.b32.xlu0 %v3229, 120
        %v3550 = vpop.permute.xlu0 %3549
        %3551 = vrot.lane.b32.xlu0 %v3230, 120
        %v3552 = vpop.permute.xlu0 %3551
        %3553 = vrot.lane.b32.xlu0 %v3231, 120
        %v3554 = vpop.permute.xlu0 %3553
        %3555 = vrot.lane.b32.xlu0 %v3232, 120
        %v3556 = vpop.permute.xlu0 %3555
        %3557 = vrot.lane.b32.xlu0 %v3233, 120
        %v3558 = vpop.permute.xlu0 %3557
        %3559 = vrot.lane.b32.xlu0 %v3234, 120
        %v3560 = vpop.permute.xlu0 %3559
        %3561 = vrot.lane.b32.xlu0 %v3235, 120
        %v3562 = vpop.permute.xlu0 %3561
        %3563 = vrot.lane.b32.xlu0 %v3236, 120
        %v3564 = vpop.permute.xlu0 %3563
        %3565 = vrot.lane.b32.xlu0 %v3237, 120
        %v3566 = vpop.permute.xlu0 %3565
        %3567 = vrot.lane.b32.xlu0 %v3238, 120
        %v3568 = vpop.permute.xlu0 %3567
        %3569 = vrot.lane.b32.xlu0 %v3239, 120
        %v3570 = vpop.permute.xlu0 %3569
        %3571 = vrot.lane.b32.xlu0 %v3240, 120
        %v3572 = vpop.permute.xlu0 %3571
        %3573 = vrot.lane.b32.xlu0 %v3241, 120
        %v3574 = vpop.permute.xlu0 %3573
        %3575 = vrot.lane.b32.xlu0 %v3242, 120
        %v3576 = vpop.permute.xlu0 %3575
        %3577 = vrot.lane.b32.xlu0 %v3243, 120
        %v3578 = vpop.permute.xlu0 %3577
        %vm3579 = vcmask 982016
        %v3580 = vsel %vm3579, %v3502, %v3504
        %v3581 = vsel %vm3579, %v3504, %v3506
        %v3582 = vsel %vm3579, %v3506, %v3508
        %v3583 = vsel %vm3579, %v3508, %v3510
        %v3584 = vsel %vm3579, %v3510, %v3512
        %v3585 = vsel %vm3579, %v3512, %v3514
        %v3586 = vsel %vm3579, %v3514, %v3516
        %v3587 = vsel %vm3579, %v3516, %v3518
        %v3588 = vsel %vm3579, %v3518, %v3520
        %v3589 = vsel %vm3579, %v3520, %v3522
        %v3590 = vsel %vm3579, %v3522, %v3524
        %v3591 = vsel %vm3579, %v3524, %v3526
        %v3592 = vsel %vm3579, %v3528, %v3530
        %v3593 = vsel %vm3579, %v3530, %v3532
        %v3594 = vsel %vm3579, %v3532, %v3534
        %v3595 = vsel %vm3579, %v3534, %v3536
        %v3596 = vsel %vm3579, %v3536, %v3538
        %v3597 = vsel %vm3579, %v3538, %v3540
        %v3598 = vsel %vm3579, %v3540, %v3542
        %v3599 = vsel %vm3579, %v3542, %v3544
        %v3600 = vsel %vm3579, %v3544, %v3546
        %v3601 = vsel %vm3579, %v3546, %v3548
        %v3602 = vsel %vm3579, %v3548, %v3550
        %v3603 = vsel %vm3579, %v3550, %v3552
        %v3604 = vsel %vm3579, %v3554, %v3556
        %v3605 = vsel %vm3579, %v3556, %v3558
        %v3606 = vsel %vm3579, %v3558, %v3560
        %v3607 = vsel %vm3579, %v3560, %v3562
        %v3608 = vsel %vm3579, %v3562, %v3564
        %v3609 = vsel %vm3579, %v3564, %v3566
        %v3610 = vsel %vm3579, %v3566, %v3568
        %v3611 = vsel %vm3579, %v3568, %v3570
        %v3612 = vsel %vm3579, %v3570, %v3572
        %v3613 = vsel %vm3579, %v3572, %v3574
        %v3614 = vsel %vm3579, %v3574, %v3576
        %v3615 = vsel %vm3579, %v3576, %v3578
        %v3642 = vsel %vm544, %v3231, %v3426
        %v3643 = vsel %vm544, %v3232, %v3427
        %v3644 = vsel %vm544, %v3233, %v3428
        %v3645 = vsel %vm544, %v3234, %v3429
        %v3646 = vsel %vm544, %v3235, %v3430
        %v3647 = vsel %vm544, %v3236, %v3431
        %v3648 = vsel %vm544, %v3237, %v3432
        %v3649 = vsel %vm544, %v3238, %v3433
        %v3650 = vsel %vm544, %v3239, %v3434
        %v3651 = vsel %vm544, %v3240, %v3435
        %v3652 = vsel %vm544, %v3241, %v3436
        %v3653 = vsel %vm544, %v3242, %v3437
        %v3654 = vsel %vm544, %v3243, %v3373
        %v3655 = vld [vmem:[%s7] sm:$0xff]
        %v3656 = vld [vmem:[%s7 + $0x8] sm:$0x3]
        %v3657 = vld [vmem:[%s8] sm:$0xff]
        %v3658 = vld [vmem:[%s8 + $0x8] sm:$0x3]
        %3660 = vset.pattern.permute.xlu0 0
        %3661 = vperm.xlu0 %3660, %v3657
        %v3662 = vpop.permute.xlu0 %3661
        %3665 = vset.pattern.permute.xlu0 0
        %3666 = vperm.xlu0 %3665, %v3658
        %v3667 = vpop.permute.xlu0 %3666
        %vm3669 = vcmask 490496
        %v3671 = vsel %vm3669, %v3655, 0
        %v3674 = vsel %vm3669, %v3656, 0
        %v3676 = vsel %vm544, %v3604, 0
        %v3678 = vsel %vm544, %v3605, 0
        %v3680 = vsel %vm544, %v3606, 0
        %v3682 = vsel %vm544, %v3607, 0
        %v3684 = vsel %vm544, %v3608, 0
        %v3686 = vsel %vm544, %v3609, 0
        %v3688 = vsel %vm544, %v3610, 0
        %v3690 = vsel %vm544, %v3611, 0
        %v3692 = vsel %vm544, %v3612, 0
        %v3694 = vsel %vm544, %v3613, 0
        %v3696 = vsel %vm544, %v3614, 0
        %v3698 = vsel %vm544, %v3615, 0
        %v3700 = vsel %vm544, %v3578, 0
        %3702 = vmatprep.subr.mxu0 %v3206
        %3703 = vmatpush1.msra.mxu0 %v3205
        %3704 = vmatprep.subr.mxu0 %v3219
        %3705 = vmatpush1.msra.mxu0 %v3218
        %3706 = vmatprep.subr.mxu0 %v3643
        %3707 = vmatpush1.msra.mxu0 %v3642
        %3708 = vmatprep.subr.mxu0 %v3439
        %3709 = vmatpush1.msra.mxu0 %v3438
        %3710 = vmatprep.subr.mxu0 %v3451
        %3711 = vmatpush1.msra.mxu0 %v3450
        %3712 = vmatprep.subr.mxu0 %v3581
        %3713 = vmatpush1.msra.mxu0 %v3580
        %3714 = vmatprep.subr.mxu0 %v3593
        %3715 = vmatpush1.msra.mxu0 %v3592
        %3716 = vmatprep.subr.mxu0 %v3678
        %3717 = vmatpush1.msra.mxu0 %v3676
        %3718 = vmatprep.subr.mxu0 0.0
        %3719 = vmatpush1.msra.mxu0 0.0
        %3720 = vmatprep.subr.mxu0 0.0
        %3721 = vmatpush1.msra.mxu0 0.0
        %3722 = vmatprep.subr.mxu0 0.0
        %3723 = vmatpush1.msra.mxu0 0.0
        %3724 = vmatprep.subr.mxu0 0.0
        %3725 = vmatpush1.msra.mxu0 0.0
        %3726 = vmatprep.subr.mxu0 0.0
        %3727 = vmatpush1.msra.mxu0 0.0
        %3728 = vmatprep.subr.mxu0 0.0
        %3729 = vmatpush1.msra.mxu0 0.0
        %3730 = vmatprep.subr.mxu0 0.0
        %3731 = vmatpush1.msra.mxu0 0.0
        %3732 = vmatprep.subr.mxu0 0.0
        %3733 = vmatpush1.msra.mxu0 0.0
        %3734 = vmatprep.subr.mxu0 0.0
        %3735 = vmatpush1.msra.mxu0 0.0
        %3736 = vmatprep.subr.mxu0 0.0
        %3737 = vmatpush1.msra.mxu0 0.0
        %3738 = vmatprep.subr.mxu0 0.0
        %3739 = vmatpush1.msra.mxu0 0.0
        %3740 = vmatprep.subr.mxu0 0.0
        %3741 = vmatpush1.msra.mxu0 0.0
        %3742 = vmatprep.subr.mxu0 0.0
        %3743 = vmatpush1.msra.mxu0 0.0
        %3744 = vmatprep.subr.mxu0 0.0
        %3745 = vmatpush1.msra.mxu0 0.0
        %3746 = vmatprep.subr.mxu0 0.0
        %3747 = vmatpush1.msra.mxu0 0.0
        %3748 = vmatprep.subr.mxu0 0.0
        %3749 = vmatpush1.msra.mxu0 0.0
        %3750 = vmatprep.subr.mxu0 0.0
        %3751 = vmatpush1.msra.mxu0 0.0
        %3752 = vmatprep.subr.mxu0 0.0
        %3753 = vmatpush1.msra.mxu0 0.0
        %3754 = vmatprep.subr.mxu0 0.0
        %3755 = vmatpush1.msra.mxu0 0.0
        %3756 = vmatprep.subr.mxu0 0.0
        %3757 = vmatpush1.msra.mxu0 0.0
        %3758 = vmatprep.subr.mxu0 0.0
        %3759 = vmatpush1.msra.mxu0 0.0
        %3760 = vmatprep.subr.mxu0 0.0
        %3761 = vmatpush1.msra.mxu0 0.0
        %3762 = vmatprep.subr.mxu0 0.0
        %3763 = vmatpush1.msra.mxu0 0.0
        %3764 = vmatprep.subr.mxu0 0.0
        %3765 = vmatpush1.msra.mxu0 0.0
        %3766 = vmatprep.mubr.f32.mxu0 0.0
        %3767 = vmatmul.mubr.f32.gmra.mrb[0].mxu0 %v3671
        %v3768 = vpop.f32.mrb[0].mxu0
        %v3769 = vadd.f32 %v3662, %v3768
        %v3770 = vpop.f32.mrb[0].mxu0
        %v3771 = vadd.f32 %v3662, %v3770
        %3772 = vmatprep.mubr.f32.mxu0 0.0
        %3773 = vmatmul.mubr.f32.gmra.mrb[0].mxu0 %v3674
        %v3774 = vpop.f32.mrb[0].mxu0
        %v3775 = vadd.f32 %v3667, %v3774
        %v3776 = vpop.f32.mrb[0].mxu0
        %v3777 = vadd.f32 %v3667, %v3776
        %3778 = vdwg.mxu0
        %3779 = vmatprep.subr.mxu0 %v3208
        %3780 = vmatpush1.msra.mxu0 %v3207
        %3781 = vmatprep.subr.mxu0 %v3221
        %3782 = vmatpush1.msra.mxu0 %v3220
        %3783 = vmatprep.subr.mxu0 %v3645
        %3784 = vmatpush1.msra.mxu0 %v3644
        %3785 = vmatprep.subr.mxu0 %v3441
        %3786 = vmatpush1.msra.mxu0 %v3440
        %3787 = vmatprep.subr.mxu0 %v3453
        %3788 = vmatpush1.msra.mxu0 %v3452
        %3789 = vmatprep.subr.mxu0 %v3583
        %3790 = vmatpush1.msra.mxu0 %v3582
        %3791 = vmatprep.subr.mxu0 %v3595
        %3792 = vmatpush1.msra.mxu0 %v3594
        %3793 = vmatprep.subr.mxu0 %v3682
        %3794 = vmatpush1.msra.mxu0 %v3680
        %3795 = vmatprep.subr.mxu0 0.0
        %3796 = vmatpush1.msra.mxu0 0.0
        %3797 = vmatprep.subr.mxu0 0.0
        %3798 = vmatpush1.msra.mxu0 0.0
        %3799 = vmatprep.subr.mxu0 0.0
        %3800 = vmatpush1.msra.mxu0 0.0
        %3801 = vmatprep.subr.mxu0 0.0
        %3802 = vmatpush1.msra.mxu0 0.0
        %3803 = vmatprep.subr.mxu0 0.0
        %3804 = vmatpush1.msra.mxu0 0.0
        %3805 = vmatprep.subr.mxu0 0.0
        %3806 = vmatpush1.msra.mxu0 0.0
        %3807 = vmatprep.subr.mxu0 0.0
        %3808 = vmatpush1.msra.mxu0 0.0
        %3809 = vmatprep.subr.mxu0 0.0
        %3810 = vmatpush1.msra.mxu0 0.0
        %3811 = vmatprep.subr.mxu0 0.0
        %3812 = vmatpush1.msra.mxu0 0.0
        %3813 = vmatprep.subr.mxu0 0.0
        %3814 = vmatpush1.msra.mxu0 0.0
        %3815 = vmatprep.subr.mxu0 0.0
        %3816 = vmatpush1.msra.mxu0 0.0
        %3817 = vmatprep.subr.mxu0 0.0
        %3818 = vmatpush1.msra.mxu0 0.0
        %3819 = vmatprep.subr.mxu0 0.0
        %3820 = vmatpush1.msra.mxu0 0.0
        %3821 = vmatprep.subr.mxu0 0.0
        %3822 = vmatpush1.msra.mxu0 0.0
        %3823 = vmatprep.subr.mxu0 0.0
        %3824 = vmatpush1.msra.mxu0 0.0
        %3825 = vmatprep.subr.mxu0 0.0
        %3826 = vmatpush1.msra.mxu0 0.0
        %3827 = vmatprep.subr.mxu0 0.0
        %3828 = vmatpush1.msra.mxu0 0.0
        %3829 = vmatprep.subr.mxu0 0.0
        %3830 = vmatpush1.msra.mxu0 0.0
        %3831 = vmatprep.subr.mxu0 0.0
        %3832 = vmatpush1.msra.mxu0 0.0
        %3833 = vmatprep.subr.mxu0 0.0
        %3834 = vmatpush1.msra.mxu0 0.0
        %3835 = vmatprep.subr.mxu0 0.0
        %3836 = vmatpush1.msra.mxu0 0.0
        %3837 = vmatprep.subr.mxu0 0.0
        %3838 = vmatpush1.msra.mxu0 0.0
        %3839 = vmatprep.subr.mxu0 0.0
        %3840 = vmatpush1.msra.mxu0 0.0
        %3841 = vmatprep.subr.mxu0 0.0
        %3842 = vmatpush1.msra.mxu0 0.0
        %3843 = vmatprep.mubr.f32.mxu0 0.0
        %3844 = vmatmul.mubr.f32.gmra.mrb[0].mxu0 %v3671
        %v3845 = vpop.f32.mrb[0].mxu0
        %v3846 = vadd.f32 %v3662, %v3845
        %v3847 = vpop.f32.mrb[0].mxu0
        %v3848 = vadd.f32 %v3662, %v3847
        %3849 = vmatprep.mubr.f32.mxu0 0.0
        %3850 = vmatmul.mubr.f32.gmra.mrb[0].mxu0 %v3674
        %v3851 = vpop.f32.mrb[0].mxu0
        %v3852 = vadd.f32 %v3667, %v3851
        %v3853 = vpop.f32.mrb[0].mxu0
        %v3854 = vadd.f32 %v3667, %v3853
        %3855 = vdwg.mxu0
        %3856 = vmatprep.subr.mxu0 %v3210
        %3857 = vmatpush1.msra.mxu0 %v3209
        %3858 = vmatprep.subr.mxu0 %v3223
        %3859 = vmatpush1.msra.mxu0 %v3222
        %3860 = vmatprep.subr.mxu0 %v3647
        %3861 = vmatpush1.msra.mxu0 %v3646
        %3862 = vmatprep.subr.mxu0 %v3443
        %3863 = vmatpush1.msra.mxu0 %v3442
        %3864 = vmatprep.subr.mxu0 %v3455
        %3865 = vmatpush1.msra.mxu0 %v3454
        %3866 = vmatprep.subr.mxu0 %v3585
        %3867 = vmatpush1.msra.mxu0 %v3584
        %3868 = vmatprep.subr.mxu0 %v3597
        %3869 = vmatpush1.msra.mxu0 %v3596
        %3870 = vmatprep.subr.mxu0 %v3686
        %3871 = vmatpush1.msra.mxu0 %v3684
        %3872 = vmatprep.subr.mxu0 0.0
        %3873 = vmatpush1.msra.mxu0 0.0
        %3874 = vmatprep.subr.mxu0 0.0
        %3875 = vmatpush1.msra.mxu0 0.0
        %3876 = vmatprep.subr.mxu0 0.0
        %3877 = vmatpush1.msra.mxu0 0.0
        %3878 = vmatprep.subr.mxu0 0.0
        %3879 = vmatpush1.msra.mxu0 0.0
        %3880 = vmatprep.subr.mxu0 0.0
        %3881 = vmatpush1.msra.mxu0 0.0
        %3882 = vmatprep.subr.mxu0 0.0
        %3883 = vmatpush1.msra.mxu0 0.0
        %3884 = vmatprep.subr.mxu0 0.0
        %3885 = vmatpush1.msra.mxu0 0.0
        %3886 = vmatprep.subr.mxu0 0.0
        %3887 = vmatpush1.msra.mxu0 0.0
        %3888 = vmatprep.subr.mxu0 0.0
        %3889 = vmatpush1.msra.mxu0 0.0
        %3890 = vmatprep.subr.mxu0 0.0
        %3891 = vmatpush1.msra.mxu0 0.0
        %3892 = vmatprep.subr.mxu0 0.0
        %3893 = vmatpush1.msra.mxu0 0.0
        %3894 = vmatprep.subr.mxu0 0.0
        %3895 = vmatpush1.msra.mxu0 0.0
        %3896 = vmatprep.subr.mxu0 0.0
        %3897 = vmatpush1.msra.mxu0 0.0
        %3898 = vmatprep.subr.mxu0 0.0
        %3899 = vmatpush1.msra.mxu0 0.0
        %3900 = vmatprep.subr.mxu0 0.0
        %3901 = vmatpush1.msra.mxu0 0.0
        %3902 = vmatprep.subr.mxu0 0.0
        %3903 = vmatpush1.msra.mxu0 0.0
        %3904 = vmatprep.subr.mxu0 0.0
        %3905 = vmatpush1.msra.mxu0 0.0
        %3906 = vmatprep.subr.mxu0 0.0
        %3907 = vmatpush1.msra.mxu0 0.0
        %3908 = vmatprep.subr.mxu0 0.0
        %3909 = vmatpush1.msra.mxu0 0.0
        %3910 = vmatprep.subr.mxu0 0.0
        %3911 = vmatpush1.msra.mxu0 0.0
        %3912 = vmatprep.subr.mxu0 0.0
        %3913 = vmatpush1.msra.mxu0 0.0
        %3914 = vmatprep.subr.mxu0 0.0
        %3915 = vmatpush1.msra.mxu0 0.0
        %3916 = vmatprep.subr.mxu0 0.0
        %3917 = vmatpush1.msra.mxu0 0.0
        %3918 = vmatprep.subr.mxu0 0.0
        %3919 = vmatpush1.msra.mxu0 0.0
        %3920 = vmatprep.mubr.f32.mxu0 0.0
        %3921 = vmatmul.mubr.f32.gmra.mrb[0].mxu0 %v3671
        %v3922 = vpop.f32.mrb[0].mxu0
        %v3923 = vadd.f32 %v3662, %v3922
        %v3924 = vpop.f32.mrb[0].mxu0
        %v3925 = vadd.f32 %v3662, %v3924
        %3926 = vmatprep.mubr.f32.mxu0 0.0
        %3927 = vmatmul.mubr.f32.gmra.mrb[0].mxu0 %v3674
        %v3928 = vpop.f32.mrb[0].mxu0
        %v3929 = vadd.f32 %v3667, %v3928
        %v3930 = vpop.f32.mrb[0].mxu0
        %v3931 = vadd.f32 %v3667, %v3930
        %3932 = vdwg.mxu0
        %3933 = vmatprep.subr.mxu0 %v3212
        %3934 = vmatpush1.msra.mxu0 %v3211
        %3935 = vmatprep.subr.mxu0 %v3225
        %3936 = vmatpush1.msra.mxu0 %v3224
        %3937 = vmatprep.subr.mxu0 %v3649
        %3938 = vmatpush1.msra.mxu0 %v3648
        %3939 = vmatprep.subr.mxu0 %v3445
        %3940 = vmatpush1.msra.mxu0 %v3444
        %3941 = vmatprep.subr.mxu0 %v3457
        %3942 = vmatpush1.msra.mxu0 %v3456
        %3943 = vmatprep.subr.mxu0 %v3587
        %3944 = vmatpush1.msra.mxu0 %v3586
        %3945 = vmatprep.subr.mxu0 %v3599
        %3946 = vmatpush1.msra.mxu0 %v3598
        %3947 = vmatprep.subr.mxu0 %v3690
        %3948 = vmatpush1.msra.mxu0 %v3688
        %3949 = vmatprep.subr.mxu0 0.0
        %3950 = vmatpush1.msra.mxu0 0.0
        %3951 = vmatprep.subr.mxu0 0.0
        %3952 = vmatpush1.msra.mxu0 0.0
        %3953 = vmatprep.subr.mxu0 0.0
        %3954 = vmatpush1.msra.mxu0 0.0
        %3955 = vmatprep.subr.mxu0 0.0
        %3956 = vmatpush1.msra.mxu0 0.0
        %3957 = vmatprep.subr.mxu0 0.0
        %3958 = vmatpush1.msra.mxu0 0.0
        %3959 = vmatprep.subr.mxu0 0.0
        %3960 = vmatpush1.msra.mxu0 0.0
        %3961 = vmatprep.subr.mxu0 0.0
        %3962 = vmatpush1.msra.mxu0 0.0
        %3963 = vmatprep.subr.mxu0 0.0
        %3964 = vmatpush1.msra.mxu0 0.0
        %3965 = vmatprep.subr.mxu0 0.0
        %3966 = vmatpush1.msra.mxu0 0.0
        %3967 = vmatprep.subr.mxu0 0.0
        %3968 = vmatpush1.msra.mxu0 0.0
        %3969 = vmatprep.subr.mxu0 0.0
        %3970 = vmatpush1.msra.mxu0 0.0
        %3971 = vmatprep.subr.mxu0 0.0
        %3972 = vmatpush1.msra.mxu0 0.0
        %3973 = vmatprep.subr.mxu0 0.0
        %3974 = vmatpush1.msra.mxu0 0.0
        %3975 = vmatprep.subr.mxu0 0.0
        %3976 = vmatpush1.msra.mxu0 0.0
        %3977 = vmatprep.subr.mxu0 0.0
        %3978 = vmatpush1.msra.mxu0 0.0
        %3979 = vmatprep.subr.mxu0 0.0
        %3980 = vmatpush1.msra.mxu0 0.0
        %3981 = vmatprep.subr.mxu0 0.0
        %3982 = vmatpush1.msra.mxu0 0.0
        %3983 = vmatprep.subr.mxu0 0.0
        %3984 = vmatpush1.msra.mxu0 0.0
        %3985 = vmatprep.subr.mxu0 0.0
        %3986 = vmatpush1.msra.mxu0 0.0
        %3987 = vmatprep.subr.mxu0 0.0
        %3988 = vmatpush1.msra.mxu0 0.0
        %3989 = vmatprep.subr.mxu0 0.0
        %3990 = vmatpush1.msra.mxu0 0.0
        %3991 = vmatprep.subr.mxu0 0.0
        %3992 = vmatpush1.msra.mxu0 0.0
        %3993 = vmatprep.subr.mxu0 0.0
        %3994 = vmatpush1.msra.mxu0 0.0
        %3995 = vmatprep.subr.mxu0 0.0
        %3996 = vmatpush1.msra.mxu0 0.0
        %3997 = vmatprep.mubr.f32.mxu0 0.0
        %3998 = vmatmul.mubr.f32.gmra.mrb[0].mxu0 %v3671
        %v3999 = vpop.f32.mrb[0].mxu0
        %v4000 = vadd.f32 %v3662, %v3999
        %v4001 = vpop.f32.mrb[0].mxu0
        %v4002 = vadd.f32 %v3662, %v4001
        %4003 = vmatprep.mubr.f32.mxu0 0.0
        %4004 = vmatmul.mubr.f32.gmra.mrb[0].mxu0 %v3674
        %v4005 = vpop.f32.mrb[0].mxu0
        %v4006 = vadd.f32 %v3667, %v4005
        %v4007 = vpop.f32.mrb[0].mxu0
        %v4008 = vadd.f32 %v3667, %v4007
        %4009 = vdwg.mxu0
        %4010 = vmatprep.subr.mxu0 %v3214
        %4011 = vmatpush1.msra.mxu0 %v3213
        %4012 = vmatprep.subr.mxu0 %v3227
        %4013 = vmatpush1.msra.mxu0 %v3226
        %4014 = vmatprep.subr.mxu0 %v3651
        %4015 = vmatpush1.msra.mxu0 %v3650
        %4016 = vmatprep.subr.mxu0 %v3447
        %4017 = vmatpush1.msra.mxu0 %v3446
        %4018 = vmatprep.subr.mxu0 %v3459
        %4019 = vmatpush1.msra.mxu0 %v3458
        %4020 = vmatprep.subr.mxu0 %v3589
        %4021 = vmatpush1.msra.mxu0 %v3588
        %4022 = vmatprep.subr.mxu0 %v3601
        %4023 = vmatpush1.msra.mxu0 %v3600
        %4024 = vmatprep.subr.mxu0 %v3694
        %4025 = vmatpush1.msra.mxu0 %v3692
        %4026 = vmatprep.subr.mxu0 0.0
        %4027 = vmatpush1.msra.mxu0 0.0
        %4028 = vmatprep.subr.mxu0 0.0
        %4029 = vmatpush1.msra.mxu0 0.0
        %4030 = vmatprep.subr.mxu0 0.0
        %4031 = vmatpush1.msra.mxu0 0.0
        %4032 = vmatprep.subr.mxu0 0.0
        %4033 = vmatpush1.msra.mxu0 0.0
        %4034 = vmatprep.subr.mxu0 0.0
        %4035 = vmatpush1.msra.mxu0 0.0
        %4036 = vmatprep.subr.mxu0 0.0
        %4037 = vmatpush1.msra.mxu0 0.0
        %4038 = vmatprep.subr.mxu0 0.0
        %4039 = vmatpush1.msra.mxu0 0.0
        %4040 = vmatprep.subr.mxu0 0.0
        %4041 = vmatpush1.msra.mxu0 0.0
        %4042 = vmatprep.subr.mxu0 0.0
        %4043 = vmatpush1.msra.mxu0 0.0
        %4044 = vmatprep.subr.mxu0 0.0
        %4045 = vmatpush1.msra.mxu0 0.0
        %4046 = vmatprep.subr.mxu0 0.0
        %4047 = vmatpush1.msra.mxu0 0.0
        %4048 = vmatprep.subr.mxu0 0.0
        %4049 = vmatpush1.msra.mxu0 0.0
        %4050 = vmatprep.subr.mxu0 0.0
        %4051 = vmatpush1.msra.mxu0 0.0
        %4052 = vmatprep.subr.mxu0 0.0
        %4053 = vmatpush1.msra.mxu0 0.0
        %4054 = vmatprep.subr.mxu0 0.0
        %4055 = vmatpush1.msra.mxu0 0.0
        %4056 = vmatprep.subr.mxu0 0.0
        %4057 = vmatpush1.msra.mxu0 0.0
        %4058 = vmatprep.subr.mxu0 0.0
        %4059 = vmatpush1.msra.mxu0 0.0
        %4060 = vmatprep.subr.mxu0 0.0
        %4061 = vmatpush1.msra.mxu0 0.0
        %4062 = vmatprep.subr.mxu0 0.0
        %4063 = vmatpush1.msra.mxu0 0.0
        %4064 = vmatprep.subr.mxu0 0.0
        %4065 = vmatpush1.msra.mxu0 0.0
        %4066 = vmatprep.subr.mxu0 0.0
        %4067 = vmatpush1.msra.mxu0 0.0
        %4068 = vmatprep.subr.mxu0 0.0
        %4069 = vmatpush1.msra.mxu0 0.0
        %4070 = vmatprep.subr.mxu0 0.0
        %4071 = vmatpush1.msra.mxu0 0.0
        %4072 = vmatprep.subr.mxu0 0.0
        %4073 = vmatpush1.msra.mxu0 0.0
        %4074 = vmatprep.mubr.f32.mxu0 0.0
        %4075 = vmatmul.mubr.f32.gmra.mrb[0].mxu0 %v3671
        %v4076 = vpop.f32.mrb[0].mxu0
        %v4077 = vadd.f32 %v3662, %v4076
        %v4078 = vpop.f32.mrb[0].mxu0
        %v4079 = vadd.f32 %v3662, %v4078
        %4080 = vmatprep.mubr.f32.mxu0 0.0
        %4081 = vmatmul.mubr.f32.gmra.mrb[0].mxu0 %v3674
        %v4082 = vpop.f32.mrb[0].mxu0
        %v4083 = vadd.f32 %v3667, %v4082
        %v4084 = vpop.f32.mrb[0].mxu0
        %v4085 = vadd.f32 %v3667, %v4084
        %4086 = vdwg.mxu0
        %4087 = vmatprep.subr.mxu0 %v3216
        %4088 = vmatpush1.msra.mxu0 %v3215
        %4089 = vmatprep.subr.mxu0 %v3229
        %4090 = vmatpush1.msra.mxu0 %v3228
        %4091 = vmatprep.subr.mxu0 %v3653
        %4092 = vmatpush1.msra.mxu0 %v3652
        %4093 = vmatprep.subr.mxu0 %v3449
        %4094 = vmatpush1.msra.mxu0 %v3448
        %4095 = vmatprep.subr.mxu0 %v3461
        %4096 = vmatpush1.msra.mxu0 %v3460
        %4097 = vmatprep.subr.mxu0 %v3591
        %4098 = vmatpush1.msra.mxu0 %v3590
        %4099 = vmatprep.subr.mxu0 %v3603
        %4100 = vmatpush1.msra.mxu0 %v3602
        %4101 = vmatprep.subr.mxu0 %v3698
        %4102 = vmatpush1.msra.mxu0 %v3696
        %4103 = vmatprep.subr.mxu0 0.0
        %4104 = vmatpush1.msra.mxu0 0.0
        %4105 = vmatprep.subr.mxu0 0.0
        %4106 = vmatpush1.msra.mxu0 0.0
        %4107 = vmatprep.subr.mxu0 0.0
        %4108 = vmatpush1.msra.mxu0 0.0
        %4109 = vmatprep.subr.mxu0 0.0
        %4110 = vmatpush1.msra.mxu0 0.0
        %4111 = vmatprep.subr.mxu0 0.0
        %4112 = vmatpush1.msra.mxu0 0.0
        %4113 = vmatprep.subr.mxu0 0.0
        %4114 = vmatpush1.msra.mxu0 0.0
        %4115 = vmatprep.subr.mxu0 0.0
        %4116 = vmatpush1.msra.mxu0 0.0
        %4117 = vmatprep.subr.mxu0 0.0
        %4118 = vmatpush1.msra.mxu0 0.0
        %4119 = vmatprep.subr.mxu0 0.0
        %4120 = vmatpush1.msra.mxu0 0.0
        %4121 = vmatprep.subr.mxu0 0.0
        %4122 = vmatpush1.msra.mxu0 0.0
        %4123 = vmatprep.subr.mxu0 0.0
        %4124 = vmatpush1.msra.mxu0 0.0
        %4125 = vmatprep.subr.mxu0 0.0
        %4126 = vmatpush1.msra.mxu0 0.0
        %4127 = vmatprep.subr.mxu0 0.0
        %4128 = vmatpush1.msra.mxu0 0.0
        %4129 = vmatprep.subr.mxu0 0.0
        %4130 = vmatpush1.msra.mxu0 0.0
        %4131 = vmatprep.subr.mxu0 0.0
        %4132 = vmatpush1.msra.mxu0 0.0
        %4133 = vmatprep.subr.mxu0 0.0
        %4134 = vmatpush1.msra.mxu0 0.0
        %4135 = vmatprep.subr.mxu0 0.0
        %4136 = vmatpush1.msra.mxu0 0.0
        %4137 = vmatprep.subr.mxu0 0.0
        %4138 = vmatpush1.msra.mxu0 0.0
        %4139 = vmatprep.subr.mxu0 0.0
        %4140 = vmatpush1.msra.mxu0 0.0
        %4141 = vmatprep.subr.mxu0 0.0
        %4142 = vmatpush1.msra.mxu0 0.0
        %4143 = vmatprep.subr.mxu0 0.0
        %4144 = vmatpush1.msra.mxu0 0.0
        %4145 = vmatprep.subr.mxu0 0.0
        %4146 = vmatpush1.msra.mxu0 0.0
        %4147 = vmatprep.subr.mxu0 0.0
        %4148 = vmatpush1.msra.mxu0 0.0
        %4149 = vmatprep.subr.mxu0 0.0
        %4150 = vmatpush1.msra.mxu0 0.0
        %4151 = vmatprep.mubr.f32.mxu0 0.0
        %4152 = vmatmul.mubr.f32.gmra.mrb[0].mxu0 %v3671
        %v4153 = vpop.f32.mrb[0].mxu0
        %v4154 = vadd.f32 %v3662, %v4153
        %v4155 = vpop.f32.mrb[0].mxu0
        %v4156 = vadd.f32 %v3662, %v4155
        %4157 = vmatprep.mubr.f32.mxu0 0.0
        %4158 = vmatmul.mubr.f32.gmra.mrb[0].mxu0 %v3674
        %v4159 = vpop.f32.mrb[0].mxu0
        %v4160 = vadd.f32 %v3667, %v4159
        %v4161 = vpop.f32.mrb[0].mxu0
        %v4162 = vadd.f32 %v3667, %v4161
        %4163 = vdwg.mxu0
        %4164 = vmatprep.subr.mxu0 0.0
        %4165 = vmatpush1.msra.mxu0 %v3217
        %4166 = vmatprep.subr.mxu0 0.0
        %4167 = vmatpush1.msra.mxu0 %v3230
        %4168 = vmatprep.subr.mxu0 0.0
        %4169 = vmatpush1.msra.mxu0 %v3654
        %4170 = vmatprep.subr.mxu0 0.0
        %4171 = vmatpush1.msra.mxu0 %v3399
        %4172 = vmatprep.subr.mxu0 0.0
        %4173 = vmatpush1.msra.mxu0 %v3425
        %4174 = vmatprep.subr.mxu0 0.0
        %4175 = vmatpush1.msra.mxu0 %v3526
        %4176 = vmatprep.subr.mxu0 0.0
        %4177 = vmatpush1.msra.mxu0 %v3552
        %4178 = vmatprep.subr.mxu0 0.0
        %4179 = vmatpush1.msra.mxu0 %v3700
        %4180 = vmatprep.subr.mxu0 0.0
        %4181 = vmatpush1.msra.mxu0 0.0
        %4182 = vmatprep.subr.mxu0 0.0
        %4183 = vmatpush1.msra.mxu0 0.0
        %4184 = vmatprep.subr.mxu0 0.0
        %4185 = vmatpush1.msra.mxu0 0.0
        %4186 = vmatprep.subr.mxu0 0.0
        %4187 = vmatpush1.msra.mxu0 0.0
        %4188 = vmatprep.subr.mxu0 0.0
        %4189 = vmatpush1.msra.mxu0 0.0
        %4190 = vmatprep.subr.mxu0 0.0
        %4191 = vmatpush1.msra.mxu0 0.0
        %4192 = vmatprep.subr.mxu0 0.0
        %4193 = vmatpush1.msra.mxu0 0.0
        %4194 = vmatprep.subr.mxu0 0.0
        %4195 = vmatpush1.msra.mxu0 0.0
        %4196 = vmatprep.subr.mxu0 0.0
        %4197 = vmatpush1.msra.mxu0 0.0
        %4198 = vmatprep.subr.mxu0 0.0
        %4199 = vmatpush1.msra.mxu0 0.0
        %4200 = vmatprep.subr.mxu0 0.0
        %4201 = vmatpush1.msra.mxu0 0.0
        %4202 = vmatprep.subr.mxu0 0.0
        %4203 = vmatpush1.msra.mxu0 0.0
        %4204 = vmatprep.subr.mxu0 0.0
        %4205 = vmatpush1.msra.mxu0 0.0
        %4206 = vmatprep.subr.mxu0 0.0
        %4207 = vmatpush1.msra.mxu0 0.0
        %4208 = vmatprep.subr.mxu0 0.0
        %4209 = vmatpush1.msra.mxu0 0.0
        %4210 = vmatprep.subr.mxu0 0.0
        %4211 = vmatpush1.msra.mxu0 0.0
        %4212 = vmatprep.subr.mxu0 0.0
        %4213 = vmatpush1.msra.mxu0 0.0
        %4214 = vmatprep.subr.mxu0 0.0
        %4215 = vmatpush1.msra.mxu0 0.0
        %4216 = vmatprep.subr.mxu0 0.0
        %4217 = vmatpush1.msra.mxu0 0.0
        %4218 = vmatprep.subr.mxu0 0.0
        %4219 = vmatpush1.msra.mxu0 0.0
        %4220 = vmatprep.subr.mxu0 0.0
        %4221 = vmatpush1.msra.mxu0 0.0
        %4222 = vmatprep.subr.mxu0 0.0
        %4223 = vmatpush1.msra.mxu0 0.0
        %4224 = vmatprep.subr.mxu0 0.0
        %4225 = vmatpush1.msra.mxu0 0.0
        %4226 = vmatprep.subr.mxu0 0.0
        %4227 = vmatpush1.msra.mxu0 0.0
        %4228 = vmatprep.mubr.f32.mxu0 0.0
        %4229 = vmatmul.mubr.f32.gmra.mrb[0].mxu0 %v3671
        %v4230 = vpop.f32.mrb[0].mxu0
        %v4231 = vadd.f32 %v3662, %v4230
        %v4232 = vpop.f32.mrb[0].mxu0
        %4233 = vmatprep.mubr.f32.mxu0 0.0
        %4234 = vmatmul.mubr.f32.gmra.mrb[0].mxu0 %v3674
        %v4235 = vpop.f32.mrb[0].mxu0
        %v4236 = vadd.f32 %v3667, %v4235
        %v4237 = vpop.f32.mrb[0].mxu0
        %4238 = vdwg.mxu0
        %v4239 = vmax.f32 %v3769, 0.0
        %v4240 = vmax.f32 %v3771, 0.0
        %v4241 = vmax.f32 %v3846, 0.0
        %v4242 = vmax.f32 %v3848, 0.0
        %v4243 = vmax.f32 %v3923, 0.0
        %v4244 = vmax.f32 %v3925, 0.0
        %v4245 = vmax.f32 %v4000, 0.0
        %v4246 = vmax.f32 %v4002, 0.0
        %v4247 = vmax.f32 %v4077, 0.0
        %v4248 = vmax.f32 %v4079, 0.0
        %v4249 = vmax.f32 %v4154, 0.0
        %v4250 = vmax.f32 %v4156, 0.0
        %v4251 = vmax.f32 %v4231, 0.0
        %v4252 = vmax.f32 %v3775, 0.0
        %v4253 = vmax.f32 %v3777, 0.0
        %v4254 = vmax.f32 %v3852, 0.0
        %v4255 = vmax.f32 %v3854, 0.0
        %v4256 = vmax.f32 %v3929, 0.0
        %v4257 = vmax.f32 %v3931, 0.0
        %v4258 = vmax.f32 %v4006, 0.0
        %v4259 = vmax.f32 %v4008, 0.0
        %v4260 = vmax.f32 %v4083, 0.0
        %v4261 = vmax.f32 %v4085, 0.0
        %v4262 = vmax.f32 %v4160, 0.0
        %v4263 = vmax.f32 %v4162, 0.0
        %v4264 = vmax.f32 %v4236, 0.0
        %4291 = vrot.lane.b32.xlu0 %v4239, 124
        %v4292 = vpop.permute.xlu0 %4291
        %4293 = vrot.lane.b32.xlu0 %v4240, 124
        %v4294 = vpop.permute.xlu0 %4293
        %4295 = vrot.lane.b32.xlu0 %v4241, 124
        %v4296 = vpop.permute.xlu0 %4295
        %4297 = vrot.lane.b32.xlu0 %v4242, 124
        %v4298 = vpop.permute.xlu0 %4297
        %4299 = vrot.lane.b32.xlu0 %v4243, 124
        %v4300 = vpop.permute.xlu0 %4299
        %4301 = vrot.lane.b32.xlu0 %v4244, 124
        %v4302 = vpop.permute.xlu0 %4301
        %4303 = vrot.lane.b32.xlu0 %v4245, 124
        %v4304 = vpop.permute.xlu0 %4303
        %4305 = vrot.lane.b32.xlu0 %v4246, 124
        %v4306 = vpop.permute.xlu0 %4305
        %4307 = vrot.lane.b32.xlu0 %v4247, 124
        %v4308 = vpop.permute.xlu0 %4307
        %4309 = vrot.lane.b32.xlu0 %v4248, 124
        %v4310 = vpop.permute.xlu0 %4309
        %4311 = vrot.lane.b32.xlu0 %v4249, 124
        %v4312 = vpop.permute.xlu0 %4311
        %4313 = vrot.lane.b32.xlu0 %v4250, 124
        %v4314 = vpop.permute.xlu0 %4313
        %4315 = vrot.lane.b32.xlu0 %v4251, 124
        %v4316 = vpop.permute.xlu0 %4315
        %4317 = vrot.lane.b32.xlu0 %v4252, 124
        %v4318 = vpop.permute.xlu0 %4317
        %4319 = vrot.lane.b32.xlu0 %v4253, 124
        %v4320 = vpop.permute.xlu0 %4319
        %4321 = vrot.lane.b32.xlu0 %v4254, 124
        %v4322 = vpop.permute.xlu0 %4321
        %4323 = vrot.lane.b32.xlu0 %v4255, 124
        %v4324 = vpop.permute.xlu0 %4323
        %4325 = vrot.lane.b32.xlu0 %v4256, 124
        %v4326 = vpop.permute.xlu0 %4325
        %4327 = vrot.lane.b32.xlu0 %v4257, 124
        %v4328 = vpop.permute.xlu0 %4327
        %4329 = vrot.lane.b32.xlu0 %v4258, 124
        %v4330 = vpop.permute.xlu0 %4329
        %4331 = vrot.lane.b32.xlu0 %v4259, 124
        %v4332 = vpop.permute.xlu0 %4331
        %4333 = vrot.lane.b32.xlu0 %v4260, 124
        %v4334 = vpop.permute.xlu0 %4333
        %4335 = vrot.lane.b32.xlu0 %v4261, 124
        %v4336 = vpop.permute.xlu0 %4335
        %4337 = vrot.lane.b32.xlu0 %v4262, 124
        %v4338 = vpop.permute.xlu0 %4337
        %4339 = vrot.lane.b32.xlu0 %v4263, 124
        %v4340 = vpop.permute.xlu0 %4339
        %4341 = vrot.lane.b32.xlu0 %v4264, 124
        %v4342 = vpop.permute.xlu0 %4341
        %v4343 = vsel %vm2274, %v4292, %v4294
        %v4344 = vsel %vm2274, %v4294, %v4296
        %v4345 = vsel %vm2274, %v4296, %v4298
        %v4346 = vsel %vm2274, %v4298, %v4300
        %v4347 = vsel %vm2274, %v4300, %v4302
        %v4348 = vsel %vm2274, %v4302, %v4304
        %v4349 = vsel %vm2274, %v4304, %v4306
        %v4350 = vsel %vm2274, %v4306, %v4308
        %v4351 = vsel %vm2274, %v4308, %v4310
        %v4352 = vsel %vm2274, %v4310, %v4312
        %v4353 = vsel %vm2274, %v4312, %v4314
        %v4354 = vsel %vm2274, %v4314, %v4316
        %v4355 = vsel %vm2274, %v4318, %v4320
        %v4356 = vsel %vm2274, %v4320, %v4322
        %v4357 = vsel %vm2274, %v4322, %v4324
        %v4358 = vsel %vm2274, %v4324, %v4326
        %v4359 = vsel %vm2274, %v4326, %v4328
        %v4360 = vsel %vm2274, %v4328, %v4330
        %v4361 = vsel %vm2274, %v4330, %v4332
        %v4362 = vsel %vm2274, %v4332, %v4334
        %v4363 = vsel %vm2274, %v4334, %v4336
        %v4364 = vsel %vm2274, %v4336, %v4338
        %v4365 = vsel %vm2274, %v4338, %v4340
        %v4366 = vsel %vm2274, %v4340, %v4342
        %v4393 = vmax.f32 %v4239, %v4343
        %v4394 = vmax.f32 %v4240, %v4344
        %v4395 = vmax.f32 %v4241, %v4345
        %v4396 = vmax.f32 %v4242, %v4346
        %v4397 = vmax.f32 %v4243, %v4347
        %v4398 = vmax.f32 %v4244, %v4348
        %v4399 = vmax.f32 %v4245, %v4349
        %v4400 = vmax.f32 %v4246, %v4350
        %v4401 = vmax.f32 %v4247, %v4351
        %v4402 = vmax.f32 %v4248, %v4352
        %v4403 = vmax.f32 %v4249, %v4353
        %v4404 = vmax.f32 %v4250, %v4354
        %v4405 = vmax.f32 %v4251, %v4316
        %v4406 = vmax.f32 %v4252, %v4355
        %v4407 = vmax.f32 %v4253, %v4356
        %v4408 = vmax.f32 %v4254, %v4357
        %v4409 = vmax.f32 %v4255, %v4358
        %v4410 = vmax.f32 %v4256, %v4359
        %v4411 = vmax.f32 %v4257, %v4360
        %v4412 = vmax.f32 %v4258, %v4361
        %v4413 = vmax.f32 %v4259, %v4362
        %v4414 = vmax.f32 %v4260, %v4363
        %v4415 = vmax.f32 %v4261, %v4364
        %v4416 = vmax.f32 %v4262, %v4365
        %v4417 = vmax.f32 %v4263, %v4366
        %v4418 = vmax.f32 %v4264, %v4342
        %v4445 = vrot.slane %v4393, 6
        %v4446 = vrot.slane %v4394, 6
        %v4447 = vrot.slane %v4395, 6
        %v4448 = vrot.slane %v4396, 6
        %v4449 = vrot.slane %v4397, 6
        %v4450 = vrot.slane %v4398, 6
        %v4451 = vrot.slane %v4399, 6
        %v4452 = vrot.slane %v4400, 6
        %v4453 = vrot.slane %v4401, 6
        %v4454 = vrot.slane %v4402, 6
        %v4455 = vrot.slane %v4403, 6
        %v4456 = vrot.slane %v4404, 6
        %v4457 = vrot.slane %v4405, 6
        %v4458 = vrot.slane %v4406, 6
        %v4459 = vsel %vm1224, %v4445, %v4458
        %v4460 = vrot.slane %v4407, 6
        %v4461 = vsel %vm1224, %v4446, %v4460
        %v4462 = vrot.slane %v4408, 6
        %v4463 = vsel %vm1224, %v4447, %v4462
        %v4464 = vrot.slane %v4409, 6
        %v4465 = vsel %vm1224, %v4448, %v4464
        %v4466 = vrot.slane %v4410, 6
        %v4467 = vsel %vm1224, %v4449, %v4466
        %v4468 = vrot.slane %v4411, 6
        %v4469 = vsel %vm1224, %v4450, %v4468
        %v4470 = vrot.slane %v4412, 6
        %v4471 = vsel %vm1224, %v4451, %v4470
        %v4472 = vrot.slane %v4413, 6
        %v4473 = vsel %vm1224, %v4452, %v4472
        %v4474 = vrot.slane %v4414, 6
        %v4475 = vsel %vm1224, %v4453, %v4474
        %v4476 = vrot.slane %v4415, 6
        %v4477 = vsel %vm1224, %v4454, %v4476
        %v4478 = vrot.slane %v4416, 6
        %v4479 = vsel %vm1224, %v4455, %v4478
        %v4480 = vrot.slane %v4417, 6
        %v4481 = vsel %vm1224, %v4456, %v4480
        %v4482 = vrot.slane %v4418, 6
        %v4483 = vsel %vm1224, %v4457, %v4482
        %4484 = vrot.lane.b32.xlu0 %v4445, 120
        %v4485 = vpop.permute.xlu0 %4484
        %4486 = vrot.lane.b32.xlu0 %v4446, 120
        %v4487 = vpop.permute.xlu0 %4486
        %4488 = vrot.lane.b32.xlu0 %v4447, 120
        %v4489 = vpop.permute.xlu0 %4488
        %4490 = vrot.lane.b32.xlu0 %v4448, 120
        %v4491 = vpop.permute.xlu0 %4490
        %4492 = vrot.lane.b32.xlu0 %v4449, 120
        %v4493 = vpop.permute.xlu0 %4492
        %4494 = vrot.lane.b32.xlu0 %v4450, 120
        %v4495 = vpop.permute.xlu0 %4494
        %4496 = vrot.lane.b32.xlu0 %v4451, 120
        %v4497 = vpop.permute.xlu0 %4496
        %4498 = vrot.lane.b32.xlu0 %v4452, 120
        %v4499 = vpop.permute.xlu0 %4498
        %4500 = vrot.lane.b32.xlu0 %v4453, 120
        %v4501 = vpop.permute.xlu0 %4500
        %4502 = vrot.lane.b32.xlu0 %v4454, 120
        %v4503 = vpop.permute.xlu0 %4502
        %4504 = vrot.lane.b32.xlu0 %v4455, 120
        %v4505 = vpop.permute.xlu0 %4504
        %4506 = vrot.lane.b32.xlu0 %v4456, 120
        %v4507 = vpop.permute.xlu0 %4506
        %4508 = vrot.lane.b32.xlu0 %v4457, 120
        %v4509 = vpop.permute.xlu0 %4508
        %4510 = vrot.lane.b32.xlu0 %v4459, 120
        %v4511 = vpop.permute.xlu0 %4510
        %4512 = vrot.lane.b32.xlu0 %v4461, 120
        %v4513 = vpop.permute.xlu0 %4512
        %4514 = vrot.lane.b32.xlu0 %v4463, 120
        %v4515 = vpop.permute.xlu0 %4514
        %4516 = vrot.lane.b32.xlu0 %v4465, 120
        %v4517 = vpop.permute.xlu0 %4516
        %4518 = vrot.lane.b32.xlu0 %v4467, 120
        %v4519 = vpop.permute.xlu0 %4518
        %4520 = vrot.lane.b32.xlu0 %v4469, 120
        %v4521 = vpop.permute.xlu0 %4520
        %4522 = vrot.lane.b32.xlu0 %v4471, 120
        %v4523 = vpop.permute.xlu0 %4522
        %4524 = vrot.lane.b32.xlu0 %v4473, 120
        %v4525 = vpop.permute.xlu0 %4524
        %4526 = vrot.lane.b32.xlu0 %v4475, 120
        %v4527 = vpop.permute.xlu0 %4526
        %4528 = vrot.lane.b32.xlu0 %v4477, 120
        %v4529 = vpop.permute.xlu0 %4528
        %4530 = vrot.lane.b32.xlu0 %v4479, 120
        %v4531 = vpop.permute.xlu0 %4530
        %4532 = vrot.lane.b32.xlu0 %v4481, 120
        %v4533 = vpop.permute.xlu0 %4532
        %4534 = vrot.lane.b32.xlu0 %v4483, 120
        %v4535 = vpop.permute.xlu0 %4534
        %v4536 = vsel %vm3579, %v4485, %v4487
        %v4537 = vsel %vm3579, %v4487, %v4489
        %v4538 = vsel %vm3579, %v4489, %v4491
        %v4539 = vsel %vm3579, %v4491, %v4493
        %v4540 = vsel %vm3579, %v4493, %v4495
        %v4541 = vsel %vm3579, %v4495, %v4497
        %v4542 = vsel %vm3579, %v4497, %v4499
        %v4543 = vsel %vm3579, %v4499, %v4501
        %v4544 = vsel %vm3579, %v4501, %v4503
        %v4545 = vsel %vm3579, %v4503, %v4505
        %v4546 = vsel %vm3579, %v4505, %v4507
        %v4547 = vsel %vm3579, %v4507, %v4509
        %v4548 = vsel %vm3579, %v4511, %v4513
        %v4549 = vsel %vm3579, %v4513, %v4515
        %v4550 = vsel %vm3579, %v4515, %v4517
        %v4551 = vsel %vm3579, %v4517, %v4519
        %v4552 = vsel %vm3579, %v4519, %v4521
        %v4553 = vsel %vm3579, %v4521, %v4523
        %v4554 = vsel %vm3579, %v4523, %v4525
        %v4555 = vsel %vm3579, %v4525, %v4527
        %v4556 = vsel %vm3579, %v4527, %v4529
        %v4557 = vsel %vm3579, %v4529, %v4531
        %v4558 = vsel %vm3579, %v4531, %v4533
        %v4559 = vsel %vm3579, %v4533, %v4535
        %v4586 = vrot.slane %v4393, 4
        %v4587 = vrot.slane %v4394, 4
        %v4588 = vrot.slane %v4395, 4
        %v4589 = vrot.slane %v4396, 4
        %v4590 = vrot.slane %v4397, 4
        %v4591 = vrot.slane %v4398, 4
        %v4592 = vrot.slane %v4399, 4
        %v4593 = vrot.slane %v4400, 4
        %v4594 = vrot.slane %v4401, 4
        %v4595 = vrot.slane %v4402, 4
        %v4596 = vrot.slane %v4403, 4
        %v4597 = vrot.slane %v4404, 4
        %v4598 = vrot.slane %v4405, 4
        %v4599 = vrot.slane %v4406, 4
        %v4600 = vsel %vm544, %v4586, %v4599
        %v4601 = vrot.slane %v4407, 4
        %v4602 = vsel %vm544, %v4587, %v4601
        %v4603 = vrot.slane %v4408, 4
        %v4604 = vsel %vm544, %v4588, %v4603
        %v4605 = vrot.slane %v4409, 4
        %v4606 = vsel %vm544, %v4589, %v4605
        %v4607 = vrot.slane %v4410, 4
        %v4608 = vsel %vm544, %v4590, %v4607
        %v4609 = vrot.slane %v4411, 4
        %v4610 = vsel %vm544, %v4591, %v4609
        %v4611 = vrot.slane %v4412, 4
        %v4612 = vsel %vm544, %v4592, %v4611
        %v4613 = vrot.slane %v4413, 4
        %v4614 = vsel %vm544, %v4593, %v4613
        %v4615 = vrot.slane %v4414, 4
        %v4616 = vsel %vm544, %v4594, %v4615
        %v4617 = vrot.slane %v4415, 4
        %v4618 = vsel %vm544, %v4595, %v4617
        %v4619 = vrot.slane %v4416, 4
        %v4620 = vsel %vm544, %v4596, %v4619
        %v4621 = vrot.slane %v4417, 4
        %v4622 = vsel %vm544, %v4597, %v4621
        %v4623 = vrot.slane %v4418, 4
        %v4624 = vsel %vm544, %v4598, %v4623
        %4625 = vrot.lane.b32.xlu0 %v4586, 112
        %v4626 = vpop.permute.xlu0 %4625
        %4627 = vrot.lane.b32.xlu0 %v4587, 112
        %v4628 = vpop.permute.xlu0 %4627
        %4629 = vrot.lane.b32.xlu0 %v4588, 112
        %v4630 = vpop.permute.xlu0 %4629
        %4631 = vrot.lane.b32.xlu0 %v4589, 112
        %v4632 = vpop.permute.xlu0 %4631
        %4633 = vrot.lane.b32.xlu0 %v4590, 112
        %v4634 = vpop.permute.xlu0 %4633
        %4635 = vrot.lane.b32.xlu0 %v4591, 112
        %v4636 = vpop.permute.xlu0 %4635
        %4637 = vrot.lane.b32.xlu0 %v4592, 112
        %v4638 = vpop.permute.xlu0 %4637
        %4639 = vrot.lane.b32.xlu0 %v4593, 112
        %v4640 = vpop.permute.xlu0 %4639
        %4641 = vrot.lane.b32.xlu0 %v4594, 112
        %v4642 = vpop.permute.xlu0 %4641
        %4643 = vrot.lane.b32.xlu0 %v4595, 112
        %v4644 = vpop.permute.xlu0 %4643
        %4645 = vrot.lane.b32.xlu0 %v4596, 112
        %v4646 = vpop.permute.xlu0 %4645
        %4647 = vrot.lane.b32.xlu0 %v4597, 112
        %v4648 = vpop.permute.xlu0 %4647
        %4649 = vrot.lane.b32.xlu0 %v4598, 112
        %v4650 = vpop.permute.xlu0 %4649
        %4651 = vrot.lane.b32.xlu0 %v4600, 112
        %v4652 = vpop.permute.xlu0 %4651
        %4653 = vrot.lane.b32.xlu0 %v4602, 112
        %v4654 = vpop.permute.xlu0 %4653
        %4655 = vrot.lane.b32.xlu0 %v4604, 112
        %v4656 = vpop.permute.xlu0 %4655
        %4657 = vrot.lane.b32.xlu0 %v4606, 112
        %v4658 = vpop.permute.xlu0 %4657
        %4659 = vrot.lane.b32.xlu0 %v4608, 112
        %v4660 = vpop.permute.xlu0 %4659
        %4661 = vrot.lane.b32.xlu0 %v4610, 112
        %v4662 = vpop.permute.xlu0 %4661
        %4663 = vrot.lane.b32.xlu0 %v4612, 112
        %v4664 = vpop.permute.xlu0 %4663
        %4665 = vrot.lane.b32.xlu0 %v4614, 112
        %v4666 = vpop.permute.xlu0 %4665
        %4667 = vrot.lane.b32.xlu0 %v4616, 112
        %v4668 = vpop.permute.xlu0 %4667
        %4669 = vrot.lane.b32.xlu0 %v4618, 112
        %v4670 = vpop.permute.xlu0 %4669
        %4671 = vrot.lane.b32.xlu0 %v4620, 112
        %v4672 = vpop.permute.xlu0 %4671
        %4673 = vrot.lane.b32.xlu0 %v4622, 112
        %v4674 = vpop.permute.xlu0 %4673
        %4675 = vrot.lane.b32.xlu0 %v4624, 112
        %v4676 = vpop.permute.xlu0 %4675
        %vm4677 = vcmask 916480
        %v4678 = vsel %vm4677, %v4626, %v4628
        %v4679 = vsel %vm4677, %v4628, %v4630
        %v4680 = vsel %vm4677, %v4630, %v4632
        %v4681 = vsel %vm4677, %v4632, %v4634
        %v4682 = vsel %vm4677, %v4634, %v4636
        %v4683 = vsel %vm4677, %v4636, %v4638
        %v4684 = vsel %vm4677, %v4638, %v4640
        %v4685 = vsel %vm4677, %v4640, %v4642
        %v4686 = vsel %vm4677, %v4642, %v4644
        %v4687 = vsel %vm4677, %v4644, %v4646
        %v4688 = vsel %vm4677, %v4646, %v4648
        %v4689 = vsel %vm4677, %v4648, %v4650
        %v4690 = vsel %vm4677, %v4652, %v4654
        %v4691 = vsel %vm4677, %v4654, %v4656
        %v4692 = vsel %vm4677, %v4656, %v4658
        %v4693 = vsel %vm4677, %v4658, %v4660
        %v4694 = vsel %vm4677, %v4660, %v4662
        %v4695 = vsel %vm4677, %v4662, %v4664
        %v4696 = vsel %vm4677, %v4664, %v4666
        %v4697 = vsel %vm4677, %v4666, %v4668
        %v4698 = vsel %vm4677, %v4668, %v4670
        %v4699 = vsel %vm4677, %v4670, %v4672
        %v4700 = vsel %vm4677, %v4672, %v4674
        %v4701 = vsel %vm4677, %v4674, %v4676
        %v4715 = vsel %vm1224, %v4406, %v4536
        %v4716 = vsel %vm1224, %v4407, %v4537
        %v4717 = vsel %vm1224, %v4408, %v4538
        %v4718 = vsel %vm1224, %v4409, %v4539
        %v4719 = vsel %vm1224, %v4410, %v4540
        %v4720 = vsel %vm1224, %v4411, %v4541
        %v4721 = vsel %vm1224, %v4412, %v4542
        %v4722 = vsel %vm1224, %v4413, %v4543
        %v4723 = vsel %vm1224, %v4414, %v4544
        %v4724 = vsel %vm1224, %v4415, %v4545
        %v4725 = vsel %vm1224, %v4416, %v4546
        %v4726 = vsel %vm1224, %v4417, %v4547
        %v4727 = vsel %vm1224, %v4418, %v4509
        %v4728 = vsel %vm544, %v4548, %v4678
        %v4729 = vsel %vm544, %v4549, %v4679
        %v4730 = vsel %vm544, %v4550, %v4680
        %v4731 = vsel %vm544, %v4551, %v4681
        %v4732 = vsel %vm544, %v4552, %v4682
        %v4733 = vsel %vm544, %v4553, %v4683
        %v4734 = vsel %vm544, %v4554, %v4684
        %v4735 = vsel %vm544, %v4555, %v4685
        %v4736 = vsel %vm544, %v4556, %v4686
        %v4737 = vsel %vm544, %v4557, %v4687
        %v4738 = vsel %vm544, %v4558, %v4688
        %v4739 = vsel %vm544, %v4559, %v4689
        %v4740 = vsel %vm544, %v4535, %v4650
        %v4741 = vld [vmem:[%s9] sm:$0x1f]
        %v4742 = vld [vmem:[%s10] sm:$0x1f]
        %4744 = vset.pattern.permute.xlu0 0
        %4745 = vperm.xlu0 %4744, %v4742
        %v4746 = vpop.permute.xlu0 %4745
        %v4749 = vsel %vm2359, %v4741, 0
        %v4751 = vsel %vm2369, %v4690, 0
        %v4753 = vsel %vm2369, %v4691, 0
        %v4755 = vsel %vm2369, %v4692, 0
        %v4757 = vsel %vm2369, %v4693, 0
        %v4759 = vsel %vm2369, %v4694, 0
        %v4761 = vsel %vm2369, %v4695, 0
        %v4763 = vsel %vm2369, %v4696, 0
        %v4765 = vsel %vm2369, %v4697, 0
        %v4767 = vsel %vm2369, %v4698, 0
        %v4769 = vsel %vm2369, %v4699, 0
        %v4771 = vsel %vm2369, %v4700, 0
        %v4773 = vsel %vm2369, %v4701, 0
        %v4775 = vsel %vm2369, %v4676, 0
        %4777 = vmatprep.subr.mxu0 %v4394
        %4778 = vmatpush1.msra.mxu0 %v4393
        %4779 = vmatprep.subr.mxu0 %v4716
        %4780 = vmatpush1.msra.mxu0 %v4715
        %4781 = vmatprep.subr.mxu0 %v4729
        %4782 = vmatpush1.msra.mxu0 %v4728
        %4783 = vmatprep.subr.mxu0 %v4753
        %4784 = vmatpush1.msra.mxu0 %v4751
        %4785 = vmatprep.subr.mxu0 0.0
        %4786 = vmatpush1.msra.mxu0 0.0
        %4787 = vmatprep.subr.mxu0 0.0
        %4788 = vmatpush1.msra.mxu0 0.0
        %4789 = vmatprep.subr.mxu0 0.0
        %4790 = vmatpush1.msra.mxu0 0.0
        %4791 = vmatprep.subr.mxu0 0.0
        %4792 = vmatpush1.msra.mxu0 0.0
        %4793 = vmatprep.subr.mxu0 0.0
        %4794 = vmatpush1.msra.mxu0 0.0
        %4795 = vmatprep.subr.mxu0 0.0
        %4796 = vmatpush1.msra.mxu0 0.0
        %4797 = vmatprep.subr.mxu0 0.0
        %4798 = vmatpush1.msra.mxu0 0.0
        %4799 = vmatprep.subr.mxu0 0.0
        %4800 = vmatpush1.msra.mxu0 0.0
        %4801 = vmatprep.subr.mxu0 0.0
        %4802 = vmatpush1.msra.mxu0 0.0
        %4803 = vmatprep.subr.mxu0 0.0
        %4804 = vmatpush1.msra.mxu0 0.0
        %4805 = vmatprep.subr.mxu0 0.0
        %4806 = vmatpush1.msra.mxu0 0.0
        %4807 = vmatprep.subr.mxu0 0.0
        %4808 = vmatpush1.msra.mxu0 0.0
        %4809 = vmatprep.subr.mxu0 0.0
        %4810 = vmatpush1.msra.mxu0 0.0
        %4811 = vmatprep.subr.mxu0 0.0
        %4812 = vmatpush1.msra.mxu0 0.0
        %4813 = vmatprep.subr.mxu0 0.0
        %4814 = vmatpush1.msra.mxu0 0.0
        %4815 = vmatprep.subr.mxu0 0.0
        %4816 = vmatpush1.msra.mxu0 0.0
        %4817 = vmatprep.subr.mxu0 0.0
        %4818 = vmatpush1.msra.mxu0 0.0
        %4819 = vmatprep.subr.mxu0 0.0
        %4820 = vmatpush1.msra.mxu0 0.0
        %4821 = vmatprep.subr.mxu0 0.0
        %4822 = vmatpush1.msra.mxu0 0.0
        %4823 = vmatprep.subr.mxu0 0.0
        %4824 = vmatpush1.msra.mxu0 0.0
        %4825 = vmatprep.subr.mxu0 0.0
        %4826 = vmatpush1.msra.mxu0 0.0
        %4827 = vmatprep.subr.mxu0 0.0
        %4828 = vmatpush1.msra.mxu0 0.0
        %4829 = vmatprep.subr.mxu0 0.0
        %4830 = vmatpush1.msra.mxu0 0.0
        %4831 = vmatprep.subr.mxu0 0.0
        %4832 = vmatpush1.msra.mxu0 0.0
        %4833 = vmatprep.subr.mxu0 0.0
        %4834 = vmatpush1.msra.mxu0 0.0
        %4835 = vmatprep.subr.mxu0 0.0
        %4836 = vmatpush1.msra.mxu0 0.0
        %4837 = vmatprep.subr.mxu0 0.0
        %4838 = vmatpush1.msra.mxu0 0.0
        %4839 = vmatprep.subr.mxu0 0.0
        %4840 = vmatpush1.msra.mxu0 0.0
        %4841 = vmatprep.mubr.f32.mxu0 0.0
        %4842 = vmatmul.mubr.f32.gmra.mrb[0].mxu0 %v4749
        %v4843 = vpop.f32.mrb[0].mxu0
        %v4844 = vadd.f32 %v4746, %v4843
        %v4845 = vpop.f32.mrb[0].mxu0
        %v4846 = vadd.f32 %v4746, %v4845
        %4847 = vdwg.mxu0
        %4848 = vmatprep.subr.mxu0 %v4396
        %4849 = vmatpush1.msra.mxu0 %v4395
        %4850 = vmatprep.subr.mxu0 %v4718
        %4851 = vmatpush1.msra.mxu0 %v4717
        %4852 = vmatprep.subr.mxu0 %v4731
        %4853 = vmatpush1.msra.mxu0 %v4730
        %4854 = vmatprep.subr.mxu0 %v4757
        %4855 = vmatpush1.msra.mxu0 %v4755
        %4856 = vmatprep.subr.mxu0 0.0
        %4857 = vmatpush1.msra.mxu0 0.0
        %4858 = vmatprep.subr.mxu0 0.0
        %4859 = vmatpush1.msra.mxu0 0.0
        %4860 = vmatprep.subr.mxu0 0.0
        %4861 = vmatpush1.msra.mxu0 0.0
        %4862 = vmatprep.subr.mxu0 0.0
        %4863 = vmatpush1.msra.mxu0 0.0
        %4864 = vmatprep.subr.mxu0 0.0
        %4865 = vmatpush1.msra.mxu0 0.0
        %4866 = vmatprep.subr.mxu0 0.0
        %4867 = vmatpush1.msra.mxu0 0.0
        %4868 = vmatprep.subr.mxu0 0.0
        %4869 = vmatpush1.msra.mxu0 0.0
        %4870 = vmatprep.subr.mxu0 0.0
        %4871 = vmatpush1.msra.mxu0 0.0
        %4872 = vmatprep.subr.mxu0 0.0
        %4873 = vmatpush1.msra.mxu0 0.0
        %4874 = vmatprep.subr.mxu0 0.0
        %4875 = vmatpush1.msra.mxu0 0.0
        %4876 = vmatprep.subr.mxu0 0.0
        %4877 = vmatpush1.msra.mxu0 0.0
        %4878 = vmatprep.subr.mxu0 0.0
        %4879 = vmatpush1.msra.mxu0 0.0
        %4880 = vmatprep.subr.mxu0 0.0
        %4881 = vmatpush1.msra.mxu0 0.0
        %4882 = vmatprep.subr.mxu0 0.0
        %4883 = vmatpush1.msra.mxu0 0.0
        %4884 = vmatprep.subr.mxu0 0.0
        %4885 = vmatpush1.msra.mxu0 0.0
        %4886 = vmatprep.subr.mxu0 0.0
        %4887 = vmatpush1.msra.mxu0 0.0
        %4888 = vmatprep.subr.mxu0 0.0
        %4889 = vmatpush1.msra.mxu0 0.0
        %4890 = vmatprep.subr.mxu0 0.0
        %4891 = vmatpush1.msra.mxu0 0.0
        %4892 = vmatprep.subr.mxu0 0.0
        %4893 = vmatpush1.msra.mxu0 0.0
        %4894 = vmatprep.subr.mxu0 0.0
        %4895 = vmatpush1.msra.mxu0 0.0
        %4896 = vmatprep.subr.mxu0 0.0
        %4897 = vmatpush1.msra.mxu0 0.0
        %4898 = vmatprep.subr.mxu0 0.0
        %4899 = vmatpush1.msra.mxu0 0.0
        %4900 = vmatprep.subr.mxu0 0.0
        %4901 = vmatpush1.msra.mxu0 0.0
        %4902 = vmatprep.subr.mxu0 0.0
        %4903 = vmatpush1.msra.mxu0 0.0
        %4904 = vmatprep.subr.mxu0 0.0
        %4905 = vmatpush1.msra.mxu0 0.0
        %4906 = vmatprep.subr.mxu0 0.0
        %4907 = vmatpush1.msra.mxu0 0.0
        %4908 = vmatprep.subr.mxu0 0.0
        %4909 = vmatpush1.msra.mxu0 0.0
        %4910 = vmatprep.subr.mxu0 0.0
        %4911 = vmatpush1.msra.mxu0 0.0
        %4912 = vmatprep.mubr.f32.mxu0 0.0
        %4913 = vmatmul.mubr.f32.gmra.mrb[0].mxu0 %v4749
        %v4914 = vpop.f32.mrb[0].mxu0
        %v4915 = vadd.f32 %v4746, %v4914
        %v4916 = vpop.f32.mrb[0].mxu0
        %v4917 = vadd.f32 %v4746, %v4916
        %4918 = vdwg.mxu0
        %4919 = vmatprep.subr.mxu0 %v4398
        %4920 = vmatpush1.msra.mxu0 %v4397
        %4921 = vmatprep.subr.mxu0 %v4720
        %4922 = vmatpush1.msra.mxu0 %v4719
        %4923 = vmatprep.subr.mxu0 %v4733
        %4924 = vmatpush1.msra.mxu0 %v4732
        %4925 = vmatprep.subr.mxu0 %v4761
        %4926 = vmatpush1.msra.mxu0 %v4759
        %4927 = vmatprep.subr.mxu0 0.0
        %4928 = vmatpush1.msra.mxu0 0.0
        %4929 = vmatprep.subr.mxu0 0.0
        %4930 = vmatpush1.msra.mxu0 0.0
        %4931 = vmatprep.subr.mxu0 0.0
        %4932 = vmatpush1.msra.mxu0 0.0
        %4933 = vmatprep.subr.mxu0 0.0
        %4934 = vmatpush1.msra.mxu0 0.0
        %4935 = vmatprep.subr.mxu0 0.0
        %4936 = vmatpush1.msra.mxu0 0.0
        %4937 = vmatprep.subr.mxu0 0.0
        %4938 = vmatpush1.msra.mxu0 0.0
        %4939 = vmatprep.subr.mxu0 0.0
        %4940 = vmatpush1.msra.mxu0 0.0
        %4941 = vmatprep.subr.mxu0 0.0
        %4942 = vmatpush1.msra.mxu0 0.0
        %4943 = vmatprep.subr.mxu0 0.0
        %4944 = vmatpush1.msra.mxu0 0.0
        %4945 = vmatprep.subr.mxu0 0.0
        %4946 = vmatpush1.msra.mxu0 0.0
        %4947 = vmatprep.subr.mxu0 0.0
        %4948 = vmatpush1.msra.mxu0 0.0
        %4949 = vmatprep.subr.mxu0 0.0
        %4950 = vmatpush1.msra.mxu0 0.0
        %4951 = vmatprep.subr.mxu0 0.0
        %4952 = vmatpush1.msra.mxu0 0.0
        %4953 = vmatprep.subr.mxu0 0.0
        %4954 = vmatpush1.msra.mxu0 0.0
        %4955 = vmatprep.subr.mxu0 0.0
        %4956 = vmatpush1.msra.mxu0 0.0
        %4957 = vmatprep.subr.mxu0 0.0
        %4958 = vmatpush1.msra.mxu0 0.0
        %4959 = vmatprep.subr.mxu0 0.0
        %4960 = vmatpush1.msra.mxu0 0.0
        %4961 = vmatprep.subr.mxu0 0.0
        %4962 = vmatpush1.msra.mxu0 0.0
        %4963 = vmatprep.subr.mxu0 0.0
        %4964 = vmatpush1.msra.mxu0 0.0
        %4965 = vmatprep.subr.mxu0 0.0
        %4966 = vmatpush1.msra.mxu0 0.0
        %4967 = vmatprep.subr.mxu0 0.0
        %4968 = vmatpush1.msra.mxu0 0.0
        %4969 = vmatprep.subr.mxu0 0.0
        %4970 = vmatpush1.msra.mxu0 0.0
        %4971 = vmatprep.subr.mxu0 0.0
        %4972 = vmatpush1.msra.mxu0 0.0
        %4973 = vmatprep.subr.mxu0 0.0
        %4974 = vmatpush1.msra.mxu0 0.0
        %4975 = vmatprep.subr.mxu0 0.0
        %4976 = vmatpush1.msra.mxu0 0.0
        %4977 = vmatprep.subr.mxu0 0.0
        %4978 = vmatpush1.msra.mxu0 0.0
        %4979 = vmatprep.subr.mxu0 0.0
        %4980 = vmatpush1.msra.mxu0 0.0
        %4981 = vmatprep.subr.mxu0 0.0
        %4982 = vmatpush1.msra.mxu0 0.0
        %4983 = vmatprep.mubr.f32.mxu0 0.0
        %4984 = vmatmul.mubr.f32.gmra.mrb[0].mxu0 %v4749
        %v4985 = vpop.f32.mrb[0].mxu0
        %v4986 = vadd.f32 %v4746, %v4985
        %v4987 = vpop.f32.mrb[0].mxu0
        %v4988 = vadd.f32 %v4746, %v4987
        %4989 = vdwg.mxu0
        %4990 = vmatprep.subr.mxu0 %v4400
        %4991 = vmatpush1.msra.mxu0 %v4399
        %4992 = vmatprep.subr.mxu0 %v4722
        %4993 = vmatpush1.msra.mxu0 %v4721
        %4994 = vmatprep.subr.mxu0 %v4735
        %4995 = vmatpush1.msra.mxu0 %v4734
        %4996 = vmatprep.subr.mxu0 %v4765
        %4997 = vmatpush1.msra.mxu0 %v4763
        %4998 = vmatprep.subr.mxu0 0.0
        %4999 = vmatpush1.msra.mxu0 0.0
        %5000 = vmatprep.subr.mxu0 0.0
        %5001 = vmatpush1.msra.mxu0 0.0
        %5002 = vmatprep.subr.mxu0 0.0
        %5003 = vmatpush1.msra.mxu0 0.0
        %5004 = vmatprep.subr.mxu0 0.0
        %5005 = vmatpush1.msra.mxu0 0.0
        %5006 = vmatprep.subr.mxu0 0.0
        %5007 = vmatpush1.msra.mxu0 0.0
        %5008 = vmatprep.subr.mxu0 0.0
        %5009 = vmatpush1.msra.mxu0 0.0
        %5010 = vmatprep.subr.mxu0 0.0
        %5011 = vmatpush1.msra.mxu0 0.0
        %5012 = vmatprep.subr.mxu0 0.0
        %5013 = vmatpush1.msra.mxu0 0.0
        %5014 = vmatprep.subr.mxu0 0.0
        %5015 = vmatpush1.msra.mxu0 0.0
        %5016 = vmatprep.subr.mxu0 0.0
        %5017 = vmatpush1.msra.mxu0 0.0
        %5018 = vmatprep.subr.mxu0 0.0
        %5019 = vmatpush1.msra.mxu0 0.0
        %5020 = vmatprep.subr.mxu0 0.0
        %5021 = vmatpush1.msra.mxu0 0.0
        %5022 = vmatprep.subr.mxu0 0.0
        %5023 = vmatpush1.msra.mxu0 0.0
        %5024 = vmatprep.subr.mxu0 0.0
        %5025 = vmatpush1.msra.mxu0 0.0
        %5026 = vmatprep.subr.mxu0 0.0
        %5027 = vmatpush1.msra.mxu0 0.0
        %5028 = vmatprep.subr.mxu0 0.0
        %5029 = vmatpush1.msra.mxu0 0.0
        %5030 = vmatprep.subr.mxu0 0.0
        %5031 = vmatpush1.msra.mxu0 0.0
        %5032 = vmatprep.subr.mxu0 0.0
        %5033 = vmatpush1.msra.mxu0 0.0
        %5034 = vmatprep.subr.mxu0 0.0
        %5035 = vmatpush1.msra.mxu0 0.0
        %5036 = vmatprep.subr.mxu0 0.0
        %5037 = vmatpush1.msra.mxu0 0.0
        %5038 = vmatprep.subr.mxu0 0.0
        %5039 = vmatpush1.msra.mxu0 0.0
        %5040 = vmatprep.subr.mxu0 0.0
        %5041 = vmatpush1.msra.mxu0 0.0
        %5042 = vmatprep.subr.mxu0 0.0
        %5043 = vmatpush1.msra.mxu0 0.0
        %5044 = vmatprep.subr.mxu0 0.0
        %5045 = vmatpush1.msra.mxu0 0.0
        %5046 = vmatprep.subr.mxu0 0.0
        %5047 = vmatpush1.msra.mxu0 0.0
        %5048 = vmatprep.subr.mxu0 0.0
        %5049 = vmatpush1.msra.mxu0 0.0
        %5050 = vmatprep.subr.mxu0 0.0
        %5051 = vmatpush1.msra.mxu0 0.0
        %5052 = vmatprep.subr.mxu0 0.0
        %5053 = vmatpush1.msra.mxu0 0.0
        %5054 = vmatprep.mubr.f32.mxu0 0.0
        %5055 = vmatmul.mubr.f32.gmra.mrb[0].mxu0 %v4749
        %v5056 = vpop.f32.mrb[0].mxu0
        %v5057 = vadd.f32 %v4746, %v5056
        %v5058 = vpop.f32.mrb[0].mxu0
        %v5059 = vadd.f32 %v4746, %v5058
        %5060 = vdwg.mxu0
        %5061 = vmatprep.subr.mxu0 %v4402
        %5062 = vmatpush1.msra.mxu0 %v4401
        %5063 = vmatprep.subr.mxu0 %v4724
        %5064 = vmatpush1.msra.mxu0 %v4723
        %5065 = vmatprep.subr.mxu0 %v4737
        %5066 = vmatpush1.msra.mxu0 %v4736
        %5067 = vmatprep.subr.mxu0 %v4769
        %5068 = vmatpush1.msra.mxu0 %v4767
        %5069 = vmatprep.subr.mxu0 0.0
        %5070 = vmatpush1.msra.mxu0 0.0
        %5071 = vmatprep.subr.mxu0 0.0
        %5072 = vmatpush1.msra.mxu0 0.0
        %5073 = vmatprep.subr.mxu0 0.0
        %5074 = vmatpush1.msra.mxu0 0.0
        %5075 = vmatprep.subr.mxu0 0.0
        %5076 = vmatpush1.msra.mxu0 0.0
        %5077 = vmatprep.subr.mxu0 0.0
        %5078 = vmatpush1.msra.mxu0 0.0
        %5079 = vmatprep.subr.mxu0 0.0
        %5080 = vmatpush1.msra.mxu0 0.0
        %5081 = vmatprep.subr.mxu0 0.0
        %5082 = vmatpush1.msra.mxu0 0.0
        %5083 = vmatprep.subr.mxu0 0.0
        %5084 = vmatpush1.msra.mxu0 0.0
        %5085 = vmatprep.subr.mxu0 0.0
        %5086 = vmatpush1.msra.mxu0 0.0
        %5087 = vmatprep.subr.mxu0 0.0
        %5088 = vmatpush1.msra.mxu0 0.0
        %5089 = vmatprep.subr.mxu0 0.0
        %5090 = vmatpush1.msra.mxu0 0.0
        %5091 = vmatprep.subr.mxu0 0.0
        %5092 = vmatpush1.msra.mxu0 0.0
        %5093 = vmatprep.subr.mxu0 0.0
        %5094 = vmatpush1.msra.mxu0 0.0
        %5095 = vmatprep.subr.mxu0 0.0
        %5096 = vmatpush1.msra.mxu0 0.0
        %5097 = vmatprep.subr.mxu0 0.0
        %5098 = vmatpush1.msra.mxu0 0.0
        %5099 = vmatprep.subr.mxu0 0.0
        %5100 = vmatpush1.msra.mxu0 0.0
        %5101 = vmatprep.subr.mxu0 0.0
        %5102 = vmatpush1.msra.mxu0 0.0
        %5103 = vmatprep.subr.mxu0 0.0
        %5104 = vmatpush1.msra.mxu0 0.0
        %5105 = vmatprep.subr.mxu0 0.0
        %5106 = vmatpush1.msra.mxu0 0.0
        %5107 = vmatprep.subr.mxu0 0.0
        %5108 = vmatpush1.msra.mxu0 0.0
        %5109 = vmatprep.subr.mxu0 0.0
        %5110 = vmatpush1.msra.mxu0 0.0
        %5111 = vmatprep.subr.mxu0 0.0
        %5112 = vmatpush1.msra.mxu0 0.0
        %5113 = vmatprep.subr.mxu0 0.0
        %5114 = vmatpush1.msra.mxu0 0.0
        %5115 = vmatprep.subr.mxu0 0.0
        %5116 = vmatpush1.msra.mxu0 0.0
        %5117 = vmatprep.subr.mxu0 0.0
        %5118 = vmatpush1.msra.mxu0 0.0
        %5119 = vmatprep.subr.mxu0 0.0
        %5120 = vmatpush1.msra.mxu0 0.0
        %5121 = vmatprep.subr.mxu0 0.0
        %5122 = vmatpush1.msra.mxu0 0.0
        %5123 = vmatprep.subr.mxu0 0.0
        %5124 = vmatpush1.msra.mxu0 0.0
        %5125 = vmatprep.mubr.f32.mxu0 0.0
        %5126 = vmatmul.mubr.f32.gmra.mrb[0].mxu0 %v4749
        %v5127 = vpop.f32.mrb[0].mxu0
        %v5128 = vadd.f32 %v4746, %v5127
        %v5129 = vpop.f32.mrb[0].mxu0
        %v5130 = vadd.f32 %v4746, %v5129
        %5131 = vdwg.mxu0
        %5132 = vmatprep.subr.mxu0 %v4404
        %5133 = vmatpush1.msra.mxu0 %v4403
        %5134 = vmatprep.subr.mxu0 %v4726
        %5135 = vmatpush1.msra.mxu0 %v4725
        %5136 = vmatprep.subr.mxu0 %v4739
        %5137 = vmatpush1.msra.mxu0 %v4738
        %5138 = vmatprep.subr.mxu0 %v4773
        %5139 = vmatpush1.msra.mxu0 %v4771
        %5140 = vmatprep.subr.mxu0 0.0
        %5141 = vmatpush1.msra.mxu0 0.0
        %5142 = vmatprep.subr.mxu0 0.0
        %5143 = vmatpush1.msra.mxu0 0.0
        %5144 = vmatprep.subr.mxu0 0.0
        %5145 = vmatpush1.msra.mxu0 0.0
        %5146 = vmatprep.subr.mxu0 0.0
        %5147 = vmatpush1.msra.mxu0 0.0
        %5148 = vmatprep.subr.mxu0 0.0
        %5149 = vmatpush1.msra.mxu0 0.0
        %5150 = vmatprep.subr.mxu0 0.0
        %5151 = vmatpush1.msra.mxu0 0.0
        %5152 = vmatprep.subr.mxu0 0.0
        %5153 = vmatpush1.msra.mxu0 0.0
        %5154 = vmatprep.subr.mxu0 0.0
        %5155 = vmatpush1.msra.mxu0 0.0
        %5156 = vmatprep.subr.mxu0 0.0
        %5157 = vmatpush1.msra.mxu0 0.0
        %5158 = vmatprep.subr.mxu0 0.0
        %5159 = vmatpush1.msra.mxu0 0.0
        %5160 = vmatprep.subr.mxu0 0.0
        %5161 = vmatpush1.msra.mxu0 0.0
        %5162 = vmatprep.subr.mxu0 0.0
        %5163 = vmatpush1.msra.mxu0 0.0
        %5164 = vmatprep.subr.mxu0 0.0
        %5165 = vmatpush1.msra.mxu0 0.0
        %5166 = vmatprep.subr.mxu0 0.0
        %5167 = vmatpush1.msra.mxu0 0.0
        %5168 = vmatprep.subr.mxu0 0.0
        %5169 = vmatpush1.msra.mxu0 0.0
        %5170 = vmatprep.subr.mxu0 0.0
        %5171 = vmatpush1.msra.mxu0 0.0
        %5172 = vmatprep.subr.mxu0 0.0
        %5173 = vmatpush1.msra.mxu0 0.0
        %5174 = vmatprep.subr.mxu0 0.0
        %5175 = vmatpush1.msra.mxu0 0.0
        %5176 = vmatprep.subr.mxu0 0.0
        %5177 = vmatpush1.msra.mxu0 0.0
        %5178 = vmatprep.subr.mxu0 0.0
        %5179 = vmatpush1.msra.mxu0 0.0
        %5180 = vmatprep.subr.mxu0 0.0
        %5181 = vmatpush1.msra.mxu0 0.0
        %5182 = vmatprep.subr.mxu0 0.0
        %5183 = vmatpush1.msra.mxu0 0.0
        %5184 = vmatprep.subr.mxu0 0.0
        %5185 = vmatpush1.msra.mxu0 0.0
        %5186 = vmatprep.subr.mxu0 0.0
        %5187 = vmatpush1.msra.mxu0 0.0
        %5188 = vmatprep.subr.mxu0 0.0
        %5189 = vmatpush1.msra.mxu0 0.0
        %5190 = vmatprep.subr.mxu0 0.0
        %5191 = vmatpush1.msra.mxu0 0.0
        %5192 = vmatprep.subr.mxu0 0.0
        %5193 = vmatpush1.msra.mxu0 0.0
        %5194 = vmatprep.subr.mxu0 0.0
        %5195 = vmatpush1.msra.mxu0 0.0
        %5196 = vmatprep.mubr.f32.mxu0 0.0
        %5197 = vmatmul.mubr.f32.gmra.mrb[0].mxu0 %v4749
        %v5198 = vpop.f32.mrb[0].mxu0
        %v5199 = vadd.f32 %v4746, %v5198
        %v5200 = vpop.f32.mrb[0].mxu0
        %v5201 = vadd.f32 %v4746, %v5200
        %5202 = vdwg.mxu0
        %5203 = vmatprep.subr.mxu0 0.0
        %5204 = vmatpush1.msra.mxu0 %v4405
        %5205 = vmatprep.subr.mxu0 0.0
        %5206 = vmatpush1.msra.mxu0 %v4727
        %5207 = vmatprep.subr.mxu0 0.0
        %5208 = vmatpush1.msra.mxu0 %v4740
        %5209 = vmatprep.subr.mxu0 0.0
        %5210 = vmatpush1.msra.mxu0 %v4775
        %5211 = vmatprep.subr.mxu0 0.0
        %5212 = vmatpush1.msra.mxu0 0.0
        %5213 = vmatprep.subr.mxu0 0.0
        %5214 = vmatpush1.msra.mxu0 0.0
        %5215 = vmatprep.subr.mxu0 0.0
        %5216 = vmatpush1.msra.mxu0 0.0
        %5217 = vmatprep.subr.mxu0 0.0
        %5218 = vmatpush1.msra.mxu0 0.0
        %5219 = vmatprep.subr.mxu0 0.0
        %5220 = vmatpush1.msra.mxu0 0.0
        %5221 = vmatprep.subr.mxu0 0.0
        %5222 = vmatpush1.msra.mxu0 0.0
        %5223 = vmatprep.subr.mxu0 0.0
        %5224 = vmatpush1.msra.mxu0 0.0
        %5225 = vmatprep.subr.mxu0 0.0
        %5226 = vmatpush1.msra.mxu0 0.0
        %5227 = vmatprep.subr.mxu0 0.0
        %5228 = vmatpush1.msra.mxu0 0.0
        %5229 = vmatprep.subr.mxu0 0.0
        %5230 = vmatpush1.msra.mxu0 0.0
        %5231 = vmatprep.subr.mxu0 0.0
        %5232 = vmatpush1.msra.mxu0 0.0
        %5233 = vmatprep.subr.mxu0 0.0
        %5234 = vmatpush1.msra.mxu0 0.0
        %5235 = vmatprep.subr.mxu0 0.0
        %5236 = vmatpush1.msra.mxu0 0.0
        %5237 = vmatprep.subr.mxu0 0.0
        %5238 = vmatpush1.msra.mxu0 0.0
        %5239 = vmatprep.subr.mxu0 0.0
        %5240 = vmatpush1.msra.mxu0 0.0
        %5241 = vmatprep.subr.mxu0 0.0
        %5242 = vmatpush1.msra.mxu0 0.0
        %5243 = vmatprep.subr.mxu0 0.0
        %5244 = vmatpush1.msra.mxu0 0.0
        %5245 = vmatprep.subr.mxu0 0.0
        %5246 = vmatpush1.msra.mxu0 0.0
        %5247 = vmatprep.subr.mxu0 0.0
        %5248 = vmatpush1.msra.mxu0 0.0
        %5249 = vmatprep.subr.mxu0 0.0
        %5250 = vmatpush1.msra.mxu0 0.0
        %5251 = vmatprep.subr.mxu0 0.0
        %5252 = vmatpush1.msra.mxu0 0.0
        %5253 = vmatprep.subr.mxu0 0.0
        %5254 = vmatpush1.msra.mxu0 0.0
        %5255 = vmatprep.subr.mxu0 0.0
        %5256 = vmatpush1.msra.mxu0 0.0
        %5257 = vmatprep.subr.mxu0 0.0
        %5258 = vmatpush1.msra.mxu0 0.0
        %5259 = vmatprep.subr.mxu0 0.0
        %5260 = vmatpush1.msra.mxu0 0.0
        %5261 = vmatprep.subr.mxu0 0.0
        %5262 = vmatpush1.msra.mxu0 0.0
        %5263 = vmatprep.subr.mxu0 0.0
        %5264 = vmatpush1.msra.mxu0 0.0
        %5265 = vmatprep.subr.mxu0 0.0
        %5266 = vmatpush1.msra.mxu0 0.0
        %5267 = vmatprep.mubr.f32.mxu0 0.0
        %5268 = vmatmul.mubr.f32.gmra.mrb[0].mxu0 %v4749
        %v5269 = vpop.f32.mrb[0].mxu0
        %v5270 = vadd.f32 %v4746, %v5269
        %v5271 = vpop.f32.mrb[0].mxu0
        %5272 = vdwg.mxu0
        %v5273 = vmax.f32 %v4844, 0.0
        %v5274 = vmax.f32 %v4846, 0.0
        %v5275 = vmax.f32 %v4915, 0.0
        %v5276 = vmax.f32 %v4917, 0.0
        %v5277 = vmax.f32 %v4986, 0.0
        %v5278 = vmax.f32 %v4988, 0.0
        %v5279 = vmax.f32 %v5057, 0.0
        %v5280 = vmax.f32 %v5059, 0.0
        %v5281 = vmax.f32 %v5128, 0.0
        %v5282 = vmax.f32 %v5130, 0.0
        %v5283 = vmax.f32 %v5199, 0.0
        %v5284 = vmax.f32 %v5201, 0.0
        %v5285 = vmax.f32 %v5270, 0.0
        %5299 = vrot.lane.b32.xlu0 %v5273, 120
        %v5300 = vpop.permute.xlu0 %5299
        %5301 = vrot.lane.b32.xlu0 %v5274, 120
        %v5302 = vpop.permute.xlu0 %5301
        %5303 = vrot.lane.b32.xlu0 %v5275, 120
        %v5304 = vpop.permute.xlu0 %5303
        %5305 = vrot.lane.b32.xlu0 %v5276, 120
        %v5306 = vpop.permute.xlu0 %5305
        %5307 = vrot.lane.b32.xlu0 %v5277, 120
        %v5308 = vpop.permute.xlu0 %5307
        %5309 = vrot.lane.b32.xlu0 %v5278, 120
        %v5310 = vpop.permute.xlu0 %5309
        %5311 = vrot.lane.b32.xlu0 %v5279, 120
        %v5312 = vpop.permute.xlu0 %5311
        %5313 = vrot.lane.b32.xlu0 %v5280, 120
        %v5314 = vpop.permute.xlu0 %5313
        %5315 = vrot.lane.b32.xlu0 %v5281, 120
        %v5316 = vpop.permute.xlu0 %5315
        %5317 = vrot.lane.b32.xlu0 %v5282, 120
        %v5318 = vpop.permute.xlu0 %5317
        %5319 = vrot.lane.b32.xlu0 %v5283, 120
        %v5320 = vpop.permute.xlu0 %5319
        %5321 = vrot.lane.b32.xlu0 %v5284, 120
        %v5322 = vpop.permute.xlu0 %5321
        %5323 = vrot.lane.b32.xlu0 %v5285, 120
        %v5324 = vpop.permute.xlu0 %5323
        %v5325 = vsel %vm3579, %v5300, %v5302
        %v5326 = vsel %vm3579, %v5302, %v5304
        %v5327 = vsel %vm3579, %v5304, %v5306
        %v5328 = vsel %vm3579, %v5306, %v5308
        %v5329 = vsel %vm3579, %v5308, %v5310
        %v5330 = vsel %vm3579, %v5310, %v5312
        %v5331 = vsel %vm3579, %v5312, %v5314
        %v5332 = vsel %vm3579, %v5314, %v5316
        %v5333 = vsel %vm3579, %v5316, %v5318
        %v5334 = vsel %vm3579, %v5318, %v5320
        %v5335 = vsel %vm3579, %v5320, %v5322
        %v5336 = vsel %vm3579, %v5322, %v5324
        %v5350 = vmax.f32 %v5273, %v5325
        %v5351 = vmax.f32 %v5274, %v5326
        %v5352 = vmax.f32 %v5275, %v5327
        %v5353 = vmax.f32 %v5276, %v5328
        %v5354 = vmax.f32 %v5277, %v5329
        %v5355 = vmax.f32 %v5278, %v5330
        %v5356 = vmax.f32 %v5279, %v5331
        %v5357 = vmax.f32 %v5280, %v5332
        %v5358 = vmax.f32 %v5281, %v5333
        %v5359 = vmax.f32 %v5282, %v5334
        %v5360 = vmax.f32 %v5283, %v5335
        %v5361 = vmax.f32 %v5284, %v5336
        %v5362 = vmax.f32 %v5285, %v5324
        %v5376 = vrot.slane %v5350, 3
        %v5377 = vrot.slane %v5351, 3
        %v5378 = vrot.slane %v5352, 3
        %v5379 = vrot.slane %v5353, 3
        %v5380 = vrot.slane %v5354, 3
        %v5381 = vrot.slane %v5355, 3
        %v5382 = vrot.slane %v5356, 3
        %v5383 = vrot.slane %v5357, 3
        %v5384 = vrot.slane %v5358, 3
        %v5385 = vrot.slane %v5359, 3
        %v5386 = vrot.slane %v5360, 3
        %v5387 = vrot.slane %v5361, 3
        %v5388 = vrot.slane %v5362, 3
        %5389 = vrot.lane.b32.xlu0 %v5376, 112
        %v5390 = vpop.permute.xlu0 %5389
        %5391 = vrot.lane.b32.xlu0 %v5377, 112
        %v5392 = vpop.permute.xlu0 %5391
        %5393 = vrot.lane.b32.xlu0 %v5378, 112
        %v5394 = vpop.permute.xlu0 %5393
        %5395 = vrot.lane.b32.xlu0 %v5379, 112
        %v5396 = vpop.permute.xlu0 %5395
        %5397 = vrot.lane.b32.xlu0 %v5380, 112
        %v5398 = vpop.permute.xlu0 %5397
        %5399 = vrot.lane.b32.xlu0 %v5381, 112
        %v5400 = vpop.permute.xlu0 %5399
        %5401 = vrot.lane.b32.xlu0 %v5382, 112
        %v5402 = vpop.permute.xlu0 %5401
        %5403 = vrot.lane.b32.xlu0 %v5383, 112
        %v5404 = vpop.permute.xlu0 %5403
        %5405 = vrot.lane.b32.xlu0 %v5384, 112
        %v5406 = vpop.permute.xlu0 %5405
        %5407 = vrot.lane.b32.xlu0 %v5385, 112
        %v5408 = vpop.permute.xlu0 %5407
        %5409 = vrot.lane.b32.xlu0 %v5386, 112
        %v5410 = vpop.permute.xlu0 %5409
        %5411 = vrot.lane.b32.xlu0 %v5387, 112
        %v5412 = vpop.permute.xlu0 %5411
        %5413 = vrot.lane.b32.xlu0 %v5388, 112
        %v5414 = vpop.permute.xlu0 %5413
        %v5415 = vsel %vm4677, %v5390, %v5392
        %v5416 = vsel %vm4677, %v5392, %v5394
        %v5417 = vsel %vm4677, %v5394, %v5396
        %v5418 = vsel %vm4677, %v5396, %v5398
        %v5419 = vsel %vm4677, %v5398, %v5400
        %v5420 = vsel %vm4677, %v5400, %v5402
        %v5421 = vsel %vm4677, %v5402, %v5404
        %v5422 = vsel %vm4677, %v5404, %v5406
        %v5423 = vsel %vm4677, %v5406, %v5408
        %v5424 = vsel %vm4677, %v5408, %v5410
        %v5425 = vsel %vm4677, %v5410, %v5412
        %v5426 = vsel %vm4677, %v5412, %v5414
        %v5440 = vrot.slane %v5350, 6
        %v5441 = vrot.slane %v5351, 6
        %v5442 = vrot.slane %v5352, 6
        %v5443 = vrot.slane %v5353, 6
        %v5444 = vrot.slane %v5354, 6
        %v5445 = vrot.slane %v5355, 6
        %v5446 = vrot.slane %v5356, 6
        %v5447 = vrot.slane %v5357, 6
        %v5448 = vrot.slane %v5358, 6
        %v5449 = vrot.slane %v5359, 6
        %v5450 = vrot.slane %v5360, 6
        %v5451 = vrot.slane %v5361, 6
        %v5452 = vrot.slane %v5362, 6
        %5453 = vrot.lane.b32.xlu0 %v5440, 96
        %v5454 = vpop.permute.xlu0 %5453
        %5455 = vrot.lane.b32.xlu0 %v5441, 96
        %v5456 = vpop.permute.xlu0 %5455
        %5457 = vrot.lane.b32.xlu0 %v5442, 96
        %v5458 = vpop.permute.xlu0 %5457
        %5459 = vrot.lane.b32.xlu0 %v5443, 96
        %v5460 = vpop.permute.xlu0 %5459
        %5461 = vrot.lane.b32.xlu0 %v5444, 96
        %v5462 = vpop.permute.xlu0 %5461
        %5463 = vrot.lane.b32.xlu0 %v5445, 96
        %v5464 = vpop.permute.xlu0 %5463
        %5465 = vrot.lane.b32.xlu0 %v5446, 96
        %v5466 = vpop.permute.xlu0 %5465
        %5467 = vrot.lane.b32.xlu0 %v5447, 96
        %v5468 = vpop.permute.xlu0 %5467
        %5469 = vrot.lane.b32.xlu0 %v5448, 96
        %v5470 = vpop.permute.xlu0 %5469
        %5471 = vrot.lane.b32.xlu0 %v5449, 96
        %v5472 = vpop.permute.xlu0 %5471
        %5473 = vrot.lane.b32.xlu0 %v5450, 96
        %v5474 = vpop.permute.xlu0 %5473
        %5475 = vrot.lane.b32.xlu0 %v5451, 96
        %v5476 = vpop.permute.xlu0 %5475
        %5477 = vrot.lane.b32.xlu0 %v5452, 96
        %v5478 = vpop.permute.xlu0 %5477
        %vm5479 = vcmask 785408
        %v5480 = vsel %vm5479, %v5454, %v5456
        %v5481 = vsel %vm5479, %v5456, %v5458
        %v5482 = vsel %vm5479, %v5458, %v5460
        %v5483 = vsel %vm5479, %v5460, %v5462
        %v5484 = vsel %vm5479, %v5462, %v5464
        %v5485 = vsel %vm5479, %v5464, %v5466
        %v5486 = vsel %vm5479, %v5466, %v5468
        %v5487 = vsel %vm5479, %v5468, %v5470
        %v5488 = vsel %vm5479, %v5470, %v5472
        %v5489 = vsel %vm5479, %v5472, %v5474
        %v5490 = vsel %vm5479, %v5474, %v5476
        %v5491 = vsel %vm5479, %v5476, %v5478
        %v5505 = vsel %vm1210, %v5350, %v5415
        %v5506 = vsel %vm1210, %v5351, %v5416
        %v5507 = vsel %vm1210, %v5352, %v5417
        %v5508 = vsel %vm1210, %v5353, %v5418
        %v5509 = vsel %vm1210, %v5354, %v5419
        %v5510 = vsel %vm1210, %v5355, %v5420
        %v5511 = vsel %vm1210, %v5356, %v5421
        %v5512 = vsel %vm1210, %v5357, %v5422
        %v5513 = vsel %vm1210, %v5358, %v5423
        %v5514 = vsel %vm1210, %v5359, %v5424
        %v5515 = vsel %vm1210, %v5360, %v5425
        %v5516 = vsel %vm1210, %v5361, %v5426
        %v5517 = vsel %vm1210, %v5362, %v5414
        %v5518 = vsel %vm1224, %v5415, %v5480
        %v5519 = vsel %vm1224, %v5416, %v5481
        %v5520 = vsel %vm1224, %v5417, %v5482
        %v5521 = vsel %vm1224, %v5418, %v5483
        %v5522 = vsel %vm1224, %v5419, %v5484
        %v5523 = vsel %vm1224, %v5420, %v5485
        %v5524 = vsel %vm1224, %v5421, %v5486
        %v5525 = vsel %vm1224, %v5422, %v5487
        %v5526 = vsel %vm1224, %v5423, %v5488
        %v5527 = vsel %vm1224, %v5424, %v5489
        %v5528 = vsel %vm1224, %v5425, %v5490
        %v5529 = vsel %vm1224, %v5426, %v5491
        %v5530 = vsel %vm1224, %v5414, %v5478
        %v5531 = vld [vmem:[%s11] sm:$0x1]
        %v5532 = vld [vmem:[#allocation2] sm:$0x1]
        %5534 = vset.pattern.permute.xlu0 0
        %5535 = vperm.xlu0 %5534, %v5532
        %v5536 = vpop.permute.xlu0 %5535
        %v5538 = vlaneseq
        %v5539 = vshrl.u32 %v5538, 7
        %v5540 = vsub.s32 0, %v5539
        %v5541 = vrot.slane %v5536, %v5540
        %v5543 = vsel %vm1252, %v5531, 0
        %v5546 = vsel %vm1259, %v5518, 0
        %v5549 = vsel %vm1259, %v5519, 0
        %v5552 = vsel %vm1259, %v5520, 0
        %v5555 = vsel %vm1259, %v5521, 0
        %v5558 = vsel %vm1259, %v5522, 0
        %v5561 = vsel %vm1259, %v5523, 0
        %v5564 = vsel %vm1259, %v5524, 0
        %v5567 = vsel %vm1259, %v5525, 0
        %v5570 = vsel %vm1259, %v5526, 0
        %v5573 = vsel %vm1259, %v5527, 0
        %v5576 = vsel %vm1259, %v5528, 0
        %v5579 = vsel %vm1259, %v5529, 0
        %v5582 = vsel %vm1259, %v5530, 0
        %5584 = vmatprep.subr.mxu0 %v5506
        %5585 = vmatpush1.msra.mxu0 %v5505
        %5586 = vmatprep.subr.mxu0 %v5549
        %5587 = vmatpush1.msra.mxu0 %v5546
        %5588 = vmatprep.subr.mxu0 0.0
        %5589 = vmatpush1.msra.mxu0 0.0
        %5590 = vmatprep.subr.mxu0 0.0
        %5591 = vmatpush1.msra.mxu0 0.0
        %5592 = vmatprep.subr.mxu0 0.0
        %5593 = vmatpush1.msra.mxu0 0.0
        %5594 = vmatprep.subr.mxu0 0.0
        %5595 = vmatpush1.msra.mxu0 0.0
        %5596 = vmatprep.subr.mxu0 0.0
        %5597 = vmatpush1.msra.mxu0 0.0
        %5598 = vmatprep.subr.mxu0 0.0
        %5599 = vmatpush1.msra.mxu0 0.0
        %5600 = vmatprep.subr.mxu0 0.0
        %5601 = vmatpush1.msra.mxu0 0.0
        %5602 = vmatprep.subr.mxu0 0.0
        %5603 = vmatpush1.msra.mxu0 0.0
        %5604 = vmatprep.subr.mxu0 0.0
        %5605 = vmatpush1.msra.mxu0 0.0
        %5606 = vmatprep.subr.mxu0 0.0
        %5607 = vmatpush1.msra.mxu0 0.0
        %5608 = vmatprep.subr.mxu0 0.0
        %5609 = vmatpush1.msra.mxu0 0.0
        %5610 = vmatprep.subr.mxu0 0.0
        %5611 = vmatpush1.msra.mxu0 0.0
        %5612 = vmatprep.subr.mxu0 0.0
        %5613 = vmatpush1.msra.mxu0 0.0
        %5614 = vmatprep.subr.mxu0 0.0
        %5615 = vmatpush1.msra.mxu0 0.0
        %5616 = vmatprep.subr.mxu0 0.0
        %5617 = vmatpush1.msra.mxu0 0.0
        %5618 = vmatprep.subr.mxu0 0.0
        %5619 = vmatpush1.msra.mxu0 0.0
        %5620 = vmatprep.subr.mxu0 0.0
        %5621 = vmatpush1.msra.mxu0 0.0
        %5622 = vmatprep.subr.mxu0 0.0
        %5623 = vmatpush1.msra.mxu0 0.0
        %5624 = vmatprep.subr.mxu0 0.0
        %5625 = vmatpush1.msra.mxu0 0.0
        %5626 = vmatprep.subr.mxu0 0.0
        %5627 = vmatpush1.msra.mxu0 0.0
        %5628 = vmatprep.subr.mxu0 0.0
        %5629 = vmatpush1.msra.mxu0 0.0
        %5630 = vmatprep.subr.mxu0 0.0
        %5631 = vmatpush1.msra.mxu0 0.0
        %5632 = vmatprep.subr.mxu0 0.0
        %5633 = vmatpush1.msra.mxu0 0.0
        %5634 = vmatprep.subr.mxu0 0.0
        %5635 = vmatpush1.msra.mxu0 0.0
        %5636 = vmatprep.subr.mxu0 0.0
        %5637 = vmatpush1.msra.mxu0 0.0
        %5638 = vmatprep.subr.mxu0 0.0
        %5639 = vmatpush1.msra.mxu0 0.0
        %5640 = vmatprep.subr.mxu0 0.0
        %5641 = vmatpush1.msra.mxu0 0.0
        %5642 = vmatprep.subr.mxu0 0.0
        %5643 = vmatpush1.msra.mxu0 0.0
        %5644 = vmatprep.subr.mxu0 0.0
        %5645 = vmatpush1.msra.mxu0 0.0
        %5646 = vmatprep.subr.mxu0 0.0
        %5647 = vmatpush1.msra.mxu0 0.0
        %5648 = vmatprep.mubr.f32.mxu0 0.0
        %5649 = vmatmul.mubr.f32.gmra.mrb[0].mxu0 %v5543
        %v5650 = vpop.f32.mrb[0].mxu0
        %v5651 = vadd.f32 %v5541, %v5650
        %v5652 = vpop.f32.mrb[0].mxu0
        %v5653 = vadd.f32 %v5541, %v5652
        %5654 = vdwg.mxu0
        %5655 = vmatprep.subr.mxu0 %v5508
        %5656 = vmatpush1.msra.mxu0 %v5507
        %5657 = vmatprep.subr.mxu0 %v5555
        %5658 = vmatpush1.msra.mxu0 %v5552
        %5659 = vmatprep.subr.mxu0 0.0
        %5660 = vmatpush1.msra.mxu0 0.0
        %5661 = vmatprep.subr.mxu0 0.0
        %5662 = vmatpush1.msra.mxu0 0.0
        %5663 = vmatprep.subr.mxu0 0.0
        %5664 = vmatpush1.msra.mxu0 0.0
        %5665 = vmatprep.subr.mxu0 0.0
        %5666 = vmatpush1.msra.mxu0 0.0
        %5667 = vmatprep.subr.mxu0 0.0
        %5668 = vmatpush1.msra.mxu0 0.0
        %5669 = vmatprep.subr.mxu0 0.0
        %5670 = vmatpush1.msra.mxu0 0.0
        %5671 = vmatprep.subr.mxu0 0.0
        %5672 = vmatpush1.msra.mxu0 0.0
        %5673 = vmatprep.subr.mxu0 0.0
        %5674 = vmatpush1.msra.mxu0 0.0
        %5675 = vmatprep.subr.mxu0 0.0
        %5676 = vmatpush1.msra.mxu0 0.0
        %5677 = vmatprep.subr.mxu0 0.0
        %5678 = vmatpush1.msra.mxu0 0.0
        %5679 = vmatprep.subr.mxu0 0.0
        %5680 = vmatpush1.msra.mxu0 0.0
        %5681 = vmatprep.subr.mxu0 0.0
        %5682 = vmatpush1.msra.mxu0 0.0
        %5683 = vmatprep.subr.mxu0 0.0
        %5684 = vmatpush1.msra.mxu0 0.0
        %5685 = vmatprep.subr.mxu0 0.0
        %5686 = vmatpush1.msra.mxu0 0.0
        %5687 = vmatprep.subr.mxu0 0.0
        %5688 = vmatpush1.msra.mxu0 0.0
        %5689 = vmatprep.subr.mxu0 0.0
        %5690 = vmatpush1.msra.mxu0 0.0
        %5691 = vmatprep.subr.mxu0 0.0
        %5692 = vmatpush1.msra.mxu0 0.0
        %5693 = vmatprep.subr.mxu0 0.0
        %5694 = vmatpush1.msra.mxu0 0.0
        %5695 = vmatprep.subr.mxu0 0.0
        %5696 = vmatpush1.msra.mxu0 0.0
        %5697 = vmatprep.subr.mxu0 0.0
        %5698 = vmatpush1.msra.mxu0 0.0
        %5699 = vmatprep.subr.mxu0 0.0
        %5700 = vmatpush1.msra.mxu0 0.0
        %5701 = vmatprep.subr.mxu0 0.0
        %5702 = vmatpush1.msra.mxu0 0.0
        %5703 = vmatprep.subr.mxu0 0.0
        %5704 = vmatpush1.msra.mxu0 0.0
        %5705 = vmatprep.subr.mxu0 0.0
        %5706 = vmatpush1.msra.mxu0 0.0
        %5707 = vmatprep.subr.mxu0 0.0
        %5708 = vmatpush1.msra.mxu0 0.0
        %5709 = vmatprep.subr.mxu0 0.0
        %5710 = vmatpush1.msra.mxu0 0.0
        %5711 = vmatprep.subr.mxu0 0.0
        %5712 = vmatpush1.msra.mxu0 0.0
        %5713 = vmatprep.subr.mxu0 0.0
        %5714 = vmatpush1.msra.mxu0 0.0
        %5715 = vmatprep.subr.mxu0 0.0
        %5716 = vmatpush1.msra.mxu0 0.0
        %5717 = vmatprep.subr.mxu0 0.0
        %5718 = vmatpush1.msra.mxu0 0.0
        %5719 = vmatprep.mubr.f32.mxu0 0.0
        %5720 = vmatmul.mubr.f32.gmra.mrb[0].mxu0 %v5543
        %v5721 = vpop.f32.mrb[0].mxu0
        %v5722 = vadd.f32 %v5541, %v5721
        %v5723 = vpop.f32.mrb[0].mxu0
        %v5724 = vadd.f32 %v5541, %v5723
        %5725 = vdwg.mxu0
        %5726 = vmatprep.subr.mxu0 %v5510
        %5727 = vmatpush1.msra.mxu0 %v5509
        %5728 = vmatprep.subr.mxu0 %v5561
        %5729 = vmatpush1.msra.mxu0 %v5558
        %5730 = vmatprep.subr.mxu0 0.0
        %5731 = vmatpush1.msra.mxu0 0.0
        %5732 = vmatprep.subr.mxu0 0.0
        %5733 = vmatpush1.msra.mxu0 0.0
        %5734 = vmatprep.subr.mxu0 0.0
        %5735 = vmatpush1.msra.mxu0 0.0
        %5736 = vmatprep.subr.mxu0 0.0
        %5737 = vmatpush1.msra.mxu0 0.0
        %5738 = vmatprep.subr.mxu0 0.0
        %5739 = vmatpush1.msra.mxu0 0.0
        %5740 = vmatprep.subr.mxu0 0.0
        %5741 = vmatpush1.msra.mxu0 0.0
        %5742 = vmatprep.subr.mxu0 0.0
        %5743 = vmatpush1.msra.mxu0 0.0
        %5744 = vmatprep.subr.mxu0 0.0
        %5745 = vmatpush1.msra.mxu0 0.0
        %5746 = vmatprep.subr.mxu0 0.0
        %5747 = vmatpush1.msra.mxu0 0.0
        %5748 = vmatprep.subr.mxu0 0.0
        %5749 = vmatpush1.msra.mxu0 0.0
        %5750 = vmatprep.subr.mxu0 0.0
        %5751 = vmatpush1.msra.mxu0 0.0
        %5752 = vmatprep.subr.mxu0 0.0
        %5753 = vmatpush1.msra.mxu0 0.0
        %5754 = vmatprep.subr.mxu0 0.0
        %5755 = vmatpush1.msra.mxu0 0.0
        %5756 = vmatprep.subr.mxu0 0.0
        %5757 = vmatpush1.msra.mxu0 0.0
        %5758 = vmatprep.subr.mxu0 0.0
        %5759 = vmatpush1.msra.mxu0 0.0
        %5760 = vmatprep.subr.mxu0 0.0
        %5761 = vmatpush1.msra.mxu0 0.0
        %5762 = vmatprep.subr.mxu0 0.0
        %5763 = vmatpush1.msra.mxu0 0.0
        %5764 = vmatprep.subr.mxu0 0.0
        %5765 = vmatpush1.msra.mxu0 0.0
        %5766 = vmatprep.subr.mxu0 0.0
        %5767 = vmatpush1.msra.mxu0 0.0
        %5768 = vmatprep.subr.mxu0 0.0
        %5769 = vmatpush1.msra.mxu0 0.0
        %5770 = vmatprep.subr.mxu0 0.0
        %5771 = vmatpush1.msra.mxu0 0.0
        %5772 = vmatprep.subr.mxu0 0.0
        %5773 = vmatpush1.msra.mxu0 0.0
        %5774 = vmatprep.subr.mxu0 0.0
        %5775 = vmatpush1.msra.mxu0 0.0
        %5776 = vmatprep.subr.mxu0 0.0
        %5777 = vmatpush1.msra.mxu0 0.0
        %5778 = vmatprep.subr.mxu0 0.0
        %5779 = vmatpush1.msra.mxu0 0.0
        %5780 = vmatprep.subr.mxu0 0.0
        %5781 = vmatpush1.msra.mxu0 0.0
        %5782 = vmatprep.subr.mxu0 0.0
        %5783 = vmatpush1.msra.mxu0 0.0
        %5784 = vmatprep.subr.mxu0 0.0
        %5785 = vmatpush1.msra.mxu0 0.0
        %5786 = vmatprep.subr.mxu0 0.0
        %5787 = vmatpush1.msra.mxu0 0.0
        %5788 = vmatprep.subr.mxu0 0.0
        %5789 = vmatpush1.msra.mxu0 0.0
        %5790 = vmatprep.mubr.f32.mxu0 0.0
        %5791 = vmatmul.mubr.f32.gmra.mrb[0].mxu0 %v5543
        %v5792 = vpop.f32.mrb[0].mxu0
        %v5793 = vadd.f32 %v5541, %v5792
        %v5794 = vpop.f32.mrb[0].mxu0
        %v5795 = vadd.f32 %v5541, %v5794
        %5796 = vdwg.mxu0
        %5797 = vmatprep.subr.mxu0 %v5512
        %5798 = vmatpush1.msra.mxu0 %v5511
        %5799 = vmatprep.subr.mxu0 %v5567
        %5800 = vmatpush1.msra.mxu0 %v5564
        %5801 = vmatprep.subr.mxu0 0.0
        %5802 = vmatpush1.msra.mxu0 0.0
        %5803 = vmatprep.subr.mxu0 0.0
        %5804 = vmatpush1.msra.mxu0 0.0
        %5805 = vmatprep.subr.mxu0 0.0
        %5806 = vmatpush1.msra.mxu0 0.0
        %5807 = vmatprep.subr.mxu0 0.0
        %5808 = vmatpush1.msra.mxu0 0.0
        %5809 = vmatprep.subr.mxu0 0.0
        %5810 = vmatpush1.msra.mxu0 0.0
        %5811 = vmatprep.subr.mxu0 0.0
        %5812 = vmatpush1.msra.mxu0 0.0
        %5813 = vmatprep.subr.mxu0 0.0
        %5814 = vmatpush1.msra.mxu0 0.0
        %5815 = vmatprep.subr.mxu0 0.0
        %5816 = vmatpush1.msra.mxu0 0.0
        %5817 = vmatprep.subr.mxu0 0.0
        %5818 = vmatpush1.msra.mxu0 0.0
        %5819 = vmatprep.subr.mxu0 0.0
        %5820 = vmatpush1.msra.mxu0 0.0
        %5821 = vmatprep.subr.mxu0 0.0
        %5822 = vmatpush1.msra.mxu0 0.0
        %5823 = vmatprep.subr.mxu0 0.0
        %5824 = vmatpush1.msra.mxu0 0.0
        %5825 = vmatprep.subr.mxu0 0.0
        %5826 = vmatpush1.msra.mxu0 0.0
        %5827 = vmatprep.subr.mxu0 0.0
        %5828 = vmatpush1.msra.mxu0 0.0
        %5829 = vmatprep.subr.mxu0 0.0
        %5830 = vmatpush1.msra.mxu0 0.0
        %5831 = vmatprep.subr.mxu0 0.0
        %5832 = vmatpush1.msra.mxu0 0.0
        %5833 = vmatprep.subr.mxu0 0.0
        %5834 = vmatpush1.msra.mxu0 0.0
        %5835 = vmatprep.subr.mxu0 0.0
        %5836 = vmatpush1.msra.mxu0 0.0
        %5837 = vmatprep.subr.mxu0 0.0
        %5838 = vmatpush1.msra.mxu0 0.0
        %5839 = vmatprep.subr.mxu0 0.0
        %5840 = vmatpush1.msra.mxu0 0.0
        %5841 = vmatprep.subr.mxu0 0.0
        %5842 = vmatpush1.msra.mxu0 0.0
        %5843 = vmatprep.subr.mxu0 0.0
        %5844 = vmatpush1.msra.mxu0 0.0
        %5845 = vmatprep.subr.mxu0 0.0
        %5846 = vmatpush1.msra.mxu0 0.0
        %5847 = vmatprep.subr.mxu0 0.0
        %5848 = vmatpush1.msra.mxu0 0.0
        %5849 = vmatprep.subr.mxu0 0.0
        %5850 = vmatpush1.msra.mxu0 0.0
        %5851 = vmatprep.subr.mxu0 0.0
        %5852 = vmatpush1.msra.mxu0 0.0
        %5853 = vmatprep.subr.mxu0 0.0
        %5854 = vmatpush1.msra.mxu0 0.0
        %5855 = vmatprep.subr.mxu0 0.0
        %5856 = vmatpush1.msra.mxu0 0.0
        %5857 = vmatprep.subr.mxu0 0.0
        %5858 = vmatpush1.msra.mxu0 0.0
        %5859 = vmatprep.subr.mxu0 0.0
        %5860 = vmatpush1.msra.mxu0 0.0
        %5861 = vmatprep.mubr.f32.mxu0 0.0
        %5862 = vmatmul.mubr.f32.gmra.mrb[0].mxu0 %v5543
        %v5863 = vpop.f32.mrb[0].mxu0
        %v5864 = vadd.f32 %v5541, %v5863
        %v5865 = vpop.f32.mrb[0].mxu0
        %v5866 = vadd.f32 %v5541, %v5865
        %5867 = vdwg.mxu0
        %5868 = vmatprep.subr.mxu0 %v5514
        %5869 = vmatpush1.msra.mxu0 %v5513
        %5870 = vmatprep.subr.mxu0 %v5573
        %5871 = vmatpush1.msra.mxu0 %v5570
        %5872 = vmatprep.subr.mxu0 0.0
        %5873 = vmatpush1.msra.mxu0 0.0
        %5874 = vmatprep.subr.mxu0 0.0
        %5875 = vmatpush1.msra.mxu0 0.0
        %5876 = vmatprep.subr.mxu0 0.0
        %5877 = vmatpush1.msra.mxu0 0.0
        %5878 = vmatprep.subr.mxu0 0.0
        %5879 = vmatpush1.msra.mxu0 0.0
        %5880 = vmatprep.subr.mxu0 0.0
        %5881 = vmatpush1.msra.mxu0 0.0
        %5882 = vmatprep.subr.mxu0 0.0
        %5883 = vmatpush1.msra.mxu0 0.0
        %5884 = vmatprep.subr.mxu0 0.0
        %5885 = vmatpush1.msra.mxu0 0.0
        %5886 = vmatprep.subr.mxu0 0.0
        %5887 = vmatpush1.msra.mxu0 0.0
        %5888 = vmatprep.subr.mxu0 0.0
        %5889 = vmatpush1.msra.mxu0 0.0
        %5890 = vmatprep.subr.mxu0 0.0
        %5891 = vmatpush1.msra.mxu0 0.0
        %5892 = vmatprep.subr.mxu0 0.0
        %5893 = vmatpush1.msra.mxu0 0.0
        %5894 = vmatprep.subr.mxu0 0.0
        %5895 = vmatpush1.msra.mxu0 0.0
        %5896 = vmatprep.subr.mxu0 0.0
        %5897 = vmatpush1.msra.mxu0 0.0
        %5898 = vmatprep.subr.mxu0 0.0
        %5899 = vmatpush1.msra.mxu0 0.0
        %5900 = vmatprep.subr.mxu0 0.0
        %5901 = vmatpush1.msra.mxu0 0.0
        %5902 = vmatprep.subr.mxu0 0.0
        %5903 = vmatpush1.msra.mxu0 0.0
        %5904 = vmatprep.subr.mxu0 0.0
        %5905 = vmatpush1.msra.mxu0 0.0
        %5906 = vmatprep.subr.mxu0 0.0
        %5907 = vmatpush1.msra.mxu0 0.0
        %5908 = vmatprep.subr.mxu0 0.0
        %5909 = vmatpush1.msra.mxu0 0.0
        %5910 = vmatprep.subr.mxu0 0.0
        %5911 = vmatpush1.msra.mxu0 0.0
        %5912 = vmatprep.subr.mxu0 0.0
        %5913 = vmatpush1.msra.mxu0 0.0
        %5914 = vmatprep.subr.mxu0 0.0
        %5915 = vmatpush1.msra.mxu0 0.0
        %5916 = vmatprep.subr.mxu0 0.0
        %5917 = vmatpush1.msra.mxu0 0.0
        %5918 = vmatprep.subr.mxu0 0.0
        %5919 = vmatpush1.msra.mxu0 0.0
        %5920 = vmatprep.subr.mxu0 0.0
        %5921 = vmatpush1.msra.mxu0 0.0
        %5922 = vmatprep.subr.mxu0 0.0
        %5923 = vmatpush1.msra.mxu0 0.0
        %5924 = vmatprep.subr.mxu0 0.0
        %5925 = vmatpush1.msra.mxu0 0.0
        %5926 = vmatprep.subr.mxu0 0.0
        %5927 = vmatpush1.msra.mxu0 0.0
        %5928 = vmatprep.subr.mxu0 0.0
        %5929 = vmatpush1.msra.mxu0 0.0
        %5930 = vmatprep.subr.mxu0 0.0
        %5931 = vmatpush1.msra.mxu0 0.0
        %5932 = vmatprep.mubr.f32.mxu0 0.0
        %5933 = vmatmul.mubr.f32.gmra.mrb[0].mxu0 %v5543
        %v5934 = vpop.f32.mrb[0].mxu0
        %v5935 = vadd.f32 %v5541, %v5934
        %v5936 = vpop.f32.mrb[0].mxu0
        %v5937 = vadd.f32 %v5541, %v5936
        %5938 = vdwg.mxu0
        %5939 = vmatprep.subr.mxu0 %v5516
        %5940 = vmatpush1.msra.mxu0 %v5515
        %5941 = vmatprep.subr.mxu0 %v5579
        %5942 = vmatpush1.msra.mxu0 %v5576
        %5943 = vmatprep.subr.mxu0 0.0
        %5944 = vmatpush1.msra.mxu0 0.0
        %5945 = vmatprep.subr.mxu0 0.0
        %5946 = vmatpush1.msra.mxu0 0.0
        %5947 = vmatprep.subr.mxu0 0.0
        %5948 = vmatpush1.msra.mxu0 0.0
        %5949 = vmatprep.subr.mxu0 0.0
        %5950 = vmatpush1.msra.mxu0 0.0
        %5951 = vmatprep.subr.mxu0 0.0
        %5952 = vmatpush1.msra.mxu0 0.0
        %5953 = vmatprep.subr.mxu0 0.0
        %5954 = vmatpush1.msra.mxu0 0.0
        %5955 = vmatprep.subr.mxu0 0.0
        %5956 = vmatpush1.msra.mxu0 0.0
        %5957 = vmatprep.subr.mxu0 0.0
        %5958 = vmatpush1.msra.mxu0 0.0
        %5959 = vmatprep.subr.mxu0 0.0
        %5960 = vmatpush1.msra.mxu0 0.0
        %5961 = vmatprep.subr.mxu0 0.0
        %5962 = vmatpush1.msra.mxu0 0.0
        %5963 = vmatprep.subr.mxu0 0.0
        %5964 = vmatpush1.msra.mxu0 0.0
        %5965 = vmatprep.subr.mxu0 0.0
        %5966 = vmatpush1.msra.mxu0 0.0
        %5967 = vmatprep.subr.mxu0 0.0
        %5968 = vmatpush1.msra.mxu0 0.0
        %5969 = vmatprep.subr.mxu0 0.0
        %5970 = vmatpush1.msra.mxu0 0.0
        %5971 = vmatprep.subr.mxu0 0.0
        %5972 = vmatpush1.msra.mxu0 0.0
        %5973 = vmatprep.subr.mxu0 0.0
        %5974 = vmatpush1.msra.mxu0 0.0
        %5975 = vmatprep.subr.mxu0 0.0
        %5976 = vmatpush1.msra.mxu0 0.0
        %5977 = vmatprep.subr.mxu0 0.0
        %5978 = vmatpush1.msra.mxu0 0.0
        %5979 = vmatprep.subr.mxu0 0.0
        %5980 = vmatpush1.msra.mxu0 0.0
        %5981 = vmatprep.subr.mxu0 0.0
        %5982 = vmatpush1.msra.mxu0 0.0
        %5983 = vmatprep.subr.mxu0 0.0
        %5984 = vmatpush1.msra.mxu0 0.0
        %5985 = vmatprep.subr.mxu0 0.0
        %5986 = vmatpush1.msra.mxu0 0.0
        %5987 = vmatprep.subr.mxu0 0.0
        %5988 = vmatpush1.msra.mxu0 0.0
        %5989 = vmatprep.subr.mxu0 0.0
        %5990 = vmatpush1.msra.mxu0 0.0
        %5991 = vmatprep.subr.mxu0 0.0
        %5992 = vmatpush1.msra.mxu0 0.0
        %5993 = vmatprep.subr.mxu0 0.0
        %5994 = vmatpush1.msra.mxu0 0.0
        %5995 = vmatprep.subr.mxu0 0.0
        %5996 = vmatpush1.msra.mxu0 0.0
        %5997 = vmatprep.subr.mxu0 0.0
        %5998 = vmatpush1.msra.mxu0 0.0
        %5999 = vmatprep.subr.mxu0 0.0
        %6000 = vmatpush1.msra.mxu0 0.0
        %6001 = vmatprep.subr.mxu0 0.0
        %6002 = vmatpush1.msra.mxu0 0.0
        %6003 = vmatprep.mubr.f32.mxu0 0.0
        %6004 = vmatmul.mubr.f32.gmra.mrb[0].mxu0 %v5543
        %v6005 = vpop.f32.mrb[0].mxu0
        %v6006 = vadd.f32 %v5541, %v6005
        %v6007 = vpop.f32.mrb[0].mxu0
        %v6008 = vadd.f32 %v5541, %v6007
        %6009 = vdwg.mxu0
        %6010 = vmatprep.subr.mxu0 0.0
        %6011 = vmatpush1.msra.mxu0 %v5517
        %6012 = vmatprep.subr.mxu0 0.0
        %6013 = vmatpush1.msra.mxu0 %v5582
        %6014 = vmatprep.subr.mxu0 0.0
        %6015 = vmatpush1.msra.mxu0 0.0
        %6016 = vmatprep.subr.mxu0 0.0
        %6017 = vmatpush1.msra.mxu0 0.0
        %6018 = vmatprep.subr.mxu0 0.0
        %6019 = vmatpush1.msra.mxu0 0.0
        %6020 = vmatprep.subr.mxu0 0.0
        %6021 = vmatpush1.msra.mxu0 0.0
        %6022 = vmatprep.subr.mxu0 0.0
        %6023 = vmatpush1.msra.mxu0 0.0
        %6024 = vmatprep.subr.mxu0 0.0
        %6025 = vmatpush1.msra.mxu0 0.0
        %6026 = vmatprep.subr.mxu0 0.0
        %6027 = vmatpush1.msra.mxu0 0.0
        %6028 = vmatprep.subr.mxu0 0.0
        %6029 = vmatpush1.msra.mxu0 0.0
        %6030 = vmatprep.subr.mxu0 0.0
        %6031 = vmatpush1.msra.mxu0 0.0
        %6032 = vmatprep.subr.mxu0 0.0
        %6033 = vmatpush1.msra.mxu0 0.0
        %6034 = vmatprep.subr.mxu0 0.0
        %6035 = vmatpush1.msra.mxu0 0.0
        %6036 = vmatprep.subr.mxu0 0.0
        %6037 = vmatpush1.msra.mxu0 0.0
        %6038 = vmatprep.subr.mxu0 0.0
        %6039 = vmatpush1.msra.mxu0 0.0
        %6040 = vmatprep.subr.mxu0 0.0
        %6041 = vmatpush1.msra.mxu0 0.0
        %6042 = vmatprep.subr.mxu0 0.0
        %6043 = vmatpush1.msra.mxu0 0.0
        %6044 = vmatprep.subr.mxu0 0.0
        %6045 = vmatpush1.msra.mxu0 0.0
        %6046 = vmatprep.subr.mxu0 0.0
        %6047 = vmatpush1.msra.mxu0 0.0
        %6048 = vmatprep.subr.mxu0 0.0
        %6049 = vmatpush1.msra.mxu0 0.0
        %6050 = vmatprep.subr.mxu0 0.0
        %6051 = vmatpush1.msra.mxu0 0.0
        %6052 = vmatprep.subr.mxu0 0.0
        %6053 = vmatpush1.msra.mxu0 0.0
        %6054 = vmatprep.subr.mxu0 0.0
        %6055 = vmatpush1.msra.mxu0 0.0
        %6056 = vmatprep.subr.mxu0 0.0
        %6057 = vmatpush1.msra.mxu0 0.0
        %6058 = vmatprep.subr.mxu0 0.0
        %6059 = vmatpush1.msra.mxu0 0.0
        %6060 = vmatprep.subr.mxu0 0.0
        %6061 = vmatpush1.msra.mxu0 0.0
        %6062 = vmatprep.subr.mxu0 0.0
        %6063 = vmatpush1.msra.mxu0 0.0
        %6064 = vmatprep.subr.mxu0 0.0
        %6065 = vmatpush1.msra.mxu0 0.0
        %6066 = vmatprep.subr.mxu0 0.0
        %6067 = vmatpush1.msra.mxu0 0.0
        %6068 = vmatprep.subr.mxu0 0.0
        %6069 = vmatpush1.msra.mxu0 0.0
        %6070 = vmatprep.subr.mxu0 0.0
        %6071 = vmatpush1.msra.mxu0 0.0
        %6072 = vmatprep.subr.mxu0 0.0
        %6073 = vmatpush1.msra.mxu0 0.0
        %6074 = vmatprep.mubr.f32.mxu0 0.0
        %6075 = vmatmul.mubr.f32.gmra.mrb[0].mxu0 %v5543
        %v6076 = vpop.f32.mrb[0].mxu0
        %v6077 = vadd.f32 %v5541, %v6076
        %v6078 = vpop.f32.mrb[0].mxu0
        %6079 = vdwg.mxu0
        %v6080 = vld [vmem:[%s13] sm:$0xff]
        %v6081 = vld [vmem:[%s13 + $0x8] sm:$0x1f]
        %v6095 = vcombine.low %v5651, %v5653
        %v6096 = vcombine.low %v5722, %v5724
        %v6097 = vcombine.low %v5793, %v5795
        %v6098 = vcombine.low %v5864, %v5866
        %v6100 = vunpack.c.l.s4 1966171168
        %v6101 = vunpack.c.0.s8 %v6100
        %v6102 = vlaneseq
        %v6103 = vshrl.u32 %v6102, 7
        %v6104 = vsub.s32 %v6101, %v6103
        %v6105 = vrot.slane %v6095, %v6104
        %v6107 = vunpack.c.l.s4 1966171168
        %v6108 = vunpack.c.0.s8 %v6107
        %v6109 = vlaneseq
        %v6110 = vshrl.u32 %v6109, 7
        %v6111 = vsub.s32 %v6108, %v6110
        %v6112 = vrot.slane %v6096, %v6111
        %v6114 = vunpack.c.l.s4 1966171168
        %v6115 = vunpack.c.0.s8 %v6114
        %v6116 = vlaneseq
        %v6117 = vshrl.u32 %v6116, 7
        %v6118 = vsub.s32 %v6115, %v6117
        %v6119 = vrot.slane %v6097, %v6118
        %v6121 = vunpack.c.l.s4 1966171168
        %v6122 = vunpack.c.0.s8 %v6121
        %v6123 = vlaneseq
        %v6124 = vshrl.u32 %v6123, 7
        %v6125 = vsub.s32 %v6122, %v6124
        %v6126 = vrot.slane %v6098, %v6125
        %v6127 = vcombine.low %v6105, %v6112
        %v6128 = vcombine.low %v6119, %v6126
        %v6130 = vunpack.c.l.s4 1966171168
        %v6131 = vunpack.c.0.s8 %v6130
        %v6132 = vlaneseq
        %v6133 = vshrl.u32 %v6132, 7
        %v6134 = vsub.s32 %v6131, %v6133
        %v6135 = vrot.slane %v6127, %v6134
        %v6137 = vunpack.c.l.s4 1966171168
        %v6138 = vunpack.c.0.s8 %v6137
        %v6139 = vlaneseq
        %v6140 = vshrl.u32 %v6139, 7
        %v6141 = vsub.s32 %v6138, %v6140
        %v6142 = vrot.slane %v6128, %v6141
        %v6143 = vcombine.low %v6135, %v6142
        %v6144 = vcombine.low %v5935, %v5937
        %v6145 = vcombine.low %v6006, %v6008
        %v6147 = vunpack.c.l.s4 1966171168
        %v6148 = vunpack.c.0.s8 %v6147
        %v6149 = vlaneseq
        %v6150 = vshrl.u32 %v6149, 7
        %v6151 = vsub.s32 %v6148, %v6150
        %v6152 = vrot.slane %v6144, %v6151
        %v6154 = vunpack.c.l.s4 1966171168
        %v6155 = vunpack.c.0.s8 %v6154
        %v6156 = vlaneseq
        %v6157 = vshrl.u32 %v6156, 7
        %v6158 = vsub.s32 %v6155, %v6157
        %v6159 = vrot.slane %v6145, %v6158
        %v6161 = vunpack.c.l.s4 1966171168
        %v6162 = vunpack.c.0.s8 %v6161
        %v6163 = vlaneseq
        %v6164 = vshrl.u32 %v6163, 7
        %v6165 = vsub.s32 %v6162, %v6164
        %v6166 = vrot.slane %v6077, %v6165
        %v6167 = vcombine.low %v6152, %v6159
        %v6169 = vunpack.c.l.s4 1966171168
        %v6170 = vunpack.c.0.s8 %v6169
        %v6171 = vlaneseq
        %v6172 = vshrl.u32 %v6171, 7
        %v6173 = vsub.s32 %v6170, %v6172
        %v6174 = vrot.slane %v6167, %v6173
        %v6176 = vunpack.c.l.s4 1966171168
        %v6177 = vunpack.c.0.s8 %v6176
        %v6178 = vlaneseq
        %v6179 = vshrl.u32 %v6178, 7
        %v6180 = vsub.s32 %v6177, %v6179
        %v6181 = vrot.slane %v6166, %v6180
        %v6182 = vcombine.low %v6174, %v6181
        %v6185 = vmul.f32 %v6080, %v6143
        %v6186 = vmul.f32 %v6081, %v6182
        %v6189 = vlaneseq
        %v6190 = vshrl.u32 %v6189, 7
        %v6191 = vsub.s32 0, %v6190
        %v6192 = vrot.slane %v6185, %v6191
        %v6193 = vlaneseq
        %v6194 = vshrl.u32 %v6193, 7
        %v6195 = vsub.s32 1, %v6194
        %v6196 = vrot.slane %v6185, %v6195
        %v6197 = vlaneseq
        %v6198 = vshrl.u32 %v6197, 7
        %v6199 = vsub.s32 2, %v6198
        %v6200 = vrot.slane %v6185, %v6199
        %v6201 = vlaneseq
        %v6202 = vshrl.u32 %v6201, 7
        %v6203 = vsub.s32 3, %v6202
        %v6204 = vrot.slane %v6185, %v6203
        %v6205 = vlaneseq
        %v6206 = vshrl.u32 %v6205, 7
        %v6207 = vsub.s32 4, %v6206
        %v6208 = vrot.slane %v6185, %v6207
        %v6209 = vlaneseq
        %v6210 = vshrl.u32 %v6209, 7
        %v6211 = vsub.s32 5, %v6210
        %v6212 = vrot.slane %v6185, %v6211
        %v6213 = vlaneseq
        %v6214 = vshrl.u32 %v6213, 7
        %v6215 = vsub.s32 6, %v6214
        %v6216 = vrot.slane %v6185, %v6215
        %v6217 = vlaneseq
        %v6218 = vshrl.u32 %v6217, 7
        %v6219 = vsub.s32 7, %v6218
        %v6220 = vrot.slane %v6185, %v6219
        %v6221 = vlaneseq
        %v6222 = vshrl.u32 %v6221, 7
        %v6223 = vsub.s32 0, %v6222
        %v6224 = vrot.slane %v6186, %v6223
        %v6225 = vlaneseq
        %v6226 = vshrl.u32 %v6225, 7
        %v6227 = vsub.s32 1, %v6226
        %v6228 = vrot.slane %v6186, %v6227
        %v6229 = vlaneseq
        %v6230 = vshrl.u32 %v6229, 7
        %v6231 = vsub.s32 2, %v6230
        %v6232 = vrot.slane %v6186, %v6231
        %v6233 = vlaneseq
        %v6234 = vshrl.u32 %v6233, 7
        %v6235 = vsub.s32 3, %v6234
        %v6236 = vrot.slane %v6186, %v6235
        %v6237 = vlaneseq
        %v6238 = vshrl.u32 %v6237, 7
        %v6239 = vsub.s32 4, %v6238
        %v6240 = vrot.slane %v6186, %v6239
        %vm6254 = vcmask 1040384
        %v6255 = vsel %vm6254, %v6192, 0.0
        %v6256 = vsel %vm6254, %v6196, 0.0
        %v6257 = vadd.f32 %v6255, %v6256
        %v6258 = vsel %vm6254, %v6200, 0.0
        %v6259 = vadd.f32 %v6257, %v6258
        %v6260 = vsel %vm6254, %v6204, 0.0
        %v6261 = vadd.f32 %v6259, %v6260
        %v6262 = vsel %vm6254, %v6208, 0.0
        %v6263 = vadd.f32 %v6261, %v6262
        %v6264 = vsel %vm6254, %v6212, 0.0
        %v6265 = vadd.f32 %v6263, %v6264
        %v6266 = vsel %vm6254, %v6216, 0.0
        %v6267 = vadd.f32 %v6265, %v6266
        %v6268 = vsel %vm6254, %v6220, 0.0
        %v6269 = vadd.f32 %v6267, %v6268
        %v6270 = vsel %vm6254, %v6224, 0.0
        %v6271 = vadd.f32 %v6269, %v6270
        %v6272 = vsel %vm6254, %v6228, 0.0
        %v6273 = vadd.f32 %v6271, %v6272
        %v6274 = vsel %vm6254, %v6232, 0.0
        %v6275 = vadd.f32 %v6273, %v6274
        %v6276 = vsel %vm6254, %v6236, 0.0
        %v6277 = vadd.f32 %v6275, %v6276
        %vm6278 = vcmask 393216
        %v6279 = vsel %vm6278, %v6240, 0.0
        %v6280 = vadd.f32 %v6277, %v6279
        %6281 = vadd.xlane.f32.xlu0 %v6280
        %v6282 = vpop.xlane.xlu0 %6281
        %v6283 = vld [vmem:[#allocation3] sm:$0x1]
        %v6284 = vadd.f32 %v6282, %v6283
        %v6285 = vxor.u32 %v6284, 2147483648
        %v6286 = vmul.f32 %v6285, 1.442695
        %v6287 = vpow.pop %v6286
        %v6288 = vadd.f32 %v6287, 1.0
        %v6289 = vrcp.pop %v6288
        %v6290 = vmul.f32 1.0, %v6289
        %vm6291 = vcmask 0
        %6292 = vst.msk [vmem:[%s512] sm:$0x1] %vm6291, %v6290
        %p6293 = scmp.lt.s32.totalorder %s33, 1
        %s6294 = scalar_select %p6293, %s33, 1
        %s6295 = scalar_lea.vmem %s15, %s6294
        // Predicated region
        $region85: #{tpu_custom_call.1} parent=79 // pred_check
          %p6296 = pneg %p371
        $region86: #{tpu_custom_call.1} parent=79 // pred_check_branch
          %6298 = sbr.rel (%p6296) target = $region88
        $region87: #{tpu_custom_call.1} parent=79 // pred_region
          _
        $region88: #{tpu_custom_call.1} parent=79 // pred_fallthru
          _
      $region80: #{tpu_custom_call.1} parent=5 // pred_fallthru
        _
      %p6299 = scmp.le.s32.totalorder 2, %s28
      // Predicated region
      $region89: #{tpu_custom_call.1} parent=5 // pred_check
        %p6300 = pneg %p6299
      $region90: #{tpu_custom_call.1} parent=5 // pred_check_branch
        %6302 = sbr.rel (%p6300) target = $region92
      $region91: #{tpu_custom_call.1} parent=5 // pred_region
        %s6303 = ssub.s32 %s28, 2
        // Predicated region
        $region93: #{tpu_custom_call.1} parent=91 // pred_check
          %p6304 = pneg %p377
        $region94: #{tpu_custom_call.1} parent=91 // pred_check_branch
          %6306 = sbr.rel (%p6304) target = $region96
        $region95: #{tpu_custom_call.1} parent=91 // pred_region
          %p6307 = scmp.lt.s32.totalorder %s34, 1
          %s6308 = scalar_select %p6307, %s34, 1
          %s6309 = scalar_lea.vmem %s15, %s6308
        $region96: #{tpu_custom_call.1} parent=91 // pred_fallthru
          _
      $region92: #{tpu_custom_call.1} parent=5 // pred_fallthru
        _
    $region6: #{tpu_custom_call.1} parent=1 // loop_footer
      %s32 = sadd.s32 1, %s28
    $region7: #{tpu_custom_call.1} parent=1 // loop_footer_branch
      %27 = sbr.rel target = $region3
    $region8: #{tpu_custom_call.1} parent=1 // loop_exit
      _
    %6310 = vsyncpa [#allocation5], 1
    %s6311 = scalar_lea.sflag [#allocation5], 1
    %6312 = vsyncpa %s6311, 1

</llo_original>
